<compile_context>
chip_gen: v6e
topology: v6e:2x2x1
jax: 0.10.0
libtpu: 0.0.40
codegen_flags: <defaults>
</compile_context>

<pallas_src>
import math
import functools

import jax
import jax.numpy as jnp
from jax.experimental import pallas as pl
from jax.experimental.pallas import tpu as pltpu

# ----------------------------- config (small) -----------------------------
B = 2
C = 32          # in_channels (divisible by n_head=4 and by 2 for the SE gate)
N_LOCAL = 16    # local-branch tokens
N_GLOBAL = 8    # global-branch tokens
T = N_LOCAL + N_GLOBAL
N_HEAD = 4
DH = C // N_HEAD
BN_EPS = 1e-5


# ------------------------------ kernel helpers -----------------------------
def _dot(a, b):
    """bf16 MXU operands, f32 accumulation (explicit precision)."""
    return jnp.dot(a.astype(jnp.bfloat16), b.astype(jnp.bfloat16),
                   preferred_element_type=jnp.float32)


def _sigmoid(z):
    # exp on EUP, approx reciprocal on EUP -> no VALU divide.
    return pl.reciprocal(1.0 + jnp.exp(-z), approx=True)


# ------------------------------ fused kernel -------------------------------
def _block_kernel(xl_ref, xg_ref,
                  lw1_ref, lb1_ref, lw2_ref, lb2_ref,
                  gw1_ref, gb1_ref, gw2_ref, gb2_ref,
                  sw1_ref, sw2_ref,
                  wqkv_ref, bqkv_ref,
                  wc_ref, bc_ref,
                  o_ref, *, batch, n_local, n_global, n_head):
    """Whole TransGnnBlock, all batches, fully resident in VMEM/vregs."""
    xl_in = xl_ref[...]                       # (B*Nl, C) f32
    xg_in = xg_ref[...]                       # (B*Ng, C) f32
    c = xl_in.shape[1]
    dh = c // n_head
    t = n_local + n_global
    scale = 1.0 / math.sqrt(dh)

    # TODO(synk): GrapherTrans treated as identity (source unavailable).

    # --- FFN branches (1x1 conv + folded eval-mode BN) with residual --------
    hl = jnp.maximum(_dot(xl_in, lw1_ref[...]) + lb1_ref[...], 0.0)
    xl = _dot(hl, lw2_ref[...]) + lb2_ref[...] + xl_in
    hg = jnp.maximum(_dot(xg_in, gw1_ref[...]) + gb1_ref[...], 0.0)
    xg = _dot(hg, gw2_ref[...]) + gb2_ref[...] + xg_in

    # --- SE gate: mean over each batch's (local ++ global) tokens -----------
    gates = []
    for b in range(batch):
        sl = jnp.sum(xl[b * n_local:(b + 1) * n_local], axis=0, keepdims=True)
        sg = jnp.sum(xg[b * n_global:(b + 1) * n_global], axis=0, keepdims=True)
        pooled = (sl + sg) * (1.0 / t)                            # (1, C)
        gb = jnp.maximum(_dot(pooled, sw1_ref[...]), 0.0)
        gates.append(_sigmoid(_dot(gb, sw2_ref[...])))            # (1, C)

    # --- channel gate + re-pack rows in (batch, [local ++ global]) order ----
    xs = []
    for b in range(batch):
        xs.append(xl[b * n_local:(b + 1) * n_local] * gates[b])
        xs.append(xg[b * n_global:(b + 1) * n_global] * gates[b])
    x = jnp.concatenate(xs, axis=0)                               # (B*T, C)

    # --- single fused QKV GEMM for all batches & heads ----------------------
    qkv = _dot(x, wqkv_ref[...]) + bqkv_ref[...]                  # (B*T, 3C)

    # --- 4-head SDPA, batches & heads statically unrolled -------------------
    out_rows = []
    for b in range(batch):
        r0 = b * t
        acc = jnp.zeros((t, c), jnp.float32)
        for h in range(n_head):
            qh = qkv[r0:r0 + t, h * dh:(h + 1) * dh]
            kh = qkv[r0:r0 + t, c + h * dh:c + (h + 1) * dh]
            vh = qkv[r0:r0 + t, 2 * c + h * dh:2 * c + (h + 1) * dh]
            s = jax.lax.dot_general(
                qh.astype(jnp.bfloat16), kh.astype(jnp.bfloat16),
                (((1,), (1,)), ((), ())),
                preferred_element_type=jnp.float32) * scale       # (T, T)
            s = s - jnp.max(s, axis=-1, keepdims=True)
            p = jnp.exp(s)
            p = p * pl.reciprocal(jnp.sum(p, axis=-1, keepdims=True), approx=True)
            oh = _dot(p, vh)                                      # (T, dh)
            # combine projection folded per head -> no lane-concat of heads.
            acc = acc + _dot(oh, wc_ref[h])                       # (T, C)
        out_rows.append(acc + bc_ref[...])
    o_ref[...] = jnp.concatenate(out_rows, axis=0)                # (B*T, C)


def transgnn_block_forward(params, x_local, x_global):
    """One launch; batch folded into rows.  Inputs: (B, Nl, C), (B, Ng, C)."""
    bx, nl, c = x_local.shape
    ng = x_global.shape[1]
    t = nl + ng
    weights = (params["l_w1"], params["l_b1"], params["l_w2"], params["l_b2"],
               params["g_w1"], params["g_b1"], params["g_w2"], params["g_b2"],
               params["se_w1"], params["se_w2"],
               params["wqkv"], params["bqkv"],
               params["wc"], params["bc"])
    vmem = pl.BlockSpec(memory_space=pltpu.MemorySpace.VMEM)
    out2d = pl.pallas_call(
        functools.partial(_block_kernel, batch=bx, n_local=nl,
                          n_global=ng, n_head=N_HEAD),
        out_shape=jax.ShapeDtypeStruct((bx * t, c), jnp.float32),
        in_specs=[vmem] * (2 + len(weights)),
        out_specs=vmem,
    )(x_local.reshape(bx * nl, c).astype(jnp.float32),
      x_global.reshape(bx * ng, c).astype(jnp.float32),
      *weights)
    return out2d.reshape(bx, t, c)


# ------------------------- parameter initialisation ------------------------
def init_conv_bn(key, cin, cout):
    """Conv2d(cin,cout,1) + BatchNorm2d (eval mode) folded.
    Returns pre-transposed (cin, cout) bf16 weight and (1, cout) f32 bias."""
    k1, k2, k3, k4, k5, k6 = jax.random.split(key, 6)
    bound = 1.0 / math.sqrt(cin)
    w = jax.random.uniform(k1, (cout, cin), jnp.float32, -bound, bound)
    b = jax.random.uniform(k2, (cout,), jnp.float32, -bound, bound)
    gamma = jax.random.uniform(k3, (cout,), jnp.float32, 0.5, 1.5)
    beta = jax.random.normal(k4, (cout,), jnp.float32) * 0.1
    mean = jax.random.normal(k5, (cout,), jnp.float32) * 0.1
    var = jax.random.uniform(k6, (cout,), jnp.float32, 0.5, 1.5)
    scale = gamma / jnp.sqrt(var + BN_EPS)
    w_fold = (w * scale[:, None]).T                               # (cin, cout)
    b_fold = ((b - mean) * scale + beta).reshape(1, cout)
    return w_fold.astype(jnp.bfloat16), b_fold


def init_linear(key, din, dout, bias=True):
    k1, k2 = jax.random.split(key)
    bound = 1.0 / math.sqrt(din)
    w = jax.random.uniform(k1, (dout, din), jnp.float32, -bound, bound)
    b = (jax.random.uniform(k2, (dout,), jnp.float32, -bound, bound)
         if bias else jnp.zeros((dout,), jnp.float32))
    return w, b


def init_block_params(key, c, n_head):
    ks = jax.random.split(key, 10)
    l_w1, l_b1 = init_conv_bn(ks[0], c, 4 * c)
    l_w2, l_b2 = init_conv_bn(ks[1], 4 * c, c)
    g_w1, g_b1 = init_conv_bn(ks[2], c, 4 * c)
    g_w2, g_b2 = init_conv_bn(ks[3], 4 * c, c)
    se1_w, _ = init_linear(ks[4], c, c // 2, bias=False)
    se2_w, _ = init_linear(ks[5], c // 2, c, bias=False)
    wq, bq = init_linear(ks[6], c, c)
    wk, bk = init_linear(ks[7], c, c)
    wv, bv = init_linear(ks[8], c, c)
    wc, bc = init_linear(ks[9], c, c)
    dh = c // n_head
    return {
        "l_w1": l_w1, "l_b1": l_b1, "l_w2": l_w2, "l_b2": l_b2,
        "g_w1": g_w1, "g_b1": g_b1, "g_w2": g_w2, "g_b2": g_b2,
        "se_w1": se1_w.T.astype(jnp.bfloat16),                    # (c, c//2)
        "se_w2": se2_w.T.astype(jnp.bfloat16),                    # (c//2, c)
        "wqkv": jnp.concatenate([wq.T, wk.T, wv.T], axis=1).astype(jnp.bfloat16),
        "bqkv": jnp.concatenate([bq, bk, bv]).reshape(1, 3 * c),
        # combine weight, pre-transposed to (in, out) then split head-major
        # along the input-feature axis -> (H, dh, c).
        "wc": wc.T.reshape(n_head, dh, c).astype(jnp.bfloat16),
        "bc": bc.reshape(1, c),
    }


# ------------------------- pure-JAX reference (f32) ------------------------
def reference_forward(params, x_local, x_global):
    hi = jax.lax.Precision.HIGHEST

    def lin(x, w, b=None):
        y = jnp.dot(x, w.astype(jnp.float32), precision=hi)
        return y if b is None else y + b

    hl = jnp.maximum(lin(x_local, params["l_w1"], params["l_b1"]), 0.0)
    xl = lin(hl, params["l_w2"], params["l_b2"]) + x_local
    hg = jnp.maximum(lin(x_global, params["g_w1"], params["g_b1"]), 0.0)
    xg = lin(hg, params["g_w2"], params["g_b2"]) + x_global
    x = jnp.concatenate([xl, xg], axis=1)                         # (B, T, C)
    pooled = jnp.mean(x, axis=1)                                  # (B, C)
    g = jnp.maximum(lin(pooled, params["se_w1"]), 0.0)
    g = jax.nn.sigmoid(lin(g, params["se_w2"]))
    x = x * g[:, None, :]
    qkv = lin(x, params["wqkv"], params["bqkv"])                  # (B, T, 3C)
    bx, t, c3 = qkv.shape
    c = c3 // 3

    def split(z):
        return z.reshape(bx, t, N_HEAD, DH).transpose(0, 2, 1, 3)

    q, k, v = split(qkv[..., :c]), split(qkv[..., c:2 * c]), split(qkv[..., 2 * c:])
    s = jnp.einsum("bhqd,bhkd->bhqk", q, k, precision=hi) / math.sqrt(DH)
    p = jax.nn.softmax(s, axis=-1)
    o = jnp.einsum("bhqk,bhkd->bhqd", p, v, precision=hi)
    o = o.transpose(0, 2, 1, 3).reshape(bx, t, c)
    wc_full = params["wc"].astype(jnp.float32).reshape(c, c)
    return jnp.dot(o, wc_full, precision=hi) + params["bc"]


# ----------------------------------- main ----------------------------------
if __name__ == "__main__":
    key = jax.random.PRNGKey(0)
    kp, kl, kg = jax.random.split(key, 3)
    params = init_block_params(kp, C, N_HEAD)

    x_local = jax.random.normal(kl, (B, N_LOCAL, C), jnp.float32)
    x_global = jax.random.normal(kg, (B, N_GLOBAL, C), jnp.float32)

    fwd = jax.jit(transgnn_block_forward)
    out = jax.block_until_ready(fwd(params, x_local, x_global))

    assert out.shape == (B, T, C), out.shape
    assert bool(jnp.all(jnp.isfinite(out)))

    ref = reference_forward(params, x_local, x_global)
    max_err = float(jnp.max(jnp.abs(out - ref)))
    assert max_err < 0.2, f"kernel/reference mismatch: max_err={max_err}"

    print("KERNEL_OK")
</pallas_src>

<mosaic_0001>
module attributes {stable_mosaic.version = 11 : i64} {
  func.func @_block_kernel(%arg0: memref<32x32xf32, #tpu.memory_space<vmem>>, %arg1: memref<16x32xf32, #tpu.memory_space<vmem>>, %arg2: memref<32x128xbf16, #tpu.memory_space<vmem>>, %arg3: memref<1x128xf32, #tpu.memory_space<vmem>>, %arg4: memref<128x32xbf16, #tpu.memory_space<vmem>>, %arg5: memref<1x32xf32, #tpu.memory_space<vmem>>, %arg6: memref<32x128xbf16, #tpu.memory_space<vmem>>, %arg7: memref<1x128xf32, #tpu.memory_space<vmem>>, %arg8: memref<128x32xbf16, #tpu.memory_space<vmem>>, %arg9: memref<1x32xf32, #tpu.memory_space<vmem>>, %arg10: memref<32x16xbf16, #tpu.memory_space<vmem>>, %arg11: memref<16x32xbf16, #tpu.memory_space<vmem>>, %arg12: memref<32x96xbf16, #tpu.memory_space<vmem>>, %arg13: memref<1x96xf32, #tpu.memory_space<vmem>>, %arg14: memref<4x8x32xbf16, #tpu.memory_space<vmem>>, %arg15: memref<1x32xf32, #tpu.memory_space<vmem>>, %arg16: memref<48x32xf32, #tpu.memory_space<vmem>>) attributes {dimension_semantics = [], scalar_prefetch = 0 : i64, scratch_operands = 0 : i64, tpu.core_type = #tpu.core_type<tc>} {
    %c0 = arith.constant 0 : index
    %c0_0 = arith.constant 0 : index
    %0 = vector.load %arg0[%c0, %c0_0] : memref<32x32xf32, #tpu.memory_space<vmem>>, vector<32x32xf32>
    %c0_1 = arith.constant 0 : index
    %c0_2 = arith.constant 0 : index
    %1 = vector.load %arg1[%c0_1, %c0_2] : memref<16x32xf32, #tpu.memory_space<vmem>>, vector<16x32xf32>
    %c0_3 = arith.constant 0 : index
    %c0_4 = arith.constant 0 : index
    %2 = vector.load %arg2[%c0_3, %c0_4] : memref<32x128xbf16, #tpu.memory_space<vmem>>, vector<32x128xbf16>
    %3 = arith.truncf %0 : vector<32x32xf32> to vector<32x32xbf16>
    %cst = arith.constant dense<0.000000e+00> : vector<32x128xf32>
    %4 = tpu.matmul %3, %2, %cst {dimension_numbers = #tpu.dot_dimension_numbers<[1], [0], [0], [1], [0, 0, 1, 1], [], []>} : vector<32x32xbf16>, vector<32x128xbf16>, vector<32x128xf32> -> vector<32x128xf32>
    %c0_5 = arith.constant 0 : index
    %c0_6 = arith.constant 0 : index
    %5 = vector.load %arg3[%c0_5, %c0_6] : memref<1x128xf32, #tpu.memory_space<vmem>>, vector<1x128xf32>
    %6 = vector.broadcast %5 : vector<1x128xf32> to vector<32x128xf32>
    %7 = arith.addf %4, %6 : vector<32x128xf32>
    %cst_7 = arith.constant 0.000000e+00 : f32
    %8 = vector.broadcast %cst_7 : f32 to vector<32x128xf32>
    %9 = arith.maximumf %7, %8 : vector<32x128xf32>
    %c0_8 = arith.constant 0 : index
    %c0_9 = arith.constant 0 : index
    %10 = vector.load %arg4[%c0_8, %c0_9] : memref<128x32xbf16, #tpu.memory_space<vmem>>, vector<128x32xbf16>
    %11 = arith.truncf %9 : vector<32x128xf32> to vector<32x128xbf16>
    %cst_10 = arith.constant dense<0.000000e+00> : vector<32x32xf32>
    %12 = tpu.matmul %11, %10, %cst_10 {dimension_numbers = #tpu.dot_dimension_numbers<[1], [0], [0], [1], [0, 0, 1, 1], [], []>} : vector<32x128xbf16>, vector<128x32xbf16>, vector<32x32xf32> -> vector<32x32xf32>
    %c0_11 = arith.constant 0 : index
    %c0_12 = arith.constant 0 : index
    %13 = vector.load %arg5[%c0_11, %c0_12] : memref<1x32xf32, #tpu.memory_space<vmem>>, vector<1x32xf32>
    %14 = vector.broadcast %13 : vector<1x32xf32> to vector<32x32xf32>
    %15 = arith.addf %12, %14 : vector<32x32xf32>
    %16 = arith.addf %15, %0 : vector<32x32xf32>
    %c0_13 = arith.constant 0 : index
    %c0_14 = arith.constant 0 : index
    %17 = vector.load %arg6[%c0_13, %c0_14] : memref<32x128xbf16, #tpu.memory_space<vmem>>, vector<32x128xbf16>
    %18 = arith.truncf %1 : vector<16x32xf32> to vector<16x32xbf16>
    %cst_15 = arith.constant dense<0.000000e+00> : vector<16x128xf32>
    %19 = tpu.matmul %18, %17, %cst_15 {dimension_numbers = #tpu.dot_dimension_numbers<[1], [0], [0], [1], [0, 0, 1, 1], [], []>} : vector<16x32xbf16>, vector<32x128xbf16>, vector<16x128xf32> -> vector<16x128xf32>
    %c0_16 = arith.constant 0 : index
    %c0_17 = arith.constant 0 : index
    %20 = vector.load %arg7[%c0_16, %c0_17] : memref<1x128xf32, #tpu.memory_space<vmem>>, vector<1x128xf32>
    %21 = vector.broadcast %20 : vector<1x128xf32> to vector<16x128xf32>
    %22 = arith.addf %19, %21 : vector<16x128xf32>
    %cst_18 = arith.constant 0.000000e+00 : f32
    %23 = vector.broadcast %cst_18 : f32 to vector<16x128xf32>
    %24 = arith.maximumf %22, %23 : vector<16x128xf32>
    %c0_19 = arith.constant 0 : index
    %c0_20 = arith.constant 0 : index
    %25 = vector.load %arg8[%c0_19, %c0_20] : memref<128x32xbf16, #tpu.memory_space<vmem>>, vector<128x32xbf16>
    %26 = arith.truncf %24 : vector<16x128xf32> to vector<16x128xbf16>
    %cst_21 = arith.constant dense<0.000000e+00> : vector<16x32xf32>
    %27 = tpu.matmul %26, %25, %cst_21 {dimension_numbers = #tpu.dot_dimension_numbers<[1], [0], [0], [1], [0, 0, 1, 1], [], []>} : vector<16x128xbf16>, vector<128x32xbf16>, vector<16x32xf32> -> vector<16x32xf32>
    %c0_22 = arith.constant 0 : index
    %c0_23 = arith.constant 0 : index
    %28 = vector.load %arg9[%c0_22, %c0_23] : memref<1x32xf32, #tpu.memory_space<vmem>>, vector<1x32xf32>
    %29 = vector.broadcast %28 : vector<1x32xf32> to vector<16x32xf32>
    %30 = arith.addf %27, %29 : vector<16x32xf32>
    %31 = arith.addf %30, %1 : vector<16x32xf32>
    %32 = vector.extract_strided_slice %16 {offsets = [0, 0], sizes = [16, 32], strides = [1, 1]} : vector<32x32xf32> to vector<16x32xf32>
    %cst_24 = arith.constant dense<0.000000e+00> : vector<32xf32>
    %33 = vector.multi_reduction <add>, %32, %cst_24 [0] : vector<16x32xf32> to vector<32xf32>
    %34 = vector.shape_cast %33 : vector<32xf32> to vector<1x32xf32>
    %35 = vector.extract_strided_slice %31 {offsets = [0, 0], sizes = [8, 32], strides = [1, 1]} : vector<16x32xf32> to vector<8x32xf32>
    %cst_25 = arith.constant dense<0.000000e+00> : vector<32xf32>
    %36 = vector.multi_reduction <add>, %35, %cst_25 [0] : vector<8x32xf32> to vector<32xf32>
    %37 = vector.shape_cast %36 : vector<32xf32> to vector<1x32xf32>
    %38 = arith.addf %34, %37 : vector<1x32xf32>
    %cst_26 = arith.constant 0.0416666679 : f32
    %39 = vector.broadcast %cst_26 : f32 to vector<1x32xf32>
    %40 = arith.mulf %38, %39 : vector<1x32xf32>
    %c0_27 = arith.constant 0 : index
    %c0_28 = arith.constant 0 : index
    %41 = vector.load %arg10[%c0_27, %c0_28] : memref<32x16xbf16, #tpu.memory_space<vmem>>, vector<32x16xbf16>
    %42 = arith.truncf %40 : vector<1x32xf32> to vector<1x32xbf16>
    %cst_29 = arith.constant dense<0.000000e+00> : vector<1x16xf32>
    %43 = tpu.matmul %42, %41, %cst_29 {dimension_numbers = #tpu.dot_dimension_numbers<[1], [0], [0], [1], [0, 0, 1, 1], [], []>} : vector<1x32xbf16>, vector<32x16xbf16>, vector<1x16xf32> -> vector<1x16xf32>
    %cst_30 = arith.constant 0.000000e+00 : f32
    %44 = vector.broadcast %cst_30 : f32 to vector<1x16xf32>
    %45 = arith.maximumf %43, %44 : vector<1x16xf32>
    %c0_31 = arith.constant 0 : index
    %c0_32 = arith.constant 0 : index
    %46 = vector.load %arg11[%c0_31, %c0_32] : memref<16x32xbf16, #tpu.memory_space<vmem>>, vector<16x32xbf16>
    %47 = arith.truncf %45 : vector<1x16xf32> to vector<1x16xbf16>
    %cst_33 = arith.constant dense<0.000000e+00> : vector<1x32xf32>
    %48 = tpu.matmul %47, %46, %cst_33 {dimension_numbers = #tpu.dot_dimension_numbers<[1], [0], [0], [1], [0, 0, 1, 1], [], []>} : vector<1x16xbf16>, vector<16x32xbf16>, vector<1x32xf32> -> vector<1x32xf32>
    %cst_34 = arith.constant 0.000000e+00 : f32
    %49 = vector.broadcast %cst_34 : f32 to vector<1x32xf32>
    %50 = arith.subf %49, %48 : vector<1x32xf32>
    %51 = math.exp %50 : vector<1x32xf32>
    %cst_35 = arith.constant 1.000000e+00 : f32
    %52 = vector.broadcast %cst_35 : f32 to vector<1x32xf32>
    %53 = arith.addf %52, %51 : vector<1x32xf32>
    %54 = tpu.reciprocal %53 {approx = true} : vector<1x32xf32> -> vector<1x32xf32>
    %55 = vector.extract_strided_slice %16 {offsets = [16, 0], sizes = [16, 32], strides = [1, 1]} : vector<32x32xf32> to vector<16x32xf32>
    %cst_36 = arith.constant dense<0.000000e+00> : vector<32xf32>
    %56 = vector.multi_reduction <add>, %55, %cst_36 [0] : vector<16x32xf32> to vector<32xf32>
    %57 = vector.shape_cast %56 : vector<32xf32> to vector<1x32xf32>
    %58 = vector.extract_strided_slice %31 {offsets = [8, 0], sizes = [8, 32], strides = [1, 1]} : vector<16x32xf32> to vector<8x32xf32>
    %cst_37 = arith.constant dense<0.000000e+00> : vector<32xf32>
    %59 = vector.multi_reduction <add>, %58, %cst_37 [0] : vector<8x32xf32> to vector<32xf32>
    %60 = vector.shape_cast %59 : vector<32xf32> to vector<1x32xf32>
    %61 = arith.addf %57, %60 : vector<1x32xf32>
    %cst_38 = arith.constant 0.0416666679 : f32
    %62 = vector.broadcast %cst_38 : f32 to vector<1x32xf32>
    %63 = arith.mulf %61, %62 : vector<1x32xf32>
    %c0_39 = arith.constant 0 : index
    %c0_40 = arith.constant 0 : index
    %64 = vector.load %arg10[%c0_39, %c0_40] : memref<32x16xbf16, #tpu.memory_space<vmem>>, vector<32x16xbf16>
    %65 = arith.truncf %63 : vector<1x32xf32> to vector<1x32xbf16>
    %cst_41 = arith.constant dense<0.000000e+00> : vector<1x16xf32>
    %66 = tpu.matmul %65, %64, %cst_41 {dimension_numbers = #tpu.dot_dimension_numbers<[1], [0], [0], [1], [0, 0, 1, 1], [], []>} : vector<1x32xbf16>, vector<32x16xbf16>, vector<1x16xf32> -> vector<1x16xf32>
    %cst_42 = arith.constant 0.000000e+00 : f32
    %67 = vector.broadcast %cst_42 : f32 to vector<1x16xf32>
    %68 = arith.maximumf %66, %67 : vector<1x16xf32>
    %c0_43 = arith.constant 0 : index
    %c0_44 = arith.constant 0 : index
    %69 = vector.load %arg11[%c0_43, %c0_44] : memref<16x32xbf16, #tpu.memory_space<vmem>>, vector<16x32xbf16>
    %70 = arith.truncf %68 : vector<1x16xf32> to vector<1x16xbf16>
    %cst_45 = arith.constant dense<0.000000e+00> : vector<1x32xf32>
    %71 = tpu.matmul %70, %69, %cst_45 {dimension_numbers = #tpu.dot_dimension_numbers<[1], [0], [0], [1], [0, 0, 1, 1], [], []>} : vector<1x16xbf16>, vector<16x32xbf16>, vector<1x32xf32> -> vector<1x32xf32>
    %cst_46 = arith.constant 0.000000e+00 : f32
    %72 = vector.broadcast %cst_46 : f32 to vector<1x32xf32>
    %73 = arith.subf %72, %71 : vector<1x32xf32>
    %74 = math.exp %73 : vector<1x32xf32>
    %cst_47 = arith.constant 1.000000e+00 : f32
    %75 = vector.broadcast %cst_47 : f32 to vector<1x32xf32>
    %76 = arith.addf %75, %74 : vector<1x32xf32>
    %77 = tpu.reciprocal %76 {approx = true} : vector<1x32xf32> -> vector<1x32xf32>
    %78 = vector.extract_strided_slice %16 {offsets = [0, 0], sizes = [16, 32], strides = [1, 1]} : vector<32x32xf32> to vector<16x32xf32>
    %79 = vector.broadcast %54 : vector<1x32xf32> to vector<16x32xf32>
    %80 = arith.mulf %78, %79 : vector<16x32xf32>
    %81 = vector.extract_strided_slice %31 {offsets = [0, 0], sizes = [8, 32], strides = [1, 1]} : vector<16x32xf32> to vector<8x32xf32>
    %82 = vector.broadcast %54 : vector<1x32xf32> to vector<8x32xf32>
    %83 = arith.mulf %81, %82 : vector<8x32xf32>
    %84 = vector.extract_strided_slice %16 {offsets = [16, 0], sizes = [16, 32], strides = [1, 1]} : vector<32x32xf32> to vector<16x32xf32>
    %85 = vector.broadcast %77 : vector<1x32xf32> to vector<16x32xf32>
    %86 = arith.mulf %84, %85 : vector<16x32xf32>
    %87 = vector.extract_strided_slice %31 {offsets = [8, 0], sizes = [8, 32], strides = [1, 1]} : vector<16x32xf32> to vector<8x32xf32>
    %88 = vector.broadcast %77 : vector<1x32xf32> to vector<8x32xf32>
    %89 = arith.mulf %87, %88 : vector<8x32xf32>
    %90 = tpu.concatenate %80, %83, %86, %89 in 0 : vector<16x32xf32>, vector<8x32xf32>, vector<16x32xf32>, vector<8x32xf32> -> vector<48x32xf32>
    %c0_48 = arith.constant 0 : index
    %c0_49 = arith.constant 0 : index
    %91 = vector.load %arg12[%c0_48, %c0_49] : memref<32x96xbf16, #tpu.memory_space<vmem>>, vector<32x96xbf16>
    %92 = arith.truncf %90 : vector<48x32xf32> to vector<48x32xbf16>
    %cst_50 = arith.constant dense<0.000000e+00> : vector<48x96xf32>
    %93 = tpu.matmul %92, %91, %cst_50 {dimension_numbers = #tpu.dot_dimension_numbers<[1], [0], [0], [1], [0, 0, 1, 1], [], []>} : vector<48x32xbf16>, vector<32x96xbf16>, vector<48x96xf32> -> vector<48x96xf32>
    %c0_51 = arith.constant 0 : index
    %c0_52 = arith.constant 0 : index
    %94 = vector.load %arg13[%c0_51, %c0_52] : memref<1x96xf32, #tpu.memory_space<vmem>>, vector<1x96xf32>
    %95 = vector.broadcast %94 : vector<1x96xf32> to vector<48x96xf32>
    %96 = arith.addf %93, %95 : vector<48x96xf32>
    %cst_53 = arith.constant 0.000000e+00 : f32
    %97 = vector.broadcast %cst_53 : f32 to vector<24x32xf32>
    %98 = vector.extract_strided_slice %96 {offsets = [0, 0], sizes = [24, 8], strides = [1, 1]} : vector<48x96xf32> to vector<24x8xf32>
    %99 = vector.extract_strided_slice %96 {offsets = [0, 32], sizes = [24, 8], strides = [1, 1]} : vector<48x96xf32> to vector<24x8xf32>
    %100 = vector.extract_strided_slice %96 {offsets = [0, 64], sizes = [24, 8], strides = [1, 1]} : vector<48x96xf32> to vector<24x8xf32>
    %101 = arith.truncf %98 : vector<24x8xf32> to vector<24x8xbf16>
    %102 = arith.truncf %99 : vector<24x8xf32> to vector<24x8xbf16>
    %cst_54 = arith.constant dense<0.000000e+00> : vector<24x24xf32>
    %103 = tpu.matmul %101, %102, %cst_54 {dimension_numbers = #tpu.dot_dimension_numbers<[1], [1], [0], [0], [0, 0, 1, 0], [], []>} : vector<24x8xbf16>, vector<24x8xbf16>, vector<24x24xf32> -> vector<24x24xf32>
    %cst_55 = arith.constant 0.353553385 : f32
    %104 = vector.broadcast %cst_55 : f32 to vector<24x24xf32>
    %105 = arith.mulf %103, %104 : vector<24x24xf32>
    %cst_56 = arith.constant dense<0xFF800000> : vector<24xf32>
    %106 = vector.multi_reduction <maximumf>, %105, %cst_56 [1] : vector<24x24xf32> to vector<24xf32>
    %107 = vector.shape_cast %106 : vector<24xf32> to vector<24x1xf32>
    %108 = vector.broadcast %107 : vector<24x1xf32> to vector<24x24xf32>
    %109 = arith.subf %105, %108 : vector<24x24xf32>
    %110 = math.exp %109 : vector<24x24xf32>
    %cst_57 = arith.constant dense<0.000000e+00> : vector<24xf32>
    %111 = vector.multi_reduction <add>, %110, %cst_57 [1] : vector<24x24xf32> to vector<24xf32>
    %112 = vector.shape_cast %111 : vector<24xf32> to vector<24x1xf32>
    %113 = tpu.reciprocal %112 {approx = true} : vector<24x1xf32> -> vector<24x1xf32>
    %114 = vector.broadcast %113 : vector<24x1xf32> to vector<24x24xf32>
    %115 = arith.mulf %110, %114 : vector<24x24xf32>
    %116 = arith.truncf %115 : vector<24x24xf32> to vector<24x24xbf16>
    %117 = arith.truncf %100 : vector<24x8xf32> to vector<24x8xbf16>
    %cst_58 = arith.constant dense<0.000000e+00> : vector<24x8xf32>
    %118 = tpu.matmul %116, %117, %cst_58 {dimension_numbers = #tpu.dot_dimension_numbers<[1], [0], [0], [1], [0, 0, 1, 1], [], []>} : vector<24x24xbf16>, vector<24x8xbf16>, vector<24x8xf32> -> vector<24x8xf32>
    %c0_59 = arith.constant 0 : index
    %c0_60 = arith.constant 0 : index
    %c0_61 = arith.constant 0 : index
    %119 = vector.load %arg14[%c0_59, %c0_60, %c0_61] : memref<4x8x32xbf16, #tpu.memory_space<vmem>>, vector<1x8x32xbf16>
    %120 = vector.shape_cast %119 : vector<1x8x32xbf16> to vector<8x32xbf16>
    %121 = arith.truncf %118 : vector<24x8xf32> to vector<24x8xbf16>
    %cst_62 = arith.constant dense<0.000000e+00> : vector<24x32xf32>
    %122 = tpu.matmul %121, %120, %cst_62 {dimension_numbers = #tpu.dot_dimension_numbers<[1], [0], [0], [1], [0, 0, 1, 1], [], []>} : vector<24x8xbf16>, vector<8x32xbf16>, vector<24x32xf32> -> vector<24x32xf32>
    %123 = arith.addf %97, %122 : vector<24x32xf32>
    %124 = vector.extract_strided_slice %96 {offsets = [0, 8], sizes = [24, 8], strides = [1, 1]} : vector<48x96xf32> to vector<24x8xf32>
    %125 = vector.extract_strided_slice %96 {offsets = [0, 40], sizes = [24, 8], strides = [1, 1]} : vector<48x96xf32> to vector<24x8xf32>
    %126 = vector.extract_strided_slice %96 {offsets = [0, 72], sizes = [24, 8], strides = [1, 1]} : vector<48x96xf32> to vector<24x8xf32>
    %127 = arith.truncf %124 : vector<24x8xf32> to vector<24x8xbf16>
    %128 = arith.truncf %125 : vector<24x8xf32> to vector<24x8xbf16>
    %cst_63 = arith.constant dense<0.000000e+00> : vector<24x24xf32>
    %129 = tpu.matmul %127, %128, %cst_63 {dimension_numbers = #tpu.dot_dimension_numbers<[1], [1], [0], [0], [0, 0, 1, 0], [], []>} : vector<24x8xbf16>, vector<24x8xbf16>, vector<24x24xf32> -> vector<24x24xf32>
    %cst_64 = arith.constant 0.353553385 : f32
    %130 = vector.broadcast %cst_64 : f32 to vector<24x24xf32>
    %131 = arith.mulf %129, %130 : vector<24x24xf32>
    %cst_65 = arith.constant dense<0xFF800000> : vector<24xf32>
    %132 = vector.multi_reduction <maximumf>, %131, %cst_65 [1] : vector<24x24xf32> to vector<24xf32>
    %133 = vector.shape_cast %132 : vector<24xf32> to vector<24x1xf32>
    %134 = vector.broadcast %133 : vector<24x1xf32> to vector<24x24xf32>
    %135 = arith.subf %131, %134 : vector<24x24xf32>
    %136 = math.exp %135 : vector<24x24xf32>
    %cst_66 = arith.constant dense<0.000000e+00> : vector<24xf32>
    %137 = vector.multi_reduction <add>, %136, %cst_66 [1] : vector<24x24xf32> to vector<24xf32>
    %138 = vector.shape_cast %137 : vector<24xf32> to vector<24x1xf32>
    %139 = tpu.reciprocal %138 {approx = true} : vector<24x1xf32> -> vector<24x1xf32>
    %140 = vector.broadcast %139 : vector<24x1xf32> to vector<24x24xf32>
    %141 = arith.mulf %136, %140 : vector<24x24xf32>
    %142 = arith.truncf %141 : vector<24x24xf32> to vector<24x24xbf16>
    %143 = arith.truncf %126 : vector<24x8xf32> to vector<24x8xbf16>
    %cst_67 = arith.constant dense<0.000000e+00> : vector<24x8xf32>
    %144 = tpu.matmul %142, %143, %cst_67 {dimension_numbers = #tpu.dot_dimension_numbers<[1], [0], [0], [1], [0, 0, 1, 1], [], []>} : vector<24x24xbf16>, vector<24x8xbf16>, vector<24x8xf32> -> vector<24x8xf32>
    %c1 = arith.constant 1 : index
    %c0_68 = arith.constant 0 : index
    %c0_69 = arith.constant 0 : index
    %145 = vector.load %arg14[%c1, %c0_68, %c0_69] : memref<4x8x32xbf16, #tpu.memory_space<vmem>>, vector<1x8x32xbf16>
    %146 = vector.shape_cast %145 : vector<1x8x32xbf16> to vector<8x32xbf16>
    %147 = arith.truncf %144 : vector<24x8xf32> to vector<24x8xbf16>
    %cst_70 = arith.constant dense<0.000000e+00> : vector<24x32xf32>
    %148 = tpu.matmul %147, %146, %cst_70 {dimension_numbers = #tpu.dot_dimension_numbers<[1], [0], [0], [1], [0, 0, 1, 1], [], []>} : vector<24x8xbf16>, vector<8x32xbf16>, vector<24x32xf32> -> vector<24x32xf32>
    %149 = arith.addf %123, %148 : vector<24x32xf32>
    %150 = vector.extract_strided_slice %96 {offsets = [0, 16], sizes = [24, 8], strides = [1, 1]} : vector<48x96xf32> to vector<24x8xf32>
    %151 = vector.extract_strided_slice %96 {offsets = [0, 48], sizes = [24, 8], strides = [1, 1]} : vector<48x96xf32> to vector<24x8xf32>
    %152 = vector.extract_strided_slice %96 {offsets = [0, 80], sizes = [24, 8], strides = [1, 1]} : vector<48x96xf32> to vector<24x8xf32>
    %153 = arith.truncf %150 : vector<24x8xf32> to vector<24x8xbf16>
    %154 = arith.truncf %151 : vector<24x8xf32> to vector<24x8xbf16>
    %cst_71 = arith.constant dense<0.000000e+00> : vector<24x24xf32>
    %155 = tpu.matmul %153, %154, %cst_71 {dimension_numbers = #tpu.dot_dimension_numbers<[1], [1], [0], [0], [0, 0, 1, 0], [], []>} : vector<24x8xbf16>, vector<24x8xbf16>, vector<24x24xf32> -> vector<24x24xf32>
    %cst_72 = arith.constant 0.353553385 : f32
    %156 = vector.broadcast %cst_72 : f32 to vector<24x24xf32>
    %157 = arith.mulf %155, %156 : vector<24x24xf32>
    %cst_73 = arith.constant dense<0xFF800000> : vector<24xf32>
    %158 = vector.multi_reduction <maximumf>, %157, %cst_73 [1] : vector<24x24xf32> to vector<24xf32>
    %159 = vector.shape_cast %158 : vector<24xf32> to vector<24x1xf32>
    %160 = vector.broadcast %159 : vector<24x1xf32> to vector<24x24xf32>
    %161 = arith.subf %157, %160 : vector<24x24xf32>
    %162 = math.exp %161 : vector<24x24xf32>
    %cst_74 = arith.constant dense<0.000000e+00> : vector<24xf32>
    %163 = vector.multi_reduction <add>, %162, %cst_74 [1] : vector<24x24xf32> to vector<24xf32>
    %164 = vector.shape_cast %163 : vector<24xf32> to vector<24x1xf32>
    %165 = tpu.reciprocal %164 {approx = true} : vector<24x1xf32> -> vector<24x1xf32>
    %166 = vector.broadcast %165 : vector<24x1xf32> to vector<24x24xf32>
    %167 = arith.mulf %162, %166 : vector<24x24xf32>
    %168 = arith.truncf %167 : vector<24x24xf32> to vector<24x24xbf16>
    %169 = arith.truncf %152 : vector<24x8xf32> to vector<24x8xbf16>
    %cst_75 = arith.constant dense<0.000000e+00> : vector<24x8xf32>
    %170 = tpu.matmul %168, %169, %cst_75 {dimension_numbers = #tpu.dot_dimension_numbers<[1], [0], [0], [1], [0, 0, 1, 1], [], []>} : vector<24x24xbf16>, vector<24x8xbf16>, vector<24x8xf32> -> vector<24x8xf32>
    %c2 = arith.constant 2 : index
    %c0_76 = arith.constant 0 : index
    %c0_77 = arith.constant 0 : index
    %171 = vector.load %arg14[%c2, %c0_76, %c0_77] : memref<4x8x32xbf16, #tpu.memory_space<vmem>>, vector<1x8x32xbf16>
    %172 = vector.shape_cast %171 : vector<1x8x32xbf16> to vector<8x32xbf16>
    %173 = arith.truncf %170 : vector<24x8xf32> to vector<24x8xbf16>
    %cst_78 = arith.constant dense<0.000000e+00> : vector<24x32xf32>
    %174 = tpu.matmul %173, %172, %cst_78 {dimension_numbers = #tpu.dot_dimension_numbers<[1], [0], [0], [1], [0, 0, 1, 1], [], []>} : vector<24x8xbf16>, vector<8x32xbf16>, vector<24x32xf32> -> vector<24x32xf32>
    %175 = arith.addf %149, %174 : vector<24x32xf32>
    %176 = vector.extract_strided_slice %96 {offsets = [0, 24], sizes = [24, 8], strides = [1, 1]} : vector<48x96xf32> to vector<24x8xf32>
    %177 = vector.extract_strided_slice %96 {offsets = [0, 56], sizes = [24, 8], strides = [1, 1]} : vector<48x96xf32> to vector<24x8xf32>
    %178 = vector.extract_strided_slice %96 {offsets = [0, 88], sizes = [24, 8], strides = [1, 1]} : vector<48x96xf32> to vector<24x8xf32>
    %179 = arith.truncf %176 : vector<24x8xf32> to vector<24x8xbf16>
    %180 = arith.truncf %177 : vector<24x8xf32> to vector<24x8xbf16>
    %cst_79 = arith.constant dense<0.000000e+00> : vector<24x24xf32>
    %181 = tpu.matmul %179, %180, %cst_79 {dimension_numbers = #tpu.dot_dimension_numbers<[1], [1], [0], [0], [0, 0, 1, 0], [], []>} : vector<24x8xbf16>, vector<24x8xbf16>, vector<24x24xf32> -> vector<24x24xf32>
    %cst_80 = arith.constant 0.353553385 : f32
    %182 = vector.broadcast %cst_80 : f32 to vector<24x24xf32>
    %183 = arith.mulf %181, %182 : vector<24x24xf32>
    %cst_81 = arith.constant dense<0xFF800000> : vector<24xf32>
    %184 = vector.multi_reduction <maximumf>, %183, %cst_81 [1] : vector<24x24xf32> to vector<24xf32>
    %185 = vector.shape_cast %184 : vector<24xf32> to vector<24x1xf32>
    %186 = vector.broadcast %185 : vector<24x1xf32> to vector<24x24xf32>
    %187 = arith.subf %183, %186 : vector<24x24xf32>
    %188 = math.exp %187 : vector<24x24xf32>
    %cst_82 = arith.constant dense<0.000000e+00> : vector<24xf32>
    %189 = vector.multi_reduction <add>, %188, %cst_82 [1] : vector<24x24xf32> to vector<24xf32>
    %190 = vector.shape_cast %189 : vector<24xf32> to vector<24x1xf32>
    %191 = tpu.reciprocal %190 {approx = true} : vector<24x1xf32> -> vector<24x1xf32>
    %192 = vector.broadcast %191 : vector<24x1xf32> to vector<24x24xf32>
    %193 = arith.mulf %188, %192 : vector<24x24xf32>
    %194 = arith.truncf %193 : vector<24x24xf32> to vector<24x24xbf16>
    %195 = arith.truncf %178 : vector<24x8xf32> to vector<24x8xbf16>
    %cst_83 = arith.constant dense<0.000000e+00> : vector<24x8xf32>
    %196 = tpu.matmul %194, %195, %cst_83 {dimension_numbers = #tpu.dot_dimension_numbers<[1], [0], [0], [1], [0, 0, 1, 1], [], []>} : vector<24x24xbf16>, vector<24x8xbf16>, vector<24x8xf32> -> vector<24x8xf32>
    %c3 = arith.constant 3 : index
    %c0_84 = arith.constant 0 : index
    %c0_85 = arith.constant 0 : index
    %197 = vector.load %arg14[%c3, %c0_84, %c0_85] : memref<4x8x32xbf16, #tpu.memory_space<vmem>>, vector<1x8x32xbf16>
    %198 = vector.shape_cast %197 : vector<1x8x32xbf16> to vector<8x32xbf16>
    %199 = arith.truncf %196 : vector<24x8xf32> to vector<24x8xbf16>
    %cst_86 = arith.constant dense<0.000000e+00> : vector<24x32xf32>
    %200 = tpu.matmul %199, %198, %cst_86 {dimension_numbers = #tpu.dot_dimension_numbers<[1], [0], [0], [1], [0, 0, 1, 1], [], []>} : vector<24x8xbf16>, vector<8x32xbf16>, vector<24x32xf32> -> vector<24x32xf32>
    %201 = arith.addf %175, %200 : vector<24x32xf32>
    %c0_87 = arith.constant 0 : index
    %c0_88 = arith.constant 0 : index
    %202 = vector.load %arg15[%c0_87, %c0_88] : memref<1x32xf32, #tpu.memory_space<vmem>>, vector<1x32xf32>
    %203 = vector.broadcast %202 : vector<1x32xf32> to vector<24x32xf32>
    %204 = arith.addf %201, %203 : vector<24x32xf32>
    %cst_89 = arith.constant 0.000000e+00 : f32
    %205 = vector.broadcast %cst_89 : f32 to vector<24x32xf32>
    %206 = vector.extract_strided_slice %96 {offsets = [24, 0], sizes = [24, 8], strides = [1, 1]} : vector<48x96xf32> to vector<24x8xf32>
    %207 = vector.extract_strided_slice %96 {offsets = [24, 32], sizes = [24, 8], strides = [1, 1]} : vector<48x96xf32> to vector<24x8xf32>
    %208 = vector.extract_strided_slice %96 {offsets = [24, 64], sizes = [24, 8], strides = [1, 1]} : vector<48x96xf32> to vector<24x8xf32>
    %209 = arith.truncf %206 : vector<24x8xf32> to vector<24x8xbf16>
    %210 = arith.truncf %207 : vector<24x8xf32> to vector<24x8xbf16>
    %cst_90 = arith.constant dense<0.000000e+00> : vector<24x24xf32>
    %211 = tpu.matmul %209, %210, %cst_90 {dimension_numbers = #tpu.dot_dimension_numbers<[1], [1], [0], [0], [0, 0, 1, 0], [], []>} : vector<24x8xbf16>, vector<24x8xbf16>, vector<24x24xf32> -> vector<24x24xf32>
    %cst_91 = arith.constant 0.353553385 : f32
    %212 = vector.broadcast %cst_91 : f32 to vector<24x24xf32>
    %213 = arith.mulf %211, %212 : vector<24x24xf32>
    %cst_92 = arith.constant dense<0xFF800000> : vector<24xf32>
    %214 = vector.multi_reduction <maximumf>, %213, %cst_92 [1] : vector<24x24xf32> to vector<24xf32>
    %215 = vector.shape_cast %214 : vector<24xf32> to vector<24x1xf32>
    %216 = vector.broadcast %215 : vector<24x1xf32> to vector<24x24xf32>
    %217 = arith.subf %213, %216 : vector<24x24xf32>
    %218 = math.exp %217 : vector<24x24xf32>
    %cst_93 = arith.constant dense<0.000000e+00> : vector<24xf32>
    %219 = vector.multi_reduction <add>, %218, %cst_93 [1] : vector<24x24xf32> to vector<24xf32>
    %220 = vector.shape_cast %219 : vector<24xf32> to vector<24x1xf32>
    %221 = tpu.reciprocal %220 {approx = true} : vector<24x1xf32> -> vector<24x1xf32>
    %222 = vector.broadcast %221 : vector<24x1xf32> to vector<24x24xf32>
    %223 = arith.mulf %218, %222 : vector<24x24xf32>
    %224 = arith.truncf %223 : vector<24x24xf32> to vector<24x24xbf16>
    %225 = arith.truncf %208 : vector<24x8xf32> to vector<24x8xbf16>
    %cst_94 = arith.constant dense<0.000000e+00> : vector<24x8xf32>
    %226 = tpu.matmul %224, %225, %cst_94 {dimension_numbers = #tpu.dot_dimension_numbers<[1], [0], [0], [1], [0, 0, 1, 1], [], []>} : vector<24x24xbf16>, vector<24x8xbf16>, vector<24x8xf32> -> vector<24x8xf32>
    %c0_95 = arith.constant 0 : index
    %c0_96 = arith.constant 0 : index
    %c0_97 = arith.constant 0 : index
    %227 = vector.load %arg14[%c0_95, %c0_96, %c0_97] : memref<4x8x32xbf16, #tpu.memory_space<vmem>>, vector<1x8x32xbf16>
    %228 = vector.shape_cast %227 : vector<1x8x32xbf16> to vector<8x32xbf16>
    %229 = arith.truncf %226 : vector<24x8xf32> to vector<24x8xbf16>
    %cst_98 = arith.constant dense<0.000000e+00> : vector<24x32xf32>
    %230 = tpu.matmul %229, %228, %cst_98 {dimension_numbers = #tpu.dot_dimension_numbers<[1], [0], [0], [1], [0, 0, 1, 1], [], []>} : vector<24x8xbf16>, vector<8x32xbf16>, vector<24x32xf32> -> vector<24x32xf32>
    %231 = arith.addf %205, %230 : vector<24x32xf32>
    %232 = vector.extract_strided_slice %96 {offsets = [24, 8], sizes = [24, 8], strides = [1, 1]} : vector<48x96xf32> to vector<24x8xf32>
    %233 = vector.extract_strided_slice %96 {offsets = [24, 40], sizes = [24, 8], strides = [1, 1]} : vector<48x96xf32> to vector<24x8xf32>
    %234 = vector.extract_strided_slice %96 {offsets = [24, 72], sizes = [24, 8], strides = [1, 1]} : vector<48x96xf32> to vector<24x8xf32>
    %235 = arith.truncf %232 : vector<24x8xf32> to vector<24x8xbf16>
    %236 = arith.truncf %233 : vector<24x8xf32> to vector<24x8xbf16>
    %cst_99 = arith.constant dense<0.000000e+00> : vector<24x24xf32>
    %237 = tpu.matmul %235, %236, %cst_99 {dimension_numbers = #tpu.dot_dimension_numbers<[1], [1], [0], [0], [0, 0, 1, 0], [], []>} : vector<24x8xbf16>, vector<24x8xbf16>, vector<24x24xf32> -> vector<24x24xf32>
    %cst_100 = arith.constant 0.353553385 : f32
    %238 = vector.broadcast %cst_100 : f32 to vector<24x24xf32>
    %239 = arith.mulf %237, %238 : vector<24x24xf32>
    %cst_101 = arith.constant dense<0xFF800000> : vector<24xf32>
    %240 = vector.multi_reduction <maximumf>, %239, %cst_101 [1] : vector<24x24xf32> to vector<24xf32>
    %241 = vector.shape_cast %240 : vector<24xf32> to vector<24x1xf32>
    %242 = vector.broadcast %241 : vector<24x1xf32> to vector<24x24xf32>
    %243 = arith.subf %239, %242 : vector<24x24xf32>
    %244 = math.exp %243 : vector<24x24xf32>
    %cst_102 = arith.constant dense<0.000000e+00> : vector<24xf32>
    %245 = vector.multi_reduction <add>, %244, %cst_102 [1] : vector<24x24xf32> to vector<24xf32>
    %246 = vector.shape_cast %245 : vector<24xf32> to vector<24x1xf32>
    %247 = tpu.reciprocal %246 {approx = true} : vector<24x1xf32> -> vector<24x1xf32>
    %248 = vector.broadcast %247 : vector<24x1xf32> to vector<24x24xf32>
    %249 = arith.mulf %244, %248 : vector<24x24xf32>
    %250 = arith.truncf %249 : vector<24x24xf32> to vector<24x24xbf16>
    %251 = arith.truncf %234 : vector<24x8xf32> to vector<24x8xbf16>
    %cst_103 = arith.constant dense<0.000000e+00> : vector<24x8xf32>
    %252 = tpu.matmul %250, %251, %cst_103 {dimension_numbers = #tpu.dot_dimension_numbers<[1], [0], [0], [1], [0, 0, 1, 1], [], []>} : vector<24x24xbf16>, vector<24x8xbf16>, vector<24x8xf32> -> vector<24x8xf32>
    %c1_104 = arith.constant 1 : index
    %c0_105 = arith.constant 0 : index
    %c0_106 = arith.constant 0 : index
    %253 = vector.load %arg14[%c1_104, %c0_105, %c0_106] : memref<4x8x32xbf16, #tpu.memory_space<vmem>>, vector<1x8x32xbf16>
    %254 = vector.shape_cast %253 : vector<1x8x32xbf16> to vector<8x32xbf16>
    %255 = arith.truncf %252 : vector<24x8xf32> to vector<24x8xbf16>
    %cst_107 = arith.constant dense<0.000000e+00> : vector<24x32xf32>
    %256 = tpu.matmul %255, %254, %cst_107 {dimension_numbers = #tpu.dot_dimension_numbers<[1], [0], [0], [1], [0, 0, 1, 1], [], []>} : vector<24x8xbf16>, vector<8x32xbf16>, vector<24x32xf32> -> vector<24x32xf32>
    %257 = arith.addf %231, %256 : vector<24x32xf32>
    %258 = vector.extract_strided_slice %96 {offsets = [24, 16], sizes = [24, 8], strides = [1, 1]} : vector<48x96xf32> to vector<24x8xf32>
    %259 = vector.extract_strided_slice %96 {offsets = [24, 48], sizes = [24, 8], strides = [1, 1]} : vector<48x96xf32> to vector<24x8xf32>
    %260 = vector.extract_strided_slice %96 {offsets = [24, 80], sizes = [24, 8], strides = [1, 1]} : vector<48x96xf32> to vector<24x8xf32>
    %261 = arith.truncf %258 : vector<24x8xf32> to vector<24x8xbf16>
    %262 = arith.truncf %259 : vector<24x8xf32> to vector<24x8xbf16>
    %cst_108 = arith.constant dense<0.000000e+00> : vector<24x24xf32>
    %263 = tpu.matmul %261, %262, %cst_108 {dimension_numbers = #tpu.dot_dimension_numbers<[1], [1], [0], [0], [0, 0, 1, 0], [], []>} : vector<24x8xbf16>, vector<24x8xbf16>, vector<24x24xf32> -> vector<24x24xf32>
    %cst_109 = arith.constant 0.353553385 : f32
    %264 = vector.broadcast %cst_109 : f32 to vector<24x24xf32>
    %265 = arith.mulf %263, %264 : vector<24x24xf32>
    %cst_110 = arith.constant dense<0xFF800000> : vector<24xf32>
    %266 = vector.multi_reduction <maximumf>, %265, %cst_110 [1] : vector<24x24xf32> to vector<24xf32>
    %267 = vector.shape_cast %266 : vector<24xf32> to vector<24x1xf32>
    %268 = vector.broadcast %267 : vector<24x1xf32> to vector<24x24xf32>
    %269 = arith.subf %265, %268 : vector<24x24xf32>
    %270 = math.exp %269 : vector<24x24xf32>
    %cst_111 = arith.constant dense<0.000000e+00> : vector<24xf32>
    %271 = vector.multi_reduction <add>, %270, %cst_111 [1] : vector<24x24xf32> to vector<24xf32>
    %272 = vector.shape_cast %271 : vector<24xf32> to vector<24x1xf32>
    %273 = tpu.reciprocal %272 {approx = true} : vector<24x1xf32> -> vector<24x1xf32>
    %274 = vector.broadcast %273 : vector<24x1xf32> to vector<24x24xf32>
    %275 = arith.mulf %270, %274 : vector<24x24xf32>
    %276 = arith.truncf %275 : vector<24x24xf32> to vector<24x24xbf16>
    %277 = arith.truncf %260 : vector<24x8xf32> to vector<24x8xbf16>
    %cst_112 = arith.constant dense<0.000000e+00> : vector<24x8xf32>
    %278 = tpu.matmul %276, %277, %cst_112 {dimension_numbers = #tpu.dot_dimension_numbers<[1], [0], [0], [1], [0, 0, 1, 1], [], []>} : vector<24x24xbf16>, vector<24x8xbf16>, vector<24x8xf32> -> vector<24x8xf32>
    %c2_113 = arith.constant 2 : index
    %c0_114 = arith.constant 0 : index
    %c0_115 = arith.constant 0 : index
    %279 = vector.load %arg14[%c2_113, %c0_114, %c0_115] : memref<4x8x32xbf16, #tpu.memory_space<vmem>>, vector<1x8x32xbf16>
    %280 = vector.shape_cast %279 : vector<1x8x32xbf16> to vector<8x32xbf16>
    %281 = arith.truncf %278 : vector<24x8xf32> to vector<24x8xbf16>
    %cst_116 = arith.constant dense<0.000000e+00> : vector<24x32xf32>
    %282 = tpu.matmul %281, %280, %cst_116 {dimension_numbers = #tpu.dot_dimension_numbers<[1], [0], [0], [1], [0, 0, 1, 1], [], []>} : vector<24x8xbf16>, vector<8x32xbf16>, vector<24x32xf32> -> vector<24x32xf32>
    %283 = arith.addf %257, %282 : vector<24x32xf32>
    %284 = vector.extract_strided_slice %96 {offsets = [24, 24], sizes = [24, 8], strides = [1, 1]} : vector<48x96xf32> to vector<24x8xf32>
    %285 = vector.extract_strided_slice %96 {offsets = [24, 56], sizes = [24, 8], strides = [1, 1]} : vector<48x96xf32> to vector<24x8xf32>
    %286 = vector.extract_strided_slice %96 {offsets = [24, 88], sizes = [24, 8], strides = [1, 1]} : vector<48x96xf32> to vector<24x8xf32>
    %287 = arith.truncf %284 : vector<24x8xf32> to vector<24x8xbf16>
    %288 = arith.truncf %285 : vector<24x8xf32> to vector<24x8xbf16>
    %cst_117 = arith.constant dense<0.000000e+00> : vector<24x24xf32>
    %289 = tpu.matmul %287, %288, %cst_117 {dimension_numbers = #tpu.dot_dimension_numbers<[1], [1], [0], [0], [0, 0, 1, 0], [], []>} : vector<24x8xbf16>, vector<24x8xbf16>, vector<24x24xf32> -> vector<24x24xf32>
    %cst_118 = arith.constant 0.353553385 : f32
    %290 = vector.broadcast %cst_118 : f32 to vector<24x24xf32>
    %291 = arith.mulf %289, %290 : vector<24x24xf32>
    %cst_119 = arith.constant dense<0xFF800000> : vector<24xf32>
    %292 = vector.multi_reduction <maximumf>, %291, %cst_119 [1] : vector<24x24xf32> to vector<24xf32>
    %293 = vector.shape_cast %292 : vector<24xf32> to vector<24x1xf32>
    %294 = vector.broadcast %293 : vector<24x1xf32> to vector<24x24xf32>
    %295 = arith.subf %291, %294 : vector<24x24xf32>
    %296 = math.exp %295 : vector<24x24xf32>
    %cst_120 = arith.constant dense<0.000000e+00> : vector<24xf32>
    %297 = vector.multi_reduction <add>, %296, %cst_120 [1] : vector<24x24xf32> to vector<24xf32>
    %298 = vector.shape_cast %297 : vector<24xf32> to vector<24x1xf32>
    %299 = tpu.reciprocal %298 {approx = true} : vector<24x1xf32> -> vector<24x1xf32>
    %300 = vector.broadcast %299 : vector<24x1xf32> to vector<24x24xf32>
    %301 = arith.mulf %296, %300 : vector<24x24xf32>
    %302 = arith.truncf %301 : vector<24x24xf32> to vector<24x24xbf16>
    %303 = arith.truncf %286 : vector<24x8xf32> to vector<24x8xbf16>
    %cst_121 = arith.constant dense<0.000000e+00> : vector<24x8xf32>
    %304 = tpu.matmul %302, %303, %cst_121 {dimension_numbers = #tpu.dot_dimension_numbers<[1], [0], [0], [1], [0, 0, 1, 1], [], []>} : vector<24x24xbf16>, vector<24x8xbf16>, vector<24x8xf32> -> vector<24x8xf32>
    %c3_122 = arith.constant 3 : index
    %c0_123 = arith.constant 0 : index
    %c0_124 = arith.constant 0 : index
    %305 = vector.load %arg14[%c3_122, %c0_123, %c0_124] : memref<4x8x32xbf16, #tpu.memory_space<vmem>>, vector<1x8x32xbf16>
    %306 = vector.shape_cast %305 : vector<1x8x32xbf16> to vector<8x32xbf16>
    %307 = arith.truncf %304 : vector<24x8xf32> to vector<24x8xbf16>
    %cst_125 = arith.constant dense<0.000000e+00> : vector<24x32xf32>
    %308 = tpu.matmul %307, %306, %cst_125 {dimension_numbers = #tpu.dot_dimension_numbers<[1], [0], [0], [1], [0, 0, 1, 1], [], []>} : vector<24x8xbf16>, vector<8x32xbf16>, vector<24x32xf32> -> vector<24x32xf32>
    %309 = arith.addf %283, %308 : vector<24x32xf32>
    %c0_126 = arith.constant 0 : index
    %c0_127 = arith.constant 0 : index
    %310 = vector.load %arg15[%c0_126, %c0_127] : memref<1x32xf32, #tpu.memory_space<vmem>>, vector<1x32xf32>
    %311 = vector.broadcast %310 : vector<1x32xf32> to vector<24x32xf32>
    %312 = arith.addf %309, %311 : vector<24x32xf32>
    %313 = tpu.concatenate %204, %312 in 0 : vector<24x32xf32>, vector<24x32xf32> -> vector<48x32xf32>
    %c0_128 = arith.constant 0 : index
    %c0_129 = arith.constant 0 : index
    %314 = vector.load %arg16[%c0_128, %c0_129] : memref<48x32xf32, #tpu.memory_space<vmem>>, vector<48x32xf32>
    tpu.vector_store %arg16[%c0_128, %c0_129], %313 {strides = array<i32>} : memref<48x32xf32, #tpu.memory_space<vmem>>, vector<48x32xf32>,
    return
  }
}

</mosaic_0001>

<llo_original>
// kernel: transgnn_block_forward.1
$region0: #{transgnn_block_forward.1}
  #allocation0 [shape = 'u32[]', space=smem, size = 0x4, offset = 0x4, fixed_abs, tag = 'smem constant byte address 0x4 - core index']
  #allocation1 [shape = 'u32[144,128]{1,0:T(1,128)}', space=vmem, size = 0x12000, scoped, tag = 'internal scratch']
  %s0 = inlined_call_operand.vmem [shape: f32[32,32], index: 0, kind: input, shape index: {}]
  %s1 = inlined_call_operand.vmem [shape: f32[16,32], index: 1, kind: input, shape index: {}]
  %s2 = inlined_call_operand.vmem [shape: bf16[32,128], index: 2, kind: input, shape index: {}]
  %s3 = inlined_call_operand.vmem [shape: f32[1,128], index: 3, kind: input, shape index: {}]
  %s4 = inlined_call_operand.vmem [shape: bf16[128,32], index: 4, kind: input, shape index: {}]
  %s5 = inlined_call_operand.vmem [shape: f32[1,32], index: 5, kind: input, shape index: {}]
  %s6 = inlined_call_operand.vmem [shape: bf16[32,128], index: 6, kind: input, shape index: {}]
  %s7 = inlined_call_operand.vmem [shape: f32[1,128], index: 7, kind: input, shape index: {}]
  %s8 = inlined_call_operand.vmem [shape: bf16[128,32], index: 8, kind: input, shape index: {}]
  %s9 = inlined_call_operand.vmem [shape: f32[1,32], index: 9, kind: input, shape index: {}]
  %s10 = inlined_call_operand.vmem [shape: bf16[32,16], index: 10, kind: input, shape index: {}]
  %s11 = inlined_call_operand.vmem [shape: bf16[16,32], index: 11, kind: input, shape index: {}]
  %s12 = inlined_call_operand.vmem [shape: bf16[32,96], index: 12, kind: input, shape index: {}]
  %s13 = inlined_call_operand.vmem [shape: f32[1,96], index: 13, kind: input, shape index: {}]
  %s14 = inlined_call_operand.vmem [shape: bf16[4,8,32], index: 14, kind: input, shape index: {}]
  %s15 = inlined_call_operand.vmem [shape: f32[1,32], index: 15, kind: input, shape index: {}]
  %s16 = inlined_call_operand.hbm [shape: f32[48,32], index: 16, kind: output, shape index: {}]
  %s17 = sld [smem:[#allocation0]]
  $region74: #{transgnn_block_forward.1} parent=0
    _
  %s19 = ssub.s32 1, %s17
  %s20 = scalar_select 0, %s19, %s17
  $region1: #{transgnn_block_forward.1} parent=0
    #allocation2 [shape = 'u8[24576]{0}', space=vmem, size = 0x6000, scoped, tag = 'output window, operand 0, single buffered']
    #allocation3 [shape = 's32[1]{0}', space=sflag, size = 0x4, scoped, tag = 'scoped memory for transgnn_block_forward.1']
    %21 = vsyncpa [#allocation3], 0
    // Predicated region
    $region2: #{transgnn_block_forward.1} parent=1 // pred_check
      _
    $region3: #{transgnn_block_forward.1} parent=1 // pred_check_branch
      %23 = sbr.rel (0) target = $region5
    $region4: #{transgnn_block_forward.1} parent=1 // pred_region
      _
    $region5: #{transgnn_block_forward.1} parent=1 // pred_fallthru
      _
    // Predicated region
    $region6: #{transgnn_block_forward.1} parent=1 // pred_check
      _
    $region7: #{transgnn_block_forward.1} parent=1 // pred_check_branch
      %25 = sbr.rel (0) target = $region9
    $region8: #{transgnn_block_forward.1} parent=1 // pred_region
      _
    $region9: #{transgnn_block_forward.1} parent=1 // pred_fallthru
      _
    // Predicated region
    $region10: #{transgnn_block_forward.1} parent=1 // pred_check
      _
    $region11: #{transgnn_block_forward.1} parent=1 // pred_check_branch
      %27 = sbr.rel (0) target = $region13
    $region12: #{transgnn_block_forward.1} parent=1 // pred_region
      _
    $region13: #{transgnn_block_forward.1} parent=1 // pred_fallthru
      _
    // Predicated region
    $region14: #{transgnn_block_forward.1} parent=1 // pred_check
      _
    $region15: #{transgnn_block_forward.1} parent=1 // pred_check_branch
      %29 = sbr.rel (0) target = $region17
    $region16: #{transgnn_block_forward.1} parent=1 // pred_region
      _
    $region17: #{transgnn_block_forward.1} parent=1 // pred_fallthru
      _
    // Predicated region
    $region18: #{transgnn_block_forward.1} parent=1 // pred_check
      _
    $region19: #{transgnn_block_forward.1} parent=1 // pred_check_branch
      %31 = sbr.rel (0) target = $region21
    $region20: #{transgnn_block_forward.1} parent=1 // pred_region
      _
    $region21: #{transgnn_block_forward.1} parent=1 // pred_fallthru
      _
    // Predicated region
    $region22: #{transgnn_block_forward.1} parent=1 // pred_check
      _
    $region23: #{transgnn_block_forward.1} parent=1 // pred_check_branch
      %33 = sbr.rel (0) target = $region25
    $region24: #{transgnn_block_forward.1} parent=1 // pred_region
      _
    $region25: #{transgnn_block_forward.1} parent=1 // pred_fallthru
      _
    // Predicated region
    $region26: #{transgnn_block_forward.1} parent=1 // pred_check
      _
    $region27: #{transgnn_block_forward.1} parent=1 // pred_check_branch
      %35 = sbr.rel (0) target = $region29
    $region28: #{transgnn_block_forward.1} parent=1 // pred_region
      _
    $region29: #{transgnn_block_forward.1} parent=1 // pred_fallthru
      _
    // Predicated region
    $region30: #{transgnn_block_forward.1} parent=1 // pred_check
      _
    $region31: #{transgnn_block_forward.1} parent=1 // pred_check_branch
      %37 = sbr.rel (0) target = $region33
    $region32: #{transgnn_block_forward.1} parent=1 // pred_region
      _
    $region33: #{transgnn_block_forward.1} parent=1 // pred_fallthru
      _
    // Predicated region
    $region34: #{transgnn_block_forward.1} parent=1 // pred_check
      _
    $region35: #{transgnn_block_forward.1} parent=1 // pred_check_branch
      %39 = sbr.rel (0) target = $region37
    $region36: #{transgnn_block_forward.1} parent=1 // pred_region
      _
    $region37: #{transgnn_block_forward.1} parent=1 // pred_fallthru
      _
    // Predicated region
    $region38: #{transgnn_block_forward.1} parent=1 // pred_check
      _
    $region39: #{transgnn_block_forward.1} parent=1 // pred_check_branch
      %41 = sbr.rel (0) target = $region41
    $region40: #{transgnn_block_forward.1} parent=1 // pred_region
      _
    $region41: #{transgnn_block_forward.1} parent=1 // pred_fallthru
      _
    // Predicated region
    $region42: #{transgnn_block_forward.1} parent=1 // pred_check
      _
    $region43: #{transgnn_block_forward.1} parent=1 // pred_check_branch
      %43 = sbr.rel (0) target = $region45
    $region44: #{transgnn_block_forward.1} parent=1 // pred_region
      _
    $region45: #{transgnn_block_forward.1} parent=1 // pred_fallthru
      _
    // Predicated region
    $region46: #{transgnn_block_forward.1} parent=1 // pred_check
      _
    $region47: #{transgnn_block_forward.1} parent=1 // pred_check_branch
      %45 = sbr.rel (0) target = $region49
    $region48: #{transgnn_block_forward.1} parent=1 // pred_region
      _
    $region49: #{transgnn_block_forward.1} parent=1 // pred_fallthru
      _
    // Predicated region
    $region50: #{transgnn_block_forward.1} parent=1 // pred_check
      _
    $region51: #{transgnn_block_forward.1} parent=1 // pred_check_branch
      %47 = sbr.rel (0) target = $region53
    $region52: #{transgnn_block_forward.1} parent=1 // pred_region
      _
    $region53: #{transgnn_block_forward.1} parent=1 // pred_fallthru
      _
    // Predicated region
    $region54: #{transgnn_block_forward.1} parent=1 // pred_check
      _
    $region55: #{transgnn_block_forward.1} parent=1 // pred_check_branch
      %49 = sbr.rel (0) target = $region57
    $region56: #{transgnn_block_forward.1} parent=1 // pred_region
      _
    $region57: #{transgnn_block_forward.1} parent=1 // pred_fallthru
      _
    // Predicated region
    $region58: #{transgnn_block_forward.1} parent=1 // pred_check
      _
    $region59: #{transgnn_block_forward.1} parent=1 // pred_check_branch
      %51 = sbr.rel (0) target = $region61
    $region60: #{transgnn_block_forward.1} parent=1 // pred_region
      _
    $region61: #{transgnn_block_forward.1} parent=1 // pred_fallthru
      _
    // Predicated region
    $region62: #{transgnn_block_forward.1} parent=1 // pred_check
      _
    $region63: #{transgnn_block_forward.1} parent=1 // pred_check_branch
      %53 = sbr.rel (0) target = $region65
    $region64: #{transgnn_block_forward.1} parent=1 // pred_region
      _
    $region65: #{transgnn_block_forward.1} parent=1 // pred_fallthru
      _
    %v55 = vld [vmem:[%s0] sm:$0xff]
    %v56 = vld [vmem:[%s0 + $0x8] sm:$0xff]
    %v57 = vld [vmem:[%s0 + $0x10] sm:$0xff]
    %v58 = vld [vmem:[%s0 + $0x18] sm:$0xff]
    %v59 = vld [vmem:[%s1] sm:$0xff]
    %v60 = vld [vmem:[%s1 + $0x8] sm:$0xff]
    %v61 = vld [vmem:[%s2] sm:$0xf]
    %v62 = vld [vmem:[%s2 + $0x4] sm:$0xf]
    %v63 = vld [vmem:[%s2 + $0x8] sm:$0xf]
    %v64 = vld [vmem:[%s2 + $0xc] sm:$0xf]
    %v65 = vpack.c.bf16 %v56, %v55
    %v66 = vpack.c.bf16 %v58, %v57
    %v67 = vld [vmem:[%s3] sm:$0x1]
    %v69 = vlaneseq
    %v70 = vshrl.u32 %v69, 7
    %v71 = vsub.s32 0, %v70
    %v72 = vrot.slane %v67, %v71
    %v78 = vunpack.c.l.b16 %v61
    %v79 = vunpack.c.l.b16 %v62
    %v80 = vunpack.c.l.b16 %v63
    %v81 = vunpack.c.l.b16 %v64
    %v82 = vpack.c.b16 %v79, %v78
    %v83 = vpack.c.b16 %v81, %v80
    %vm86 = vcmask 261120
    %v88 = vsel %vm86, %v65, 0
    %v91 = vsel %vm86, %v66, 0
    %93 = vmatprep.subr.bf16.mxu0 0
    %94 = vmatpush1.bf16.msra.mxu0 0
    %95 = vmatprep.subr.bf16.mxu0 0
    %96 = vmatpush1.bf16.msra.mxu0 0
    %97 = vmatprep.subr.bf16.mxu0 0
    %98 = vmatpush1.bf16.msra.mxu0 0
    %99 = vmatprep.subr.bf16.mxu0 0
    %100 = vmatpush1.bf16.msra.mxu0 0
    %101 = vmatprep.subr.bf16.mxu0 0
    %102 = vmatpush1.bf16.msra.mxu0 0
    %103 = vmatprep.subr.bf16.mxu0 0
    %104 = vmatpush1.bf16.msra.mxu0 0
    %105 = vmatprep.subr.bf16.mxu0 0
    %106 = vmatpush1.bf16.msra.mxu0 %v83
    %107 = vmatprep.subr.bf16.mxu0 0
    %108 = vmatpush1.bf16.msra.mxu0 %v82
    %109 = vmatprep.subr.bf16.mxu0 0
    %110 = vmatpush2.bf16.msra.mxu0 0
    %111 = vmatprep.subr.bf16.mxu0 0
    %112 = vmatpush2.bf16.msra.mxu0 0
    %113 = vmatprep.subr.bf16.mxu0 0
    %114 = vmatpush2.bf16.msra.mxu0 0
    %115 = vmatprep.subr.bf16.mxu0 0
    %116 = vmatpush2.bf16.msra.mxu0 0
    %117 = vmatprep.subr.bf16.mxu0 0
    %118 = vmatpush2.bf16.msra.mxu0 0
    %119 = vmatprep.subr.bf16.mxu0 0
    %120 = vmatpush2.bf16.msra.mxu0 0
    %121 = vmatprep.subr.bf16.mxu0 0
    %122 = vmatpush2.bf16.msra.mxu0 0
    %123 = vmatprep.subr.bf16.mxu0 0
    %124 = vmatpush2.bf16.msra.mxu0 0
    %125 = vmatprep.mubr.bf16.mxu0 0
    %126 = vmatmul.mubr.bf16.gmra.mxu0 %v88
    %v127 = vpop.f32.mrf.mxu0
    %v128 = vadd.f32 %v72, %v127
    %v129 = vpop.f32.mrf.mxu0
    %v130 = vpop.f32.mrf.mxu0
    %v131 = vadd.f32 %v72, %v130
    %v132 = vpop.f32.mrf.mxu0
    %133 = vmatprep.mubr.bf16.mxu0 0
    %134 = vmatmul.mubr.bf16.gmra.mxu0 %v91
    %v135 = vpop.f32.mrf.mxu0
    %v136 = vadd.f32 %v72, %v135
    %v137 = vpop.f32.mrf.mxu0
    %v138 = vpop.f32.mrf.mxu0
    %v139 = vadd.f32 %v72, %v138
    %v140 = vpop.f32.mrf.mxu0
    %141 = vdwg.mxu0
    %v142 = vmax.f32 %v128, 0.0
    %v143 = vmax.f32 %v131, 0.0
    %v144 = vmax.f32 %v136, 0.0
    %v145 = vmax.f32 %v139, 0.0
    %v146 = vld [vmem:[%s4] sm:$0xf]
    %v147 = vld [vmem:[%s4 + $0x4] sm:$0xf]
    %v148 = vld [vmem:[%s4 + $0x8] sm:$0xf]
    %v149 = vld [vmem:[%s4 + $0xc] sm:$0xf]
    %v150 = vld [vmem:[%s4 + $0x10] sm:$0xf]
    %v151 = vld [vmem:[%s4 + $0x14] sm:$0xf]
    %v152 = vld [vmem:[%s4 + $0x18] sm:$0xf]
    %v153 = vld [vmem:[%s4 + $0x1c] sm:$0xf]
    %v154 = vld [vmem:[%s4 + $0x20] sm:$0xf]
    %v155 = vld [vmem:[%s4 + $0x24] sm:$0xf]
    %v156 = vld [vmem:[%s4 + $0x28] sm:$0xf]
    %v157 = vld [vmem:[%s4 + $0x2c] sm:$0xf]
    %v158 = vld [vmem:[%s4 + $0x30] sm:$0xf]
    %v159 = vld [vmem:[%s4 + $0x34] sm:$0xf]
    %v160 = vld [vmem:[%s4 + $0x38] sm:$0xf]
    %v161 = vld [vmem:[%s4 + $0x3c] sm:$0xf]
    %v162 = vpack.c.bf16 %v143, %v142
    %v163 = vpack.c.bf16 %v145, %v144
    %v164 = vld [vmem:[%s5] sm:$0x1]
    %v166 = vlaneseq
    %v167 = vshrl.u32 %v166, 7
    %v168 = vsub.s32 0, %v167
    %v169 = vrot.slane %v164, %v168
    %v187 = vunpack.c.l.b16 %v146
    %v188 = vunpack.c.l.b16 %v147
    %v189 = vunpack.c.l.b16 %v148
    %v190 = vunpack.c.l.b16 %v149
    %v191 = vunpack.c.l.b16 %v150
    %v192 = vunpack.c.l.b16 %v151
    %v193 = vunpack.c.l.b16 %v152
    %v194 = vunpack.c.l.b16 %v153
    %v195 = vunpack.c.l.b16 %v154
    %v196 = vunpack.c.l.b16 %v155
    %v197 = vunpack.c.l.b16 %v156
    %v198 = vunpack.c.l.b16 %v157
    %v199 = vunpack.c.l.b16 %v158
    %v200 = vunpack.c.l.b16 %v159
    %v201 = vunpack.c.l.b16 %v160
    %v202 = vunpack.c.l.b16 %v161
    %v203 = vpack.c.b16 %v188, %v187
    %v204 = vpack.c.b16 %v190, %v189
    %v205 = vpack.c.b16 %v192, %v191
    %v206 = vpack.c.b16 %v194, %v193
    %v207 = vpack.c.b16 %v196, %v195
    %v208 = vpack.c.b16 %v198, %v197
    %v209 = vpack.c.b16 %v200, %v199
    %v210 = vpack.c.b16 %v202, %v201
    %219 = vmatprep.subr.bf16.mxu0 0
    %220 = vmatpush1.bf16.msra.mxu0 %v210
    %221 = vmatprep.subr.bf16.mxu0 0
    %222 = vmatpush1.bf16.msra.mxu0 %v209
    %223 = vmatprep.subr.bf16.mxu0 0
    %224 = vmatpush1.bf16.msra.mxu0 %v208
    %225 = vmatprep.subr.bf16.mxu0 0
    %226 = vmatpush1.bf16.msra.mxu0 %v207
    %227 = vmatprep.subr.bf16.mxu0 0
    %228 = vmatpush1.bf16.msra.mxu0 %v206
    %229 = vmatprep.subr.bf16.mxu0 0
    %230 = vmatpush1.bf16.msra.mxu0 %v205
    %231 = vmatprep.subr.bf16.mxu0 0
    %232 = vmatpush1.bf16.msra.mxu0 %v204
    %233 = vmatprep.subr.bf16.mxu0 0
    %234 = vmatpush1.bf16.msra.mxu0 %v203
    %235 = vmatprep.subr.bf16.mxu0 0
    %236 = vmatpush2.bf16.msra.mxu0 0
    %237 = vmatprep.subr.bf16.mxu0 0
    %238 = vmatpush2.bf16.msra.mxu0 0
    %239 = vmatprep.subr.bf16.mxu0 0
    %240 = vmatpush2.bf16.msra.mxu0 0
    %241 = vmatprep.subr.bf16.mxu0 0
    %242 = vmatpush2.bf16.msra.mxu0 0
    %243 = vmatprep.subr.bf16.mxu0 0
    %244 = vmatpush2.bf16.msra.mxu0 0
    %245 = vmatprep.subr.bf16.mxu0 0
    %246 = vmatpush2.bf16.msra.mxu0 0
    %247 = vmatprep.subr.bf16.mxu0 0
    %248 = vmatpush2.bf16.msra.mxu0 0
    %249 = vmatprep.subr.bf16.mxu0 0
    %250 = vmatpush2.bf16.msra.mxu0 0
    %251 = vmatprep.mubr.bf16.mxu0 0
    %252 = vmatmul.mubr.bf16.gmra.mxu0 %v162
    %v253 = vpop.f32.mrf.mxu0
    %v254 = vadd.f32 %v169, %v253
    %v255 = vpop.f32.mrf.mxu0
    %v256 = vpop.f32.mrf.mxu0
    %v257 = vadd.f32 %v169, %v256
    %v258 = vpop.f32.mrf.mxu0
    %259 = vmatprep.mubr.bf16.mxu0 0
    %260 = vmatmul.mubr.bf16.gmra.mxu0 %v163
    %v261 = vpop.f32.mrf.mxu0
    %v262 = vadd.f32 %v169, %v261
    %v263 = vpop.f32.mrf.mxu0
    %v264 = vpop.f32.mrf.mxu0
    %v265 = vadd.f32 %v169, %v264
    %v266 = vpop.f32.mrf.mxu0
    %267 = vdwg.mxu0
    %v268 = vadd.f32 %v254, %v55
    %v269 = vadd.f32 %v257, %v56
    %v270 = vadd.f32 %v262, %v57
    %v271 = vadd.f32 %v265, %v58
    %v272 = vld [vmem:[%s6] sm:$0xf]
    %v273 = vld [vmem:[%s6 + $0x4] sm:$0xf]
    %v274 = vld [vmem:[%s6 + $0x8] sm:$0xf]
    %v275 = vld [vmem:[%s6 + $0xc] sm:$0xf]
    %v276 = vpack.c.bf16 %v60, %v59
    %v277 = vld [vmem:[%s7] sm:$0x1]
    %v279 = vlaneseq
    %v280 = vshrl.u32 %v279, 7
    %v281 = vsub.s32 0, %v280
    %v282 = vrot.slane %v277, %v281
    %v288 = vunpack.c.l.b16 %v272
    %v289 = vunpack.c.l.b16 %v273
    %v290 = vunpack.c.l.b16 %v274
    %v291 = vunpack.c.l.b16 %v275
    %v292 = vpack.c.b16 %v289, %v288
    %v293 = vpack.c.b16 %v291, %v290
    %v297 = vsel %vm86, %v276, 0
    %299 = vmatprep.subr.bf16.mxu0 0
    %300 = vmatpush1.bf16.msra.mxu0 0
    %301 = vmatprep.subr.bf16.mxu0 0
    %302 = vmatpush1.bf16.msra.mxu0 0
    %303 = vmatprep.subr.bf16.mxu0 0
    %304 = vmatpush1.bf16.msra.mxu0 0
    %305 = vmatprep.subr.bf16.mxu0 0
    %306 = vmatpush1.bf16.msra.mxu0 0
    %307 = vmatprep.subr.bf16.mxu0 0
    %308 = vmatpush1.bf16.msra.mxu0 0
    %309 = vmatprep.subr.bf16.mxu0 0
    %310 = vmatpush1.bf16.msra.mxu0 0
    %311 = vmatprep.subr.bf16.mxu0 0
    %312 = vmatpush1.bf16.msra.mxu0 %v293
    %313 = vmatprep.subr.bf16.mxu0 0
    %314 = vmatpush1.bf16.msra.mxu0 %v292
    %315 = vmatprep.subr.bf16.mxu0 0
    %316 = vmatpush2.bf16.msra.mxu0 0
    %317 = vmatprep.subr.bf16.mxu0 0
    %318 = vmatpush2.bf16.msra.mxu0 0
    %319 = vmatprep.subr.bf16.mxu0 0
    %320 = vmatpush2.bf16.msra.mxu0 0
    %321 = vmatprep.subr.bf16.mxu0 0
    %322 = vmatpush2.bf16.msra.mxu0 0
    %323 = vmatprep.subr.bf16.mxu0 0
    %324 = vmatpush2.bf16.msra.mxu0 0
    %325 = vmatprep.subr.bf16.mxu0 0
    %326 = vmatpush2.bf16.msra.mxu0 0
    %327 = vmatprep.subr.bf16.mxu0 0
    %328 = vmatpush2.bf16.msra.mxu0 0
    %329 = vmatprep.subr.bf16.mxu0 0
    %330 = vmatpush2.bf16.msra.mxu0 0
    %331 = vmatprep.mubr.bf16.mxu0 0
    %332 = vmatmul.mubr.bf16.gmra.mxu0 %v297
    %v333 = vpop.f32.mrf.mxu0
    %v334 = vadd.f32 %v282, %v333
    %v335 = vpop.f32.mrf.mxu0
    %v336 = vpop.f32.mrf.mxu0
    %v337 = vadd.f32 %v282, %v336
    %v338 = vpop.f32.mrf.mxu0
    %339 = vdwg.mxu0
    %v340 = vmax.f32 %v334, 0.0
    %v341 = vmax.f32 %v337, 0.0
    %v342 = vld [vmem:[%s8] sm:$0xf]
    %v343 = vld [vmem:[%s8 + $0x4] sm:$0xf]
    %v344 = vld [vmem:[%s8 + $0x8] sm:$0xf]
    %v345 = vld [vmem:[%s8 + $0xc] sm:$0xf]
    %v346 = vld [vmem:[%s8 + $0x10] sm:$0xf]
    %v347 = vld [vmem:[%s8 + $0x14] sm:$0xf]
    %v348 = vld [vmem:[%s8 + $0x18] sm:$0xf]
    %v349 = vld [vmem:[%s8 + $0x1c] sm:$0xf]
    %v350 = vld [vmem:[%s8 + $0x20] sm:$0xf]
    %v351 = vld [vmem:[%s8 + $0x24] sm:$0xf]
    %v352 = vld [vmem:[%s8 + $0x28] sm:$0xf]
    %v353 = vld [vmem:[%s8 + $0x2c] sm:$0xf]
    %v354 = vld [vmem:[%s8 + $0x30] sm:$0xf]
    %v355 = vld [vmem:[%s8 + $0x34] sm:$0xf]
    %v356 = vld [vmem:[%s8 + $0x38] sm:$0xf]
    %v357 = vld [vmem:[%s8 + $0x3c] sm:$0xf]
    %v358 = vpack.c.bf16 %v341, %v340
    %v359 = vld [vmem:[%s9] sm:$0x1]
    %v361 = vlaneseq
    %v362 = vshrl.u32 %v361, 7
    %v363 = vsub.s32 0, %v362
    %v364 = vrot.slane %v359, %v363
    %v382 = vunpack.c.l.b16 %v342
    %v383 = vunpack.c.l.b16 %v343
    %v384 = vunpack.c.l.b16 %v344
    %v385 = vunpack.c.l.b16 %v345
    %v386 = vunpack.c.l.b16 %v346
    %v387 = vunpack.c.l.b16 %v347
    %v388 = vunpack.c.l.b16 %v348
    %v389 = vunpack.c.l.b16 %v349
    %v390 = vunpack.c.l.b16 %v350
    %v391 = vunpack.c.l.b16 %v351
    %v392 = vunpack.c.l.b16 %v352
    %v393 = vunpack.c.l.b16 %v353
    %v394 = vunpack.c.l.b16 %v354
    %v395 = vunpack.c.l.b16 %v355
    %v396 = vunpack.c.l.b16 %v356
    %v397 = vunpack.c.l.b16 %v357
    %v398 = vpack.c.b16 %v383, %v382
    %v399 = vpack.c.b16 %v385, %v384
    %v400 = vpack.c.b16 %v387, %v386
    %v401 = vpack.c.b16 %v389, %v388
    %v402 = vpack.c.b16 %v391, %v390
    %v403 = vpack.c.b16 %v393, %v392
    %v404 = vpack.c.b16 %v395, %v394
    %v405 = vpack.c.b16 %v397, %v396
    %414 = vmatprep.subr.bf16.mxu0 0
    %415 = vmatpush1.bf16.msra.mxu0 %v405
    %416 = vmatprep.subr.bf16.mxu0 0
    %417 = vmatpush1.bf16.msra.mxu0 %v404
    %418 = vmatprep.subr.bf16.mxu0 0
    %419 = vmatpush1.bf16.msra.mxu0 %v403
    %420 = vmatprep.subr.bf16.mxu0 0
    %421 = vmatpush1.bf16.msra.mxu0 %v402
    %422 = vmatprep.subr.bf16.mxu0 0
    %423 = vmatpush1.bf16.msra.mxu0 %v401
    %424 = vmatprep.subr.bf16.mxu0 0
    %425 = vmatpush1.bf16.msra.mxu0 %v400
    %426 = vmatprep.subr.bf16.mxu0 0
    %427 = vmatpush1.bf16.msra.mxu0 %v399
    %428 = vmatprep.subr.bf16.mxu0 0
    %429 = vmatpush1.bf16.msra.mxu0 %v398
    %430 = vmatprep.subr.bf16.mxu0 0
    %431 = vmatpush2.bf16.msra.mxu0 0
    %432 = vmatprep.subr.bf16.mxu0 0
    %433 = vmatpush2.bf16.msra.mxu0 0
    %434 = vmatprep.subr.bf16.mxu0 0
    %435 = vmatpush2.bf16.msra.mxu0 0
    %436 = vmatprep.subr.bf16.mxu0 0
    %437 = vmatpush2.bf16.msra.mxu0 0
    %438 = vmatprep.subr.bf16.mxu0 0
    %439 = vmatpush2.bf16.msra.mxu0 0
    %440 = vmatprep.subr.bf16.mxu0 0
    %441 = vmatpush2.bf16.msra.mxu0 0
    %442 = vmatprep.subr.bf16.mxu0 0
    %443 = vmatpush2.bf16.msra.mxu0 0
    %444 = vmatprep.subr.bf16.mxu0 0
    %445 = vmatpush2.bf16.msra.mxu0 0
    %446 = vmatprep.mubr.bf16.mxu0 0
    %447 = vmatmul.mubr.bf16.gmra.mxu0 %v358
    %v448 = vpop.f32.mrf.mxu0
    %v449 = vadd.f32 %v364, %v448
    %v450 = vpop.f32.mrf.mxu0
    %v451 = vpop.f32.mrf.mxu0
    %v452 = vadd.f32 %v364, %v451
    %v453 = vpop.f32.mrf.mxu0
    %454 = vdwg.mxu0
    %v455 = vadd.f32 %v449, %v59
    %v456 = vadd.f32 %v452, %v60
    %v457 = vsel %vm86, %v268, 0.0
    %v458 = vsel %vm86, %v269, 0.0
    %v459 = vadd.f32 %v457, %v458
    %v460 = vrot.slane %v459, 4
    %v461 = vadd.f32 %v459, %v460
    %v462 = vrot.slane %v461, 2
    %v463 = vadd.f32 %v461, %v462
    %v464 = vrot.slane %v463, 1
    %v465 = vadd.f32 %v463, %v464
    %v466 = vsel %vm86, %v455, 0.0
    %v467 = vrot.slane %v466, 4
    %v468 = vadd.f32 %v466, %v467
    %v469 = vrot.slane %v468, 2
    %v470 = vadd.f32 %v468, %v469
    %v471 = vrot.slane %v470, 1
    %v472 = vadd.f32 %v470, %v471
    %v473 = vadd.f32 %v465, %v472
    %v474 = vmul.f32 %v473, 0.041666668
    %v475 = vld [vmem:[%s10] sm:$0xf]
    %v476 = vld [vmem:[%s10 + $0x4] sm:$0xf]
    %v477 = vld [vmem:[%s10 + $0x8] sm:$0xf]
    %v478 = vld [vmem:[%s10 + $0xc] sm:$0xf]
    %v479 = vpack.c.bf16 %v474, %v474
    %v484 = vunpack.c.l.b16 %v475
    %v485 = vunpack.c.l.b16 %v476
    %v486 = vunpack.c.l.b16 %v477
    %v487 = vunpack.c.l.b16 %v478
    %v488 = vpack.c.b16 %v485, %v484
    %v489 = vpack.c.b16 %v487, %v486
    %v493 = vsel %vm86, %v479, 0
    %495 = vmatprep.subr.bf16.mxu0 0
    %496 = vmatpush1.bf16.msra.mxu0 0
    %497 = vmatprep.subr.bf16.mxu0 0
    %498 = vmatpush1.bf16.msra.mxu0 0
    %499 = vmatprep.subr.bf16.mxu0 0
    %500 = vmatpush1.bf16.msra.mxu0 0
    %501 = vmatprep.subr.bf16.mxu0 0
    %502 = vmatpush1.bf16.msra.mxu0 0
    %503 = vmatprep.subr.bf16.mxu0 0
    %504 = vmatpush1.bf16.msra.mxu0 0
    %505 = vmatprep.subr.bf16.mxu0 0
    %506 = vmatpush1.bf16.msra.mxu0 0
    %507 = vmatprep.subr.bf16.mxu0 0
    %508 = vmatpush1.bf16.msra.mxu0 %v489
    %509 = vmatprep.subr.bf16.mxu0 0
    %510 = vmatpush1.bf16.msra.mxu0 %v488
    %511 = vmatprep.subr.bf16.mxu0 0
    %512 = vmatpush2.bf16.msra.mxu0 0
    %513 = vmatprep.subr.bf16.mxu0 0
    %514 = vmatpush2.bf16.msra.mxu0 0
    %515 = vmatprep.subr.bf16.mxu0 0
    %516 = vmatpush2.bf16.msra.mxu0 0
    %517 = vmatprep.subr.bf16.mxu0 0
    %518 = vmatpush2.bf16.msra.mxu0 0
    %519 = vmatprep.subr.bf16.mxu0 0
    %520 = vmatpush2.bf16.msra.mxu0 0
    %521 = vmatprep.subr.bf16.mxu0 0
    %522 = vmatpush2.bf16.msra.mxu0 0
    %523 = vmatprep.subr.bf16.mxu0 0
    %524 = vmatpush2.bf16.msra.mxu0 0
    %525 = vmatprep.subr.bf16.mxu0 0
    %526 = vmatpush2.bf16.msra.mxu0 0
    %527 = vmatprep.mubr.bf16.mxu0 0
    %528 = vmatmul.mubr.bf16.gmra.mxu0 %v493
    %v529 = vpop.f32.mrf.mxu0
    %v530 = vadd.f32 0.0, %v529
    %v531 = vpop.f32.mrf.mxu0
    %v532 = vpop.f32.mrf.mxu0
    %v533 = vpop.f32.mrf.mxu0
    %534 = vdwg.mxu0
    %v535 = vmax.f32 %v530, 0.0
    %v536 = vld [vmem:[%s11] sm:$0xf]
    %v537 = vld [vmem:[%s11 + $0x4] sm:$0xf]
    %v538 = vpack.c.bf16 %v535, %v535
    %v541 = vunpack.c.l.b16 %v536
    %v542 = vunpack.c.l.b16 %v537
    %v543 = vpack.c.b16 %v542, %v541
    %vm545 = vcmask 130048
    %v547 = vsel %vm545, %v538, 0
    %549 = vmatprep.subr.bf16.mxu0 0
    %550 = vmatpush1.bf16.msra.mxu0 0
    %551 = vmatprep.subr.bf16.mxu0 0
    %552 = vmatpush1.bf16.msra.mxu0 0
    %553 = vmatprep.subr.bf16.mxu0 0
    %554 = vmatpush1.bf16.msra.mxu0 0
    %555 = vmatprep.subr.bf16.mxu0 0
    %556 = vmatpush1.bf16.msra.mxu0 0
    %557 = vmatprep.subr.bf16.mxu0 0
    %558 = vmatpush1.bf16.msra.mxu0 0
    %559 = vmatprep.subr.bf16.mxu0 0
    %560 = vmatpush1.bf16.msra.mxu0 0
    %561 = vmatprep.subr.bf16.mxu0 0
    %562 = vmatpush1.bf16.msra.mxu0 0
    %563 = vmatprep.subr.bf16.mxu0 0
    %564 = vmatpush1.bf16.msra.mxu0 %v543
    %565 = vmatprep.subr.bf16.mxu0 0
    %566 = vmatpush2.bf16.msra.mxu0 0
    %567 = vmatprep.subr.bf16.mxu0 0
    %568 = vmatpush2.bf16.msra.mxu0 0
    %569 = vmatprep.subr.bf16.mxu0 0
    %570 = vmatpush2.bf16.msra.mxu0 0
    %571 = vmatprep.subr.bf16.mxu0 0
    %572 = vmatpush2.bf16.msra.mxu0 0
    %573 = vmatprep.subr.bf16.mxu0 0
    %574 = vmatpush2.bf16.msra.mxu0 0
    %575 = vmatprep.subr.bf16.mxu0 0
    %576 = vmatpush2.bf16.msra.mxu0 0
    %577 = vmatprep.subr.bf16.mxu0 0
    %578 = vmatpush2.bf16.msra.mxu0 0
    %579 = vmatprep.subr.bf16.mxu0 0
    %580 = vmatpush2.bf16.msra.mxu0 0
    %581 = vmatprep.mubr.bf16.mxu0 0
    %582 = vmatmul.mubr.bf16.gmra.mxu0 %v547
    %v583 = vpop.f32.mrf.mxu0
    %v584 = vadd.f32 0.0, %v583
    %v585 = vpop.f32.mrf.mxu0
    %v586 = vpop.f32.mrf.mxu0
    %v587 = vpop.f32.mrf.mxu0
    %588 = vdwg.mxu0
    %v589 = vsub.f32 0.0, %v584
    %v590 = vmul.f32 %v589, 1.442695
    %v591 = vpow.pop %v590
    %v592 = vadd.f32 %v591, 1.0
    %v593 = vrcp.pop %v592
    %v594 = vsel %vm86, %v270, 0.0
    %v595 = vsel %vm86, %v271, 0.0
    %v596 = vadd.f32 %v594, %v595
    %v597 = vrot.slane %v596, 4
    %v598 = vadd.f32 %v596, %v597
    %v599 = vrot.slane %v598, 2
    %v600 = vadd.f32 %v598, %v599
    %v601 = vrot.slane %v600, 1
    %v602 = vadd.f32 %v600, %v601
    %v603 = vsel %vm86, %v456, 0.0
    %v604 = vrot.slane %v603, 4
    %v605 = vadd.f32 %v603, %v604
    %v606 = vrot.slane %v605, 2
    %v607 = vadd.f32 %v605, %v606
    %v608 = vrot.slane %v607, 1
    %v609 = vadd.f32 %v607, %v608
    %v610 = vadd.f32 %v602, %v609
    %v611 = vmul.f32 %v610, 0.041666668
    %v612 = vpack.c.bf16 %v611, %v611
    %v614 = vsel %vm86, %v612, 0
    %616 = vmatprep.subr.bf16.mxu0 0
    %617 = vmatpush1.bf16.msra.mxu0 0
    %618 = vmatprep.subr.bf16.mxu0 0
    %619 = vmatpush1.bf16.msra.mxu0 0
    %620 = vmatprep.subr.bf16.mxu0 0
    %621 = vmatpush1.bf16.msra.mxu0 0
    %622 = vmatprep.subr.bf16.mxu0 0
    %623 = vmatpush1.bf16.msra.mxu0 0
    %624 = vmatprep.subr.bf16.mxu0 0
    %625 = vmatpush1.bf16.msra.mxu0 0
    %626 = vmatprep.subr.bf16.mxu0 0
    %627 = vmatpush1.bf16.msra.mxu0 0
    %628 = vmatprep.subr.bf16.mxu0 0
    %629 = vmatpush1.bf16.msra.mxu0 %v489
    %630 = vmatprep.subr.bf16.mxu0 0
    %631 = vmatpush1.bf16.msra.mxu0 %v488
    %632 = vmatprep.subr.bf16.mxu0 0
    %633 = vmatpush2.bf16.msra.mxu0 0
    %634 = vmatprep.subr.bf16.mxu0 0
    %635 = vmatpush2.bf16.msra.mxu0 0
    %636 = vmatprep.subr.bf16.mxu0 0
    %637 = vmatpush2.bf16.msra.mxu0 0
    %638 = vmatprep.subr.bf16.mxu0 0
    %639 = vmatpush2.bf16.msra.mxu0 0
    %640 = vmatprep.subr.bf16.mxu0 0
    %641 = vmatpush2.bf16.msra.mxu0 0
    %642 = vmatprep.subr.bf16.mxu0 0
    %643 = vmatpush2.bf16.msra.mxu0 0
    %644 = vmatprep.subr.bf16.mxu0 0
    %645 = vmatpush2.bf16.msra.mxu0 0
    %646 = vmatprep.subr.bf16.mxu0 0
    %647 = vmatpush2.bf16.msra.mxu0 0
    %648 = vmatprep.mubr.bf16.mxu0 0
    %649 = vmatmul.mubr.bf16.gmra.mxu0 %v614
    %v650 = vpop.f32.mrf.mxu0
    %v651 = vadd.f32 0.0, %v650
    %v652 = vpop.f32.mrf.mxu0
    %v653 = vpop.f32.mrf.mxu0
    %v654 = vpop.f32.mrf.mxu0
    %655 = vdwg.mxu0
    %v656 = vmax.f32 %v651, 0.0
    %v657 = vpack.c.bf16 %v656, %v656
    %v659 = vsel %vm545, %v657, 0
    %661 = vmatprep.subr.bf16.mxu0 0
    %662 = vmatpush1.bf16.msra.mxu0 0
    %663 = vmatprep.subr.bf16.mxu0 0
    %664 = vmatpush1.bf16.msra.mxu0 0
    %665 = vmatprep.subr.bf16.mxu0 0
    %666 = vmatpush1.bf16.msra.mxu0 0
    %667 = vmatprep.subr.bf16.mxu0 0
    %668 = vmatpush1.bf16.msra.mxu0 0
    %669 = vmatprep.subr.bf16.mxu0 0
    %670 = vmatpush1.bf16.msra.mxu0 0
    %671 = vmatprep.subr.bf16.mxu0 0
    %672 = vmatpush1.bf16.msra.mxu0 0
    %673 = vmatprep.subr.bf16.mxu0 0
    %674 = vmatpush1.bf16.msra.mxu0 0
    %675 = vmatprep.subr.bf16.mxu0 0
    %676 = vmatpush1.bf16.msra.mxu0 %v543
    %677 = vmatprep.subr.bf16.mxu0 0
    %678 = vmatpush2.bf16.msra.mxu0 0
    %679 = vmatprep.subr.bf16.mxu0 0
    %680 = vmatpush2.bf16.msra.mxu0 0
    %681 = vmatprep.subr.bf16.mxu0 0
    %682 = vmatpush2.bf16.msra.mxu0 0
    %683 = vmatprep.subr.bf16.mxu0 0
    %684 = vmatpush2.bf16.msra.mxu0 0
    %685 = vmatprep.subr.bf16.mxu0 0
    %686 = vmatpush2.bf16.msra.mxu0 0
    %687 = vmatprep.subr.bf16.mxu0 0
    %688 = vmatpush2.bf16.msra.mxu0 0
    %689 = vmatprep.subr.bf16.mxu0 0
    %690 = vmatpush2.bf16.msra.mxu0 0
    %691 = vmatprep.subr.bf16.mxu0 0
    %692 = vmatpush2.bf16.msra.mxu0 0
    %693 = vmatprep.mubr.bf16.mxu0 0
    %694 = vmatmul.mubr.bf16.gmra.mxu0 %v659
    %v695 = vpop.f32.mrf.mxu0
    %v696 = vadd.f32 0.0, %v695
    %v697 = vpop.f32.mrf.mxu0
    %v698 = vpop.f32.mrf.mxu0
    %v699 = vpop.f32.mrf.mxu0
    %700 = vdwg.mxu0
    %v701 = vsub.f32 0.0, %v696
    %v702 = vmul.f32 %v701, 1.442695
    %v703 = vpow.pop %v702
    %v704 = vadd.f32 %v703, 1.0
    %v705 = vrcp.pop %v704
    %v706 = vlaneseq
    %v707 = vshrl.u32 %v706, 7
    %v708 = vsub.s32 0, %v707
    %v709 = vrot.slane %v593, %v708
    %v710 = vmul.f32 %v268, %v709
    %v711 = vmul.f32 %v269, %v709
    %v712 = vmul.f32 %v455, %v709
    %v713 = vlaneseq
    %v714 = vshrl.u32 %v713, 7
    %v715 = vsub.s32 0, %v714
    %v716 = vrot.slane %v705, %v715
    %v717 = vmul.f32 %v270, %v716
    %v718 = vmul.f32 %v271, %v716
    %v719 = vmul.f32 %v456, %v716
    %v720 = vld [vmem:[%s12] sm:$0xf]
    %v721 = vld [vmem:[%s12 + $0x4] sm:$0xf]
    %v722 = vld [vmem:[%s12 + $0x8] sm:$0xf]
    %v723 = vld [vmem:[%s12 + $0xc] sm:$0xf]
    %v724 = vpack.c.bf16 %v711, %v710
    %v725 = vpack.c.bf16 %v717, %v712
    %v726 = vpack.c.bf16 %v719, %v718
    %v727 = vld [vmem:[%s13] sm:$0x1]
    %v729 = vlaneseq
    %v730 = vshrl.u32 %v729, 7
    %v731 = vsub.s32 0, %v730
    %v732 = vrot.slane %v727, %v731
    %v738 = vunpack.c.l.b16 %v720
    %v739 = vunpack.c.l.b16 %v721
    %v740 = vunpack.c.l.b16 %v722
    %v741 = vunpack.c.l.b16 %v723
    %v742 = vpack.c.b16 %v739, %v738
    %v743 = vpack.c.b16 %v741, %v740
    %v747 = vsel %vm86, %v724, 0
    %v750 = vsel %vm86, %v725, 0
    %v753 = vsel %vm86, %v726, 0
    %755 = vmatprep.subr.bf16.mxu0 0
    %756 = vmatpush1.bf16.msra.mxu0 0
    %757 = vmatprep.subr.bf16.mxu0 0
    %758 = vmatpush1.bf16.msra.mxu0 0
    %759 = vmatprep.subr.bf16.mxu0 0
    %760 = vmatpush1.bf16.msra.mxu0 0
    %761 = vmatprep.subr.bf16.mxu0 0
    %762 = vmatpush1.bf16.msra.mxu0 0
    %763 = vmatprep.subr.bf16.mxu0 0
    %764 = vmatpush1.bf16.msra.mxu0 0
    %765 = vmatprep.subr.bf16.mxu0 0
    %766 = vmatpush1.bf16.msra.mxu0 0
    %767 = vmatprep.subr.bf16.mxu0 0
    %768 = vmatpush1.bf16.msra.mxu0 %v743
    %769 = vmatprep.subr.bf16.mxu0 0
    %770 = vmatpush1.bf16.msra.mxu0 %v742
    %771 = vmatprep.subr.bf16.mxu0 0
    %772 = vmatpush2.bf16.msra.mxu0 0
    %773 = vmatprep.subr.bf16.mxu0 0
    %774 = vmatpush2.bf16.msra.mxu0 0
    %775 = vmatprep.subr.bf16.mxu0 0
    %776 = vmatpush2.bf16.msra.mxu0 0
    %777 = vmatprep.subr.bf16.mxu0 0
    %778 = vmatpush2.bf16.msra.mxu0 0
    %779 = vmatprep.subr.bf16.mxu0 0
    %780 = vmatpush2.bf16.msra.mxu0 0
    %781 = vmatprep.subr.bf16.mxu0 0
    %782 = vmatpush2.bf16.msra.mxu0 0
    %783 = vmatprep.subr.bf16.mxu0 0
    %784 = vmatpush2.bf16.msra.mxu0 0
    %785 = vmatprep.subr.bf16.mxu0 0
    %786 = vmatpush2.bf16.msra.mxu0 0
    %787 = vmatprep.mubr.bf16.mxu0 0
    %788 = vmatmul.mubr.bf16.gmra.mxu0 %v747
    %v789 = vpop.f32.mrf.mxu0
    %v790 = vadd.f32 %v732, %v789
    %v791 = vpop.f32.mrf.mxu0
    %v792 = vpop.f32.mrf.mxu0
    %v793 = vadd.f32 %v732, %v792
    %v794 = vpop.f32.mrf.mxu0
    %795 = vmatprep.mubr.bf16.mxu0 0
    %796 = vmatmul.mubr.bf16.gmra.mxu0 %v750
    %v797 = vpop.f32.mrf.mxu0
    %v798 = vadd.f32 %v732, %v797
    %v799 = vpop.f32.mrf.mxu0
    %v800 = vpop.f32.mrf.mxu0
    %v801 = vadd.f32 %v732, %v800
    %v802 = vpop.f32.mrf.mxu0
    %803 = vmatprep.mubr.bf16.mxu0 0
    %804 = vmatmul.mubr.bf16.gmra.mxu0 %v753
    %v805 = vpop.f32.mrf.mxu0
    %v806 = vadd.f32 %v732, %v805
    %v807 = vpop.f32.mrf.mxu0
    %v808 = vpop.f32.mrf.mxu0
    %v809 = vadd.f32 %v732, %v808
    %v810 = vpop.f32.mrf.mxu0
    %811 = vdwg.mxu0
    %v812 = vpack.c.bf16 %v793, %v790
    %v813 = vpack.c.bf16 %v798, %v798
    %816 = vrot.lane.b32.xlu0 %v812, 96
    %v817 = vpop.permute.xlu0 %816
    %818 = vrot.lane.b32.xlu0 %v813, 96
    %v819 = vpop.permute.xlu0 %818
    %vm820 = vcmask 64512
    %v822 = vsel %vm820, %v812, 0
    %v825 = vsel %vm820, %v813, 0
    %v828 = vsel %vm820, %v817, 0
    %v831 = vsel %vm820, %v819, 0
    %833 = vmatprep.subr.bf16.mxu0 0
    %834 = vmatpush1.bf16.xpose.msra.mxu0 0
    %835 = vmatprep.subr.bf16.mxu0 0
    %836 = vmatpush1.bf16.xpose.msra.mxu0 0
    %837 = vmatprep.subr.bf16.mxu0 0
    %838 = vmatpush1.bf16.xpose.msra.mxu0 0
    %839 = vmatprep.subr.bf16.mxu0 0
    %840 = vmatpush1.bf16.xpose.msra.mxu0 0
    %841 = vmatprep.subr.bf16.mxu0 0
    %842 = vmatpush1.bf16.xpose.msra.mxu0 0
    %843 = vmatprep.subr.bf16.mxu0 0
    %844 = vmatpush1.bf16.xpose.msra.mxu0 0
    %845 = vmatprep.subr.bf16.mxu0 0
    %846 = vmatpush1.bf16.xpose.msra.mxu0 %v831
    %847 = vmatprep.subr.bf16.mxu0 0
    %848 = vmatpush1.bf16.xpose.msra.mxu0 %v828
    %849 = vmatprep.subr.bf16.mxu0 0
    %850 = vmatpush2.bf16.xpose.msra.mxu0 0
    %851 = vmatprep.subr.bf16.mxu0 0
    %852 = vmatpush2.bf16.xpose.msra.mxu0 0
    %853 = vmatprep.subr.bf16.mxu0 0
    %854 = vmatpush2.bf16.xpose.msra.mxu0 0
    %855 = vmatprep.subr.bf16.mxu0 0
    %856 = vmatpush2.bf16.xpose.msra.mxu0 0
    %857 = vmatprep.subr.bf16.mxu0 0
    %858 = vmatpush2.bf16.xpose.msra.mxu0 0
    %859 = vmatprep.subr.bf16.mxu0 0
    %860 = vmatpush2.bf16.xpose.msra.mxu0 0
    %861 = vmatprep.subr.bf16.mxu0 0
    %862 = vmatpush2.bf16.xpose.msra.mxu0 0
    %863 = vmatprep.subr.bf16.mxu0 0
    %864 = vmatpush2.bf16.xpose.msra.mxu0 0
    %865 = vmatprep.mubr.bf16.mxu0 0
    %866 = vmatmul.mubr.bf16.gmra.mxu0 %v822
    %v867 = vpop.f32.mrf.mxu0
    %v868 = vadd.f32 0.0, %v867
    %v869 = vpop.f32.mrf.mxu0
    %v870 = vpop.f32.mrf.mxu0
    %v871 = vadd.f32 0.0, %v870
    %v872 = vpop.f32.mrf.mxu0
    %873 = vmatprep.mubr.bf16.mxu0 0
    %874 = vmatmul.mubr.bf16.gmra.mxu0 %v825
    %v875 = vpop.f32.mrf.mxu0
    %v876 = vadd.f32 0.0, %v875
    %v877 = vpop.f32.mrf.mxu0
    %v878 = vpop.f32.mrf.mxu0
    %v879 = vpop.f32.mrf.mxu0
    %880 = vdwg.mxu0
    %v881 = vmul.f32 %v868, 0.35355338
    %v882 = vmul.f32 %v871, 0.35355338
    %v883 = vmul.f32 %v876, 0.35355338
    %vm884 = vcmask 195584
    %v885 = vsel %vm884, %v881, -inf
    %886 = vmax.xlane.f32.xlu0 %v885
    %v887 = vpop.xlane.xlu0 %886
    %v888 = vsel %vm884, %v882, -inf
    %889 = vmax.xlane.f32.xlu0 %v888
    %v890 = vpop.xlane.xlu0 %889
    %v891 = vsel %vm884, %v883, -inf
    %892 = vmax.xlane.f32.xlu0 %v891
    %v893 = vpop.xlane.xlu0 %892
    %v894 = vsub.f32 %v881, %v887
    %v895 = vsub.f32 %v882, %v890
    %v896 = vsub.f32 %v883, %v893
    %v897 = vmul.f32 %v894, 1.442695
    %v898 = vpow.pop %v897
    %v899 = vmul.f32 %v895, 1.442695
    %v900 = vpow.pop %v899
    %v901 = vmul.f32 %v896, 1.442695
    %v902 = vpow.pop %v901
    %v903 = vsel %vm884, %v898, 0.0
    %904 = vadd.xlane.f32.xlu0 %v903
    %v905 = vpop.xlane.xlu0 %904
    %v906 = vsel %vm884, %v900, 0.0
    %907 = vadd.xlane.f32.xlu0 %v906
    %v908 = vpop.xlane.xlu0 %907
    %v909 = vsel %vm884, %v902, 0.0
    %910 = vadd.xlane.f32.xlu0 %v909
    %v911 = vpop.xlane.xlu0 %910
    %v912 = vrcp.pop %v905
    %v913 = vrcp.pop %v908
    %v914 = vrcp.pop %v911
    %v915 = vmul.f32 %v898, %v912
    %v916 = vmul.f32 %v900, %v913
    %v917 = vmul.f32 %v902, %v914
    %v918 = vpack.c.bf16 %v916, %v915
    %v919 = vpack.c.bf16 %v917, %v917
    %920 = vrot.lane.b32.xlu0 %v812, 64
    %v921 = vpop.permute.xlu0 %920
    %922 = vrot.lane.b32.xlu0 %v813, 64
    %v923 = vpop.permute.xlu0 %922
    %v926 = vsel %vm884, %v918, 0
    %v929 = vsel %vm884, %v919, 0
    %vm931 = vcmask 1043456
    %v933 = vsel %vm931, %v923, 0
    %935 = vmatprep.subr.bf16.mxu0 0
    %936 = vmatpush1.bf16.msra.mxu0 0
    %937 = vmatprep.subr.bf16.mxu0 0
    %938 = vmatpush1.bf16.msra.mxu0 0
    %939 = vmatprep.subr.bf16.mxu0 0
    %940 = vmatpush1.bf16.msra.mxu0 0
    %941 = vmatprep.subr.bf16.mxu0 0
    %942 = vmatpush1.bf16.msra.mxu0 0
    %943 = vmatprep.subr.bf16.mxu0 0
    %944 = vmatpush1.bf16.msra.mxu0 0
    %945 = vmatprep.subr.bf16.mxu0 0
    %946 = vmatpush1.bf16.msra.mxu0 0
    %947 = vmatprep.subr.bf16.mxu0 0
    %948 = vmatpush1.bf16.msra.mxu0 %v933
    %949 = vmatprep.subr.bf16.mxu0 0
    %950 = vmatpush1.bf16.msra.mxu0 %v921
    %951 = vmatprep.subr.bf16.mxu0 0
    %952 = vmatpush2.bf16.msra.mxu0 0
    %953 = vmatprep.subr.bf16.mxu0 0
    %954 = vmatpush2.bf16.msra.mxu0 0
    %955 = vmatprep.subr.bf16.mxu0 0
    %956 = vmatpush2.bf16.msra.mxu0 0
    %957 = vmatprep.subr.bf16.mxu0 0
    %958 = vmatpush2.bf16.msra.mxu0 0
    %959 = vmatprep.subr.bf16.mxu0 0
    %960 = vmatpush2.bf16.msra.mxu0 0
    %961 = vmatprep.subr.bf16.mxu0 0
    %962 = vmatpush2.bf16.msra.mxu0 0
    %963 = vmatprep.subr.bf16.mxu0 0
    %964 = vmatpush2.bf16.msra.mxu0 0
    %965 = vmatprep.subr.bf16.mxu0 0
    %966 = vmatpush2.bf16.msra.mxu0 0
    %967 = vmatprep.mubr.bf16.mxu0 0
    %968 = vmatmul.mubr.bf16.gmra.mxu0 %v926
    %v969 = vpop.f32.mrf.mxu0
    %v970 = vadd.f32 0.0, %v969
    %v971 = vpop.f32.mrf.mxu0
    %v972 = vpop.f32.mrf.mxu0
    %v973 = vadd.f32 0.0, %v972
    %v974 = vpop.f32.mrf.mxu0
    %975 = vmatprep.mubr.bf16.mxu0 0
    %976 = vmatmul.mubr.bf16.gmra.mxu0 %v929
    %v977 = vpop.f32.mrf.mxu0
    %v978 = vadd.f32 0.0, %v977
    %v979 = vpop.f32.mrf.mxu0
    %v980 = vpop.f32.mrf.mxu0
    %v981 = vpop.f32.mrf.mxu0
    %982 = vdwg.mxu0
    %v983 = vld [vmem:[%s14] sm:$0xf]
    %v984 = vpack.c.bf16 %v973, %v970
    %v985 = vpack.c.bf16 %v978, %v978
    %986 = vrot.lane.b32.xlu0 %v812, 120
    %v987 = vpop.permute.xlu0 %986
    %988 = vrot.lane.b32.xlu0 %v813, 120
    %v989 = vpop.permute.xlu0 %988
    %990 = vrot.lane.b32.xlu0 %v812, 88
    %v991 = vpop.permute.xlu0 %990
    %992 = vrot.lane.b32.xlu0 %v813, 88
    %v993 = vpop.permute.xlu0 %992
    %v995 = vsel %vm820, %v987, 0
    %v998 = vsel %vm820, %v989, 0
    %v1001 = vsel %vm820, %v991, 0
    %v1004 = vsel %vm820, %v993, 0
    %1006 = vmatprep.subr.bf16.mxu0 0
    %1007 = vmatpush1.bf16.xpose.msra.mxu0 0
    %1008 = vmatprep.subr.bf16.mxu0 0
    %1009 = vmatpush1.bf16.xpose.msra.mxu0 0
    %1010 = vmatprep.subr.bf16.mxu0 0
    %1011 = vmatpush1.bf16.xpose.msra.mxu0 0
    %1012 = vmatprep.subr.bf16.mxu0 0
    %1013 = vmatpush1.bf16.xpose.msra.mxu0 0
    %1014 = vmatprep.subr.bf16.mxu0 0
    %1015 = vmatpush1.bf16.xpose.msra.mxu0 0
    %1016 = vmatprep.subr.bf16.mxu0 0
    %1017 = vmatpush1.bf16.xpose.msra.mxu0 0
    %1018 = vmatprep.subr.bf16.mxu0 0
    %1019 = vmatpush1.bf16.xpose.msra.mxu0 %v1004
    %1020 = vmatprep.subr.bf16.mxu0 0
    %1021 = vmatpush1.bf16.xpose.msra.mxu0 %v1001
    %1022 = vmatprep.subr.bf16.mxu0 0
    %1023 = vmatpush2.bf16.xpose.msra.mxu0 0
    %1024 = vmatprep.subr.bf16.mxu0 0
    %1025 = vmatpush2.bf16.xpose.msra.mxu0 0
    %1026 = vmatprep.subr.bf16.mxu0 0
    %1027 = vmatpush2.bf16.xpose.msra.mxu0 0
    %1028 = vmatprep.subr.bf16.mxu0 0
    %1029 = vmatpush2.bf16.xpose.msra.mxu0 0
    %1030 = vmatprep.subr.bf16.mxu0 0
    %1031 = vmatpush2.bf16.xpose.msra.mxu0 0
    %1032 = vmatprep.subr.bf16.mxu0 0
    %1033 = vmatpush2.bf16.xpose.msra.mxu0 0
    %1034 = vmatprep.subr.bf16.mxu0 0
    %1035 = vmatpush2.bf16.xpose.msra.mxu0 0
    %1036 = vmatprep.subr.bf16.mxu0 0
    %1037 = vmatpush2.bf16.xpose.msra.mxu0 0
    %1038 = vmatprep.mubr.bf16.mxu0 0
    %1039 = vmatmul.mubr.bf16.gmra.mxu0 %v995
    %v1040 = vpop.f32.mrf.mxu0
    %v1041 = vadd.f32 0.0, %v1040
    %v1042 = vpop.f32.mrf.mxu0
    %v1043 = vpop.f32.mrf.mxu0
    %v1044 = vadd.f32 0.0, %v1043
    %v1045 = vpop.f32.mrf.mxu0
    %1046 = vmatprep.mubr.bf16.mxu0 0
    %1047 = vmatmul.mubr.bf16.gmra.mxu0 %v998
    %v1048 = vpop.f32.mrf.mxu0
    %v1049 = vadd.f32 0.0, %v1048
    %v1050 = vpop.f32.mrf.mxu0
    %v1051 = vpop.f32.mrf.mxu0
    %v1052 = vpop.f32.mrf.mxu0
    %1053 = vdwg.mxu0
    %v1054 = vmul.f32 %v1041, 0.35355338
    %v1055 = vmul.f32 %v1044, 0.35355338
    %v1056 = vmul.f32 %v1049, 0.35355338
    %v1057 = vsel %vm884, %v1054, -inf
    %1058 = vmax.xlane.f32.xlu0 %v1057
    %v1059 = vpop.xlane.xlu0 %1058
    %v1060 = vsel %vm884, %v1055, -inf
    %1061 = vmax.xlane.f32.xlu0 %v1060
    %v1062 = vpop.xlane.xlu0 %1061
    %v1063 = vsel %vm884, %v1056, -inf
    %1064 = vmax.xlane.f32.xlu0 %v1063
    %v1065 = vpop.xlane.xlu0 %1064
    %v1066 = vsub.f32 %v1054, %v1059
    %v1067 = vsub.f32 %v1055, %v1062
    %v1068 = vsub.f32 %v1056, %v1065
    %v1069 = vmul.f32 %v1066, 1.442695
    %v1070 = vpow.pop %v1069
    %v1071 = vmul.f32 %v1067, 1.442695
    %v1072 = vpow.pop %v1071
    %v1073 = vmul.f32 %v1068, 1.442695
    %v1074 = vpow.pop %v1073
    %v1075 = vsel %vm884, %v1070, 0.0
    %1076 = vadd.xlane.f32.xlu0 %v1075
    %v1077 = vpop.xlane.xlu0 %1076
    %v1078 = vsel %vm884, %v1072, 0.0
    %1079 = vadd.xlane.f32.xlu0 %v1078
    %v1080 = vpop.xlane.xlu0 %1079
    %v1081 = vsel %vm884, %v1074, 0.0
    %1082 = vadd.xlane.f32.xlu0 %v1081
    %v1083 = vpop.xlane.xlu0 %1082
    %v1084 = vrcp.pop %v1077
    %v1085 = vrcp.pop %v1080
    %v1086 = vrcp.pop %v1083
    %v1087 = vmul.f32 %v1070, %v1084
    %v1088 = vmul.f32 %v1072, %v1085
    %v1089 = vmul.f32 %v1074, %v1086
    %v1090 = vpack.c.bf16 %v1088, %v1087
    %v1091 = vpack.c.bf16 %v1089, %v1089
    %1092 = vrot.lane.b32.xlu0 %v812, 56
    %v1093 = vpop.permute.xlu0 %1092
    %1094 = vrot.lane.b32.xlu0 %v813, 56
    %v1095 = vpop.permute.xlu0 %1094
    %v1098 = vsel %vm884, %v1090, 0
    %v1101 = vsel %vm884, %v1091, 0
    %v1104 = vsel %vm931, %v1095, 0
    %1106 = vmatprep.subr.bf16.mxu0 0
    %1107 = vmatpush1.bf16.msra.mxu0 0
    %1108 = vmatprep.subr.bf16.mxu0 0
    %1109 = vmatpush1.bf16.msra.mxu0 0
    %1110 = vmatprep.subr.bf16.mxu0 0
    %1111 = vmatpush1.bf16.msra.mxu0 0
    %1112 = vmatprep.subr.bf16.mxu0 0
    %1113 = vmatpush1.bf16.msra.mxu0 0
    %1114 = vmatprep.subr.bf16.mxu0 0
    %1115 = vmatpush1.bf16.msra.mxu0 0
    %1116 = vmatprep.subr.bf16.mxu0 0
    %1117 = vmatpush1.bf16.msra.mxu0 0
    %1118 = vmatprep.subr.bf16.mxu0 0
    %1119 = vmatpush1.bf16.msra.mxu0 %v1104
    %1120 = vmatprep.subr.bf16.mxu0 0
    %1121 = vmatpush1.bf16.msra.mxu0 %v1093
    %1122 = vmatprep.subr.bf16.mxu0 0
    %1123 = vmatpush2.bf16.msra.mxu0 0
    %1124 = vmatprep.subr.bf16.mxu0 0
    %1125 = vmatpush2.bf16.msra.mxu0 0
    %1126 = vmatprep.subr.bf16.mxu0 0
    %1127 = vmatpush2.bf16.msra.mxu0 0
    %1128 = vmatprep.subr.bf16.mxu0 0
    %1129 = vmatpush2.bf16.msra.mxu0 0
    %1130 = vmatprep.subr.bf16.mxu0 0
    %1131 = vmatpush2.bf16.msra.mxu0 0
    %1132 = vmatprep.subr.bf16.mxu0 0
    %1133 = vmatpush2.bf16.msra.mxu0 0
    %1134 = vmatprep.subr.bf16.mxu0 0
    %1135 = vmatpush2.bf16.msra.mxu0 0
    %1136 = vmatprep.subr.bf16.mxu0 0
    %1137 = vmatpush2.bf16.msra.mxu0 0
    %1138 = vmatprep.mubr.bf16.mxu0 0
    %1139 = vmatmul.mubr.bf16.gmra.mxu0 %v1098
    %v1140 = vpop.f32.mrf.mxu0
    %v1141 = vadd.f32 0.0, %v1140
    %v1142 = vpop.f32.mrf.mxu0
    %v1143 = vpop.f32.mrf.mxu0
    %v1144 = vadd.f32 0.0, %v1143
    %v1145 = vpop.f32.mrf.mxu0
    %1146 = vmatprep.mubr.bf16.mxu0 0
    %1147 = vmatmul.mubr.bf16.gmra.mxu0 %v1101
    %v1148 = vpop.f32.mrf.mxu0
    %v1149 = vadd.f32 0.0, %v1148
    %v1150 = vpop.f32.mrf.mxu0
    %v1151 = vpop.f32.mrf.mxu0
    %v1152 = vpop.f32.mrf.mxu0
    %1153 = vdwg.mxu0
    %s1154 = scalar_lea.vmem %s14, 4
    %v1155 = vld [vmem:[%s1154] sm:$0xf]
    %v1156 = vpack.c.bf16 %v1144, %v1141
    %v1157 = vpack.c.bf16 %v1149, %v1149
    %v1159 = vsel %vm820, %v1156, 0
    %v1162 = vsel %vm820, %v1157, 0
    %v1165 = vsel %vm931, %v1155, 0
    %1167 = vmatprep.subr.bf16.mxu0 0
    %1168 = vmatpush1.bf16.msra.mxu0 0
    %1169 = vmatprep.subr.bf16.mxu0 0
    %1170 = vmatpush1.bf16.msra.mxu0 0
    %1171 = vmatprep.subr.bf16.mxu0 0
    %1172 = vmatpush1.bf16.msra.mxu0 0
    %1173 = vmatprep.subr.bf16.mxu0 0
    %1174 = vmatpush1.bf16.msra.mxu0 0
    %1175 = vmatprep.subr.bf16.mxu0 0
    %1176 = vmatpush1.bf16.msra.mxu0 0
    %1177 = vmatprep.subr.bf16.mxu0 0
    %1178 = vmatpush1.bf16.msra.mxu0 0
    %1179 = vmatprep.subr.bf16.mxu0 0
    %1180 = vmatpush1.bf16.msra.mxu0 0
    %1181 = vmatprep.subr.bf16.mxu0 0
    %1182 = vmatpush1.bf16.msra.mxu0 %v1165
    %1183 = vmatprep.subr.bf16.mxu0 0
    %1184 = vmatpush2.bf16.msra.mxu0 0
    %1185 = vmatprep.subr.bf16.mxu0 0
    %1186 = vmatpush2.bf16.msra.mxu0 0
    %1187 = vmatprep.subr.bf16.mxu0 0
    %1188 = vmatpush2.bf16.msra.mxu0 0
    %1189 = vmatprep.subr.bf16.mxu0 0
    %1190 = vmatpush2.bf16.msra.mxu0 0
    %1191 = vmatprep.subr.bf16.mxu0 0
    %1192 = vmatpush2.bf16.msra.mxu0 0
    %1193 = vmatprep.subr.bf16.mxu0 0
    %1194 = vmatpush2.bf16.msra.mxu0 0
    %1195 = vmatprep.subr.bf16.mxu0 0
    %1196 = vmatpush2.bf16.msra.mxu0 0
    %1197 = vmatprep.subr.bf16.mxu0 0
    %1198 = vmatpush2.bf16.msra.mxu0 0
    %1199 = vmatprep.mubr.bf16.mxu0 0
    %1200 = vmatmul.mubr.bf16.gmra.mxu0 %v1159
    %v1201 = vpop.f32.mrf.mxu0
    %v1202 = vadd.f32 0.0, %v1201
    %v1203 = vpop.f32.mrf.mxu0
    %v1204 = vpop.f32.mrf.mxu0
    %v1205 = vadd.f32 0.0, %v1204
    %v1206 = vpop.f32.mrf.mxu0
    %1207 = vmatprep.mubr.bf16.mxu0 0
    %1208 = vmatmul.mubr.bf16.gmra.mxu0 %v1162
    %v1209 = vpop.f32.mrf.mxu0
    %v1210 = vadd.f32 0.0, %v1209
    %v1211 = vpop.f32.mrf.mxu0
    %v1212 = vpop.f32.mrf.mxu0
    %v1213 = vpop.f32.mrf.mxu0
    %1214 = vdwg.mxu0
    %v1216 = vsel %vm820, %v984, 0
    %v1219 = vsel %vm820, %v985, 0
    %v1222 = vsel %vm931, %v983, 0
    %1224 = vmatprep.subr.bf16.mxu0 0
    %1225 = vmatpush1.bf16.msra.mxu0 0
    %1226 = vmatprep.subr.bf16.mxu0 0
    %1227 = vmatpush1.bf16.msra.mxu0 0
    %1228 = vmatprep.subr.bf16.mxu0 0
    %1229 = vmatpush1.bf16.msra.mxu0 0
    %1230 = vmatprep.subr.bf16.mxu0 0
    %1231 = vmatpush1.bf16.msra.mxu0 0
    %1232 = vmatprep.subr.bf16.mxu0 0
    %1233 = vmatpush1.bf16.msra.mxu0 0
    %1234 = vmatprep.subr.bf16.mxu0 0
    %1235 = vmatpush1.bf16.msra.mxu0 0
    %1236 = vmatprep.subr.bf16.mxu0 0
    %1237 = vmatpush1.bf16.msra.mxu0 0
    %1238 = vmatprep.subr.bf16.mxu0 0
    %1239 = vmatpush1.bf16.msra.mxu0 %v1222
    %1240 = vmatprep.subr.bf16.mxu0 0
    %1241 = vmatpush2.bf16.msra.mxu0 0
    %1242 = vmatprep.subr.bf16.mxu0 0
    %1243 = vmatpush2.bf16.msra.mxu0 0
    %1244 = vmatprep.subr.bf16.mxu0 0
    %1245 = vmatpush2.bf16.msra.mxu0 0
    %1246 = vmatprep.subr.bf16.mxu0 0
    %1247 = vmatpush2.bf16.msra.mxu0 0
    %1248 = vmatprep.subr.bf16.mxu0 0
    %1249 = vmatpush2.bf16.msra.mxu0 0
    %1250 = vmatprep.subr.bf16.mxu0 0
    %1251 = vmatpush2.bf16.msra.mxu0 0
    %1252 = vmatprep.subr.bf16.mxu0 0
    %1253 = vmatpush2.bf16.msra.mxu0 0
    %1254 = vmatprep.subr.bf16.mxu0 0
    %1255 = vmatpush2.bf16.msra.mxu0 0
    %1256 = vmatprep.mubr.bf16.mxu0 0
    %1257 = vmatmul.mubr.bf16.gmra.mxu0 %v1216
    %v1258 = vpop.f32.mrf.mxu0
    %v1259 = vadd.f32 %v1202, %v1258
    %v1260 = vpop.f32.mrf.mxu0
    %v1261 = vpop.f32.mrf.mxu0
    %v1262 = vadd.f32 %v1205, %v1261
    %v1263 = vpop.f32.mrf.mxu0
    %1264 = vmatprep.mubr.bf16.mxu0 0
    %1265 = vmatmul.mubr.bf16.gmra.mxu0 %v1219
    %v1266 = vpop.f32.mrf.mxu0
    %v1267 = vadd.f32 %v1210, %v1266
    %v1268 = vpop.f32.mrf.mxu0
    %v1269 = vpop.f32.mrf.mxu0
    %v1270 = vpop.f32.mrf.mxu0
    %1271 = vdwg.mxu0
    %1272 = vrot.lane.b32.xlu0 %v812, 112
    %v1273 = vpop.permute.xlu0 %1272
    %1274 = vrot.lane.b32.xlu0 %v813, 112
    %v1275 = vpop.permute.xlu0 %1274
    %1276 = vrot.lane.b32.xlu0 %v812, 80
    %v1277 = vpop.permute.xlu0 %1276
    %1278 = vrot.lane.b32.xlu0 %v813, 80
    %v1279 = vpop.permute.xlu0 %1278
    %v1281 = vsel %vm820, %v1273, 0
    %v1284 = vsel %vm820, %v1275, 0
    %v1287 = vsel %vm820, %v1277, 0
    %v1290 = vsel %vm820, %v1279, 0
    %1292 = vmatprep.subr.bf16.mxu0 0
    %1293 = vmatpush1.bf16.xpose.msra.mxu0 0
    %1294 = vmatprep.subr.bf16.mxu0 0
    %1295 = vmatpush1.bf16.xpose.msra.mxu0 0
    %1296 = vmatprep.subr.bf16.mxu0 0
    %1297 = vmatpush1.bf16.xpose.msra.mxu0 0
    %1298 = vmatprep.subr.bf16.mxu0 0
    %1299 = vmatpush1.bf16.xpose.msra.mxu0 0
    %1300 = vmatprep.subr.bf16.mxu0 0
    %1301 = vmatpush1.bf16.xpose.msra.mxu0 0
    %1302 = vmatprep.subr.bf16.mxu0 0
    %1303 = vmatpush1.bf16.xpose.msra.mxu0 0
    %1304 = vmatprep.subr.bf16.mxu0 0
    %1305 = vmatpush1.bf16.xpose.msra.mxu0 %v1290
    %1306 = vmatprep.subr.bf16.mxu0 0
    %1307 = vmatpush1.bf16.xpose.msra.mxu0 %v1287
    %1308 = vmatprep.subr.bf16.mxu0 0
    %1309 = vmatpush2.bf16.xpose.msra.mxu0 0
    %1310 = vmatprep.subr.bf16.mxu0 0
    %1311 = vmatpush2.bf16.xpose.msra.mxu0 0
    %1312 = vmatprep.subr.bf16.mxu0 0
    %1313 = vmatpush2.bf16.xpose.msra.mxu0 0
    %1314 = vmatprep.subr.bf16.mxu0 0
    %1315 = vmatpush2.bf16.xpose.msra.mxu0 0
    %1316 = vmatprep.subr.bf16.mxu0 0
    %1317 = vmatpush2.bf16.xpose.msra.mxu0 0
    %1318 = vmatprep.subr.bf16.mxu0 0
    %1319 = vmatpush2.bf16.xpose.msra.mxu0 0
    %1320 = vmatprep.subr.bf16.mxu0 0
    %1321 = vmatpush2.bf16.xpose.msra.mxu0 0
    %1322 = vmatprep.subr.bf16.mxu0 0
    %1323 = vmatpush2.bf16.xpose.msra.mxu0 0
    %1324 = vmatprep.mubr.bf16.mxu0 0
    %1325 = vmatmul.mubr.bf16.gmra.mxu0 %v1281
    %v1326 = vpop.f32.mrf.mxu0
    %v1327 = vadd.f32 0.0, %v1326
    %v1328 = vpop.f32.mrf.mxu0
    %v1329 = vpop.f32.mrf.mxu0
    %v1330 = vadd.f32 0.0, %v1329
    %v1331 = vpop.f32.mrf.mxu0
    %1332 = vmatprep.mubr.bf16.mxu0 0
    %1333 = vmatmul.mubr.bf16.gmra.mxu0 %v1284
    %v1334 = vpop.f32.mrf.mxu0
    %v1335 = vadd.f32 0.0, %v1334
    %v1336 = vpop.f32.mrf.mxu0
    %v1337 = vpop.f32.mrf.mxu0
    %v1338 = vpop.f32.mrf.mxu0
    %1339 = vdwg.mxu0
    %v1340 = vmul.f32 %v1327, 0.35355338
    %v1341 = vmul.f32 %v1330, 0.35355338
    %v1342 = vmul.f32 %v1335, 0.35355338
    %v1343 = vsel %vm884, %v1340, -inf
    %1344 = vmax.xlane.f32.xlu0 %v1343
    %v1345 = vpop.xlane.xlu0 %1344
    %v1346 = vsel %vm884, %v1341, -inf
    %1347 = vmax.xlane.f32.xlu0 %v1346
    %v1348 = vpop.xlane.xlu0 %1347
    %v1349 = vsel %vm884, %v1342, -inf
    %1350 = vmax.xlane.f32.xlu0 %v1349
    %v1351 = vpop.xlane.xlu0 %1350
    %v1352 = vsub.f32 %v1340, %v1345
    %v1353 = vsub.f32 %v1341, %v1348
    %v1354 = vsub.f32 %v1342, %v1351
    %v1355 = vmul.f32 %v1352, 1.442695
    %v1356 = vpow.pop %v1355
    %v1357 = vmul.f32 %v1353, 1.442695
    %v1358 = vpow.pop %v1357
    %v1359 = vmul.f32 %v1354, 1.442695
    %v1360 = vpow.pop %v1359
    %v1361 = vsel %vm884, %v1356, 0.0
    %1362 = vadd.xlane.f32.xlu0 %v1361
    %v1363 = vpop.xlane.xlu0 %1362
    %v1364 = vsel %vm884, %v1358, 0.0
    %1365 = vadd.xlane.f32.xlu0 %v1364
    %v1366 = vpop.xlane.xlu0 %1365
    %v1367 = vsel %vm884, %v1360, 0.0
    %1368 = vadd.xlane.f32.xlu0 %v1367
    %v1369 = vpop.xlane.xlu0 %1368
    %v1370 = vrcp.pop %v1363
    %v1371 = vrcp.pop %v1366
    %v1372 = vrcp.pop %v1369
    %v1373 = vmul.f32 %v1356, %v1370
    %v1374 = vmul.f32 %v1358, %v1371
    %v1375 = vmul.f32 %v1360, %v1372
    %v1376 = vpack.c.bf16 %v1374, %v1373
    %v1377 = vpack.c.bf16 %v1375, %v1375
    %1378 = vrot.lane.b32.xlu0 %v812, 48
    %v1379 = vpop.permute.xlu0 %1378
    %1380 = vrot.lane.b32.xlu0 %v813, 48
    %v1381 = vpop.permute.xlu0 %1380
    %v1384 = vsel %vm884, %v1376, 0
    %v1387 = vsel %vm884, %v1377, 0
    %v1390 = vsel %vm931, %v1381, 0
    %1392 = vmatprep.subr.bf16.mxu0 0
    %1393 = vmatpush1.bf16.msra.mxu0 0
    %1394 = vmatprep.subr.bf16.mxu0 0
    %1395 = vmatpush1.bf16.msra.mxu0 0
    %1396 = vmatprep.subr.bf16.mxu0 0
    %1397 = vmatpush1.bf16.msra.mxu0 0
    %1398 = vmatprep.subr.bf16.mxu0 0
    %1399 = vmatpush1.bf16.msra.mxu0 0
    %1400 = vmatprep.subr.bf16.mxu0 0
    %1401 = vmatpush1.bf16.msra.mxu0 0
    %1402 = vmatprep.subr.bf16.mxu0 0
    %1403 = vmatpush1.bf16.msra.mxu0 0
    %1404 = vmatprep.subr.bf16.mxu0 0
    %1405 = vmatpush1.bf16.msra.mxu0 %v1390
    %1406 = vmatprep.subr.bf16.mxu0 0
    %1407 = vmatpush1.bf16.msra.mxu0 %v1379
    %1408 = vmatprep.subr.bf16.mxu0 0
    %1409 = vmatpush2.bf16.msra.mxu0 0
    %1410 = vmatprep.subr.bf16.mxu0 0
    %1411 = vmatpush2.bf16.msra.mxu0 0
    %1412 = vmatprep.subr.bf16.mxu0 0
    %1413 = vmatpush2.bf16.msra.mxu0 0
    %1414 = vmatprep.subr.bf16.mxu0 0
    %1415 = vmatpush2.bf16.msra.mxu0 0
    %1416 = vmatprep.subr.bf16.mxu0 0
    %1417 = vmatpush2.bf16.msra.mxu0 0
    %1418 = vmatprep.subr.bf16.mxu0 0
    %1419 = vmatpush2.bf16.msra.mxu0 0
    %1420 = vmatprep.subr.bf16.mxu0 0
    %1421 = vmatpush2.bf16.msra.mxu0 0
    %1422 = vmatprep.subr.bf16.mxu0 0
    %1423 = vmatpush2.bf16.msra.mxu0 0
    %1424 = vmatprep.mubr.bf16.mxu0 0
    %1425 = vmatmul.mubr.bf16.gmra.mxu0 %v1384
    %v1426 = vpop.f32.mrf.mxu0
    %v1427 = vadd.f32 0.0, %v1426
    %v1428 = vpop.f32.mrf.mxu0
    %v1429 = vpop.f32.mrf.mxu0
    %v1430 = vadd.f32 0.0, %v1429
    %v1431 = vpop.f32.mrf.mxu0
    %1432 = vmatprep.mubr.bf16.mxu0 0
    %1433 = vmatmul.mubr.bf16.gmra.mxu0 %v1387
    %v1434 = vpop.f32.mrf.mxu0
    %v1435 = vadd.f32 0.0, %v1434
    %v1436 = vpop.f32.mrf.mxu0
    %v1437 = vpop.f32.mrf.mxu0
    %v1438 = vpop.f32.mrf.mxu0
    %1439 = vdwg.mxu0
    %s1440 = scalar_lea.vmem %s14, 8
    %v1441 = vld [vmem:[%s1440] sm:$0xf]
    %v1442 = vpack.c.bf16 %v1430, %v1427
    %v1443 = vpack.c.bf16 %v1435, %v1435
    %v1445 = vsel %vm820, %v1442, 0
    %v1448 = vsel %vm820, %v1443, 0
    %v1451 = vsel %vm931, %v1441, 0
    %1453 = vmatprep.subr.bf16.mxu0 0
    %1454 = vmatpush1.bf16.msra.mxu0 0
    %1455 = vmatprep.subr.bf16.mxu0 0
    %1456 = vmatpush1.bf16.msra.mxu0 0
    %1457 = vmatprep.subr.bf16.mxu0 0
    %1458 = vmatpush1.bf16.msra.mxu0 0
    %1459 = vmatprep.subr.bf16.mxu0 0
    %1460 = vmatpush1.bf16.msra.mxu0 0
    %1461 = vmatprep.subr.bf16.mxu0 0
    %1462 = vmatpush1.bf16.msra.mxu0 0
    %1463 = vmatprep.subr.bf16.mxu0 0
    %1464 = vmatpush1.bf16.msra.mxu0 0
    %1465 = vmatprep.subr.bf16.mxu0 0
    %1466 = vmatpush1.bf16.msra.mxu0 0
    %1467 = vmatprep.subr.bf16.mxu0 0
    %1468 = vmatpush1.bf16.msra.mxu0 %v1451
    %1469 = vmatprep.subr.bf16.mxu0 0
    %1470 = vmatpush2.bf16.msra.mxu0 0
    %1471 = vmatprep.subr.bf16.mxu0 0
    %1472 = vmatpush2.bf16.msra.mxu0 0
    %1473 = vmatprep.subr.bf16.mxu0 0
    %1474 = vmatpush2.bf16.msra.mxu0 0
    %1475 = vmatprep.subr.bf16.mxu0 0
    %1476 = vmatpush2.bf16.msra.mxu0 0
    %1477 = vmatprep.subr.bf16.mxu0 0
    %1478 = vmatpush2.bf16.msra.mxu0 0
    %1479 = vmatprep.subr.bf16.mxu0 0
    %1480 = vmatpush2.bf16.msra.mxu0 0
    %1481 = vmatprep.subr.bf16.mxu0 0
    %1482 = vmatpush2.bf16.msra.mxu0 0
    %1483 = vmatprep.subr.bf16.mxu0 0
    %1484 = vmatpush2.bf16.msra.mxu0 0
    %1485 = vmatprep.mubr.bf16.mxu0 0
    %1486 = vmatmul.mubr.bf16.gmra.mxu0 %v1445
    %v1487 = vpop.f32.mrf.mxu0
    %v1488 = vadd.f32 0.0, %v1487
    %v1489 = vpop.f32.mrf.mxu0
    %v1490 = vpop.f32.mrf.mxu0
    %v1491 = vadd.f32 0.0, %v1490
    %v1492 = vpop.f32.mrf.mxu0
    %1493 = vmatprep.mubr.bf16.mxu0 0
    %1494 = vmatmul.mubr.bf16.gmra.mxu0 %v1448
    %v1495 = vpop.f32.mrf.mxu0
    %v1496 = vadd.f32 0.0, %v1495
    %v1497 = vpop.f32.mrf.mxu0
    %v1498 = vpop.f32.mrf.mxu0
    %v1499 = vpop.f32.mrf.mxu0
    %1500 = vdwg.mxu0
    %v1501 = vadd.f32 %v1259, %v1488
    %v1502 = vadd.f32 %v1262, %v1491
    %v1503 = vadd.f32 %v1267, %v1496
    %1504 = vrot.lane.b32.xlu0 %v812, 104
    %v1505 = vpop.permute.xlu0 %1504
    %1506 = vrot.lane.b32.xlu0 %v813, 104
    %v1507 = vpop.permute.xlu0 %1506
    %1508 = vrot.lane.b32.xlu0 %v812, 72
    %v1509 = vpop.permute.xlu0 %1508
    %1510 = vrot.lane.b32.xlu0 %v813, 72
    %v1511 = vpop.permute.xlu0 %1510
    %v1513 = vsel %vm820, %v1505, 0
    %v1516 = vsel %vm820, %v1507, 0
    %v1519 = vsel %vm820, %v1509, 0
    %v1522 = vsel %vm820, %v1511, 0
    %1524 = vmatprep.subr.bf16.mxu0 0
    %1525 = vmatpush1.bf16.xpose.msra.mxu0 0
    %1526 = vmatprep.subr.bf16.mxu0 0
    %1527 = vmatpush1.bf16.xpose.msra.mxu0 0
    %1528 = vmatprep.subr.bf16.mxu0 0
    %1529 = vmatpush1.bf16.xpose.msra.mxu0 0
    %1530 = vmatprep.subr.bf16.mxu0 0
    %1531 = vmatpush1.bf16.xpose.msra.mxu0 0
    %1532 = vmatprep.subr.bf16.mxu0 0
    %1533 = vmatpush1.bf16.xpose.msra.mxu0 0
    %1534 = vmatprep.subr.bf16.mxu0 0
    %1535 = vmatpush1.bf16.xpose.msra.mxu0 0
    %1536 = vmatprep.subr.bf16.mxu0 0
    %1537 = vmatpush1.bf16.xpose.msra.mxu0 %v1522
    %1538 = vmatprep.subr.bf16.mxu0 0
    %1539 = vmatpush1.bf16.xpose.msra.mxu0 %v1519
    %1540 = vmatprep.subr.bf16.mxu0 0
    %1541 = vmatpush2.bf16.xpose.msra.mxu0 0
    %1542 = vmatprep.subr.bf16.mxu0 0
    %1543 = vmatpush2.bf16.xpose.msra.mxu0 0
    %1544 = vmatprep.subr.bf16.mxu0 0
    %1545 = vmatpush2.bf16.xpose.msra.mxu0 0
    %1546 = vmatprep.subr.bf16.mxu0 0
    %1547 = vmatpush2.bf16.xpose.msra.mxu0 0
    %1548 = vmatprep.subr.bf16.mxu0 0
    %1549 = vmatpush2.bf16.xpose.msra.mxu0 0
    %1550 = vmatprep.subr.bf16.mxu0 0
    %1551 = vmatpush2.bf16.xpose.msra.mxu0 0
    %1552 = vmatprep.subr.bf16.mxu0 0
    %1553 = vmatpush2.bf16.xpose.msra.mxu0 0
    %1554 = vmatprep.subr.bf16.mxu0 0
    %1555 = vmatpush2.bf16.xpose.msra.mxu0 0
    %1556 = vmatprep.mubr.bf16.mxu0 0
    %1557 = vmatmul.mubr.bf16.gmra.mxu0 %v1513
    %v1558 = vpop.f32.mrf.mxu0
    %v1559 = vadd.f32 0.0, %v1558
    %v1560 = vpop.f32.mrf.mxu0
    %v1561 = vpop.f32.mrf.mxu0
    %v1562 = vadd.f32 0.0, %v1561
    %v1563 = vpop.f32.mrf.mxu0
    %1564 = vmatprep.mubr.bf16.mxu0 0
    %1565 = vmatmul.mubr.bf16.gmra.mxu0 %v1516
    %v1566 = vpop.f32.mrf.mxu0
    %v1567 = vadd.f32 0.0, %v1566
    %v1568 = vpop.f32.mrf.mxu0
    %v1569 = vpop.f32.mrf.mxu0
    %v1570 = vpop.f32.mrf.mxu0
    %1571 = vdwg.mxu0
    %v1572 = vmul.f32 %v1559, 0.35355338
    %v1573 = vmul.f32 %v1562, 0.35355338
    %v1574 = vmul.f32 %v1567, 0.35355338
    %v1575 = vsel %vm884, %v1572, -inf
    %1576 = vmax.xlane.f32.xlu0 %v1575
    %v1577 = vpop.xlane.xlu0 %1576
    %v1578 = vsel %vm884, %v1573, -inf
    %1579 = vmax.xlane.f32.xlu0 %v1578
    %v1580 = vpop.xlane.xlu0 %1579
    %v1581 = vsel %vm884, %v1574, -inf
    %1582 = vmax.xlane.f32.xlu0 %v1581
    %v1583 = vpop.xlane.xlu0 %1582
    %v1584 = vsub.f32 %v1572, %v1577
    %v1585 = vsub.f32 %v1573, %v1580
    %v1586 = vsub.f32 %v1574, %v1583
    %v1587 = vmul.f32 %v1584, 1.442695
    %v1588 = vpow.pop %v1587
    %v1589 = vmul.f32 %v1585, 1.442695
    %v1590 = vpow.pop %v1589
    %v1591 = vmul.f32 %v1586, 1.442695
    %v1592 = vpow.pop %v1591
    %v1593 = vsel %vm884, %v1588, 0.0
    %1594 = vadd.xlane.f32.xlu0 %v1593
    %v1595 = vpop.xlane.xlu0 %1594
    %v1596 = vsel %vm884, %v1590, 0.0
    %1597 = vadd.xlane.f32.xlu0 %v1596
    %v1598 = vpop.xlane.xlu0 %1597
    %v1599 = vsel %vm884, %v1592, 0.0
    %1600 = vadd.xlane.f32.xlu0 %v1599
    %v1601 = vpop.xlane.xlu0 %1600
    %v1602 = vrcp.pop %v1595
    %v1603 = vrcp.pop %v1598
    %v1604 = vrcp.pop %v1601
    %v1605 = vmul.f32 %v1588, %v1602
    %v1606 = vmul.f32 %v1590, %v1603
    %v1607 = vmul.f32 %v1592, %v1604
    %v1608 = vpack.c.bf16 %v1606, %v1605
    %v1609 = vpack.c.bf16 %v1607, %v1607
    %1610 = vrot.lane.b32.xlu0 %v812, 40
    %v1611 = vpop.permute.xlu0 %1610
    %1612 = vrot.lane.b32.xlu0 %v813, 40
    %v1613 = vpop.permute.xlu0 %1612
    %v1616 = vsel %vm884, %v1608, 0
    %v1619 = vsel %vm884, %v1609, 0
    %v1622 = vsel %vm931, %v1613, 0
    %1624 = vmatprep.subr.bf16.mxu0 0
    %1625 = vmatpush1.bf16.msra.mxu0 0
    %1626 = vmatprep.subr.bf16.mxu0 0
    %1627 = vmatpush1.bf16.msra.mxu0 0
    %1628 = vmatprep.subr.bf16.mxu0 0
    %1629 = vmatpush1.bf16.msra.mxu0 0
    %1630 = vmatprep.subr.bf16.mxu0 0
    %1631 = vmatpush1.bf16.msra.mxu0 0
    %1632 = vmatprep.subr.bf16.mxu0 0
    %1633 = vmatpush1.bf16.msra.mxu0 0
    %1634 = vmatprep.subr.bf16.mxu0 0
    %1635 = vmatpush1.bf16.msra.mxu0 0
    %1636 = vmatprep.subr.bf16.mxu0 0
    %1637 = vmatpush1.bf16.msra.mxu0 %v1622
    %1638 = vmatprep.subr.bf16.mxu0 0
    %1639 = vmatpush1.bf16.msra.mxu0 %v1611
    %1640 = vmatprep.subr.bf16.mxu0 0
    %1641 = vmatpush2.bf16.msra.mxu0 0
    %1642 = vmatprep.subr.bf16.mxu0 0
    %1643 = vmatpush2.bf16.msra.mxu0 0
    %1644 = vmatprep.subr.bf16.mxu0 0
    %1645 = vmatpush2.bf16.msra.mxu0 0
    %1646 = vmatprep.subr.bf16.mxu0 0
    %1647 = vmatpush2.bf16.msra.mxu0 0
    %1648 = vmatprep.subr.bf16.mxu0 0
    %1649 = vmatpush2.bf16.msra.mxu0 0
    %1650 = vmatprep.subr.bf16.mxu0 0
    %1651 = vmatpush2.bf16.msra.mxu0 0
    %1652 = vmatprep.subr.bf16.mxu0 0
    %1653 = vmatpush2.bf16.msra.mxu0 0
    %1654 = vmatprep.subr.bf16.mxu0 0
    %1655 = vmatpush2.bf16.msra.mxu0 0
    %1656 = vmatprep.mubr.bf16.mxu0 0
    %1657 = vmatmul.mubr.bf16.gmra.mxu0 %v1616
    %v1658 = vpop.f32.mrf.mxu0
    %v1659 = vadd.f32 0.0, %v1658
    %v1660 = vpop.f32.mrf.mxu0
    %v1661 = vpop.f32.mrf.mxu0
    %v1662 = vadd.f32 0.0, %v1661
    %v1663 = vpop.f32.mrf.mxu0
    %1664 = vmatprep.mubr.bf16.mxu0 0
    %1665 = vmatmul.mubr.bf16.gmra.mxu0 %v1619
    %v1666 = vpop.f32.mrf.mxu0
    %v1667 = vadd.f32 0.0, %v1666
    %v1668 = vpop.f32.mrf.mxu0
    %v1669 = vpop.f32.mrf.mxu0
    %v1670 = vpop.f32.mrf.mxu0
    %1671 = vdwg.mxu0
    %s1672 = scalar_lea.vmem %s14, 12
    %v1673 = vld [vmem:[%s1672] sm:$0xf]
    %v1674 = vpack.c.bf16 %v1662, %v1659
    %v1675 = vpack.c.bf16 %v1667, %v1667
    %v1677 = vsel %vm820, %v1674, 0
    %v1680 = vsel %vm820, %v1675, 0
    %v1683 = vsel %vm931, %v1673, 0
    %1685 = vmatprep.subr.bf16.mxu0 0
    %1686 = vmatpush1.bf16.msra.mxu0 0
    %1687 = vmatprep.subr.bf16.mxu0 0
    %1688 = vmatpush1.bf16.msra.mxu0 0
    %1689 = vmatprep.subr.bf16.mxu0 0
    %1690 = vmatpush1.bf16.msra.mxu0 0
    %1691 = vmatprep.subr.bf16.mxu0 0
    %1692 = vmatpush1.bf16.msra.mxu0 0
    %1693 = vmatprep.subr.bf16.mxu0 0
    %1694 = vmatpush1.bf16.msra.mxu0 0
    %1695 = vmatprep.subr.bf16.mxu0 0
    %1696 = vmatpush1.bf16.msra.mxu0 0
    %1697 = vmatprep.subr.bf16.mxu0 0
    %1698 = vmatpush1.bf16.msra.mxu0 0
    %1699 = vmatprep.subr.bf16.mxu0 0
    %1700 = vmatpush1.bf16.msra.mxu0 %v1683
    %1701 = vmatprep.subr.bf16.mxu0 0
    %1702 = vmatpush2.bf16.msra.mxu0 0
    %1703 = vmatprep.subr.bf16.mxu0 0
    %1704 = vmatpush2.bf16.msra.mxu0 0
    %1705 = vmatprep.subr.bf16.mxu0 0
    %1706 = vmatpush2.bf16.msra.mxu0 0
    %1707 = vmatprep.subr.bf16.mxu0 0
    %1708 = vmatpush2.bf16.msra.mxu0 0
    %1709 = vmatprep.subr.bf16.mxu0 0
    %1710 = vmatpush2.bf16.msra.mxu0 0
    %1711 = vmatprep.subr.bf16.mxu0 0
    %1712 = vmatpush2.bf16.msra.mxu0 0
    %1713 = vmatprep.subr.bf16.mxu0 0
    %1714 = vmatpush2.bf16.msra.mxu0 0
    %1715 = vmatprep.subr.bf16.mxu0 0
    %1716 = vmatpush2.bf16.msra.mxu0 0
    %1717 = vmatprep.mubr.bf16.mxu0 0
    %1718 = vmatmul.mubr.bf16.gmra.mxu0 %v1677
    %v1719 = vpop.f32.mrf.mxu0
    %v1720 = vadd.f32 0.0, %v1719
    %v1721 = vpop.f32.mrf.mxu0
    %v1722 = vpop.f32.mrf.mxu0
    %v1723 = vadd.f32 0.0, %v1722
    %v1724 = vpop.f32.mrf.mxu0
    %1725 = vmatprep.mubr.bf16.mxu0 0
    %1726 = vmatmul.mubr.bf16.gmra.mxu0 %v1680
    %v1727 = vpop.f32.mrf.mxu0
    %v1728 = vadd.f32 0.0, %v1727
    %v1729 = vpop.f32.mrf.mxu0
    %v1730 = vpop.f32.mrf.mxu0
    %v1731 = vpop.f32.mrf.mxu0
    %1732 = vdwg.mxu0
    %v1733 = vadd.f32 %v1501, %v1720
    %v1734 = vadd.f32 %v1502, %v1723
    %v1735 = vadd.f32 %v1503, %v1728
    %v1736 = vld [vmem:[%s15] sm:$0x1]
    %v1738 = vlaneseq
    %v1739 = vshrl.u32 %v1738, 7
    %v1740 = vsub.s32 0, %v1739
    %v1741 = vrot.slane %v1736, %v1740
    %v1743 = vadd.f32 %v1733, %v1741
    %v1744 = vadd.f32 %v1734, %v1741
    %v1745 = vadd.f32 %v1735, %v1741
    %v1746 = vpack.c.bf16 %v806, %v801
    %v1747 = vpack.c.bf16 %v809, %v809
    %1750 = vrot.lane.b32.xlu0 %v1746, 96
    %v1751 = vpop.permute.xlu0 %1750
    %1752 = vrot.lane.b32.xlu0 %v1747, 96
    %v1753 = vpop.permute.xlu0 %1752
    %v1755 = vsel %vm820, %v1746, 0
    %v1758 = vsel %vm820, %v1747, 0
    %v1761 = vsel %vm820, %v1751, 0
    %v1764 = vsel %vm820, %v1753, 0
    %1766 = vmatprep.subr.bf16.mxu0 0
    %1767 = vmatpush1.bf16.xpose.msra.mxu0 0
    %1768 = vmatprep.subr.bf16.mxu0 0
    %1769 = vmatpush1.bf16.xpose.msra.mxu0 0
    %1770 = vmatprep.subr.bf16.mxu0 0
    %1771 = vmatpush1.bf16.xpose.msra.mxu0 0
    %1772 = vmatprep.subr.bf16.mxu0 0
    %1773 = vmatpush1.bf16.xpose.msra.mxu0 0
    %1774 = vmatprep.subr.bf16.mxu0 0
    %1775 = vmatpush1.bf16.xpose.msra.mxu0 0
    %1776 = vmatprep.subr.bf16.mxu0 0
    %1777 = vmatpush1.bf16.xpose.msra.mxu0 0
    %1778 = vmatprep.subr.bf16.mxu0 0
    %1779 = vmatpush1.bf16.xpose.msra.mxu0 %v1764
    %1780 = vmatprep.subr.bf16.mxu0 0
    %1781 = vmatpush1.bf16.xpose.msra.mxu0 %v1761
    %1782 = vmatprep.subr.bf16.mxu0 0
    %1783 = vmatpush2.bf16.xpose.msra.mxu0 0
    %1784 = vmatprep.subr.bf16.mxu0 0
    %1785 = vmatpush2.bf16.xpose.msra.mxu0 0
    %1786 = vmatprep.subr.bf16.mxu0 0
    %1787 = vmatpush2.bf16.xpose.msra.mxu0 0
    %1788 = vmatprep.subr.bf16.mxu0 0
    %1789 = vmatpush2.bf16.xpose.msra.mxu0 0
    %1790 = vmatprep.subr.bf16.mxu0 0
    %1791 = vmatpush2.bf16.xpose.msra.mxu0 0
    %1792 = vmatprep.subr.bf16.mxu0 0
    %1793 = vmatpush2.bf16.xpose.msra.mxu0 0
    %1794 = vmatprep.subr.bf16.mxu0 0
    %1795 = vmatpush2.bf16.xpose.msra.mxu0 0
    %1796 = vmatprep.subr.bf16.mxu0 0
    %1797 = vmatpush2.bf16.xpose.msra.mxu0 0
    %1798 = vmatprep.mubr.bf16.mxu0 0
    %1799 = vmatmul.mubr.bf16.gmra.mxu0 %v1755
    %v1800 = vpop.f32.mrf.mxu0
    %v1801 = vadd.f32 0.0, %v1800
    %v1802 = vpop.f32.mrf.mxu0
    %v1803 = vpop.f32.mrf.mxu0
    %v1804 = vadd.f32 0.0, %v1803
    %v1805 = vpop.f32.mrf.mxu0
    %1806 = vmatprep.mubr.bf16.mxu0 0
    %1807 = vmatmul.mubr.bf16.gmra.mxu0 %v1758
    %v1808 = vpop.f32.mrf.mxu0
    %v1809 = vadd.f32 0.0, %v1808
    %v1810 = vpop.f32.mrf.mxu0
    %v1811 = vpop.f32.mrf.mxu0
    %v1812 = vpop.f32.mrf.mxu0
    %1813 = vdwg.mxu0
    %v1814 = vmul.f32 %v1801, 0.35355338
    %v1815 = vmul.f32 %v1804, 0.35355338
    %v1816 = vmul.f32 %v1809, 0.35355338
    %v1817 = vsel %vm884, %v1814, -inf
    %1818 = vmax.xlane.f32.xlu0 %v1817
    %v1819 = vpop.xlane.xlu0 %1818
    %v1820 = vsel %vm884, %v1815, -inf
    %1821 = vmax.xlane.f32.xlu0 %v1820
    %v1822 = vpop.xlane.xlu0 %1821
    %v1823 = vsel %vm884, %v1816, -inf
    %1824 = vmax.xlane.f32.xlu0 %v1823
    %v1825 = vpop.xlane.xlu0 %1824
    %v1826 = vsub.f32 %v1814, %v1819
    %v1827 = vsub.f32 %v1815, %v1822
    %v1828 = vsub.f32 %v1816, %v1825
    %v1829 = vmul.f32 %v1826, 1.442695
    %v1830 = vpow.pop %v1829
    %v1831 = vmul.f32 %v1827, 1.442695
    %v1832 = vpow.pop %v1831
    %v1833 = vmul.f32 %v1828, 1.442695
    %v1834 = vpow.pop %v1833
    %v1835 = vsel %vm884, %v1830, 0.0
    %1836 = vadd.xlane.f32.xlu0 %v1835
    %v1837 = vpop.xlane.xlu0 %1836
    %v1838 = vsel %vm884, %v1832, 0.0
    %1839 = vadd.xlane.f32.xlu0 %v1838
    %v1840 = vpop.xlane.xlu0 %1839
    %v1841 = vsel %vm884, %v1834, 0.0
    %1842 = vadd.xlane.f32.xlu0 %v1841
    %v1843 = vpop.xlane.xlu0 %1842
    %v1844 = vrcp.pop %v1837
    %v1845 = vrcp.pop %v1840
    %v1846 = vrcp.pop %v1843
    %v1847 = vmul.f32 %v1830, %v1844
    %v1848 = vmul.f32 %v1832, %v1845
    %v1849 = vmul.f32 %v1834, %v1846
    %v1850 = vpack.c.bf16 %v1848, %v1847
    %v1851 = vpack.c.bf16 %v1849, %v1849
    %1852 = vrot.lane.b32.xlu0 %v1746, 64
    %v1853 = vpop.permute.xlu0 %1852
    %1854 = vrot.lane.b32.xlu0 %v1747, 64
    %v1855 = vpop.permute.xlu0 %1854
    %v1858 = vsel %vm884, %v1850, 0
    %v1861 = vsel %vm884, %v1851, 0
    %v1864 = vsel %vm931, %v1855, 0
    %1866 = vmatprep.subr.bf16.mxu0 0
    %1867 = vmatpush1.bf16.msra.mxu0 0
    %1868 = vmatprep.subr.bf16.mxu0 0
    %1869 = vmatpush1.bf16.msra.mxu0 0
    %1870 = vmatprep.subr.bf16.mxu0 0
    %1871 = vmatpush1.bf16.msra.mxu0 0
    %1872 = vmatprep.subr.bf16.mxu0 0
    %1873 = vmatpush1.bf16.msra.mxu0 0
    %1874 = vmatprep.subr.bf16.mxu0 0
    %1875 = vmatpush1.bf16.msra.mxu0 0
    %1876 = vmatprep.subr.bf16.mxu0 0
    %1877 = vmatpush1.bf16.msra.mxu0 0
    %1878 = vmatprep.subr.bf16.mxu0 0
    %1879 = vmatpush1.bf16.msra.mxu0 %v1864
    %1880 = vmatprep.subr.bf16.mxu0 0
    %1881 = vmatpush1.bf16.msra.mxu0 %v1853
    %1882 = vmatprep.subr.bf16.mxu0 0
    %1883 = vmatpush2.bf16.msra.mxu0 0
    %1884 = vmatprep.subr.bf16.mxu0 0
    %1885 = vmatpush2.bf16.msra.mxu0 0
    %1886 = vmatprep.subr.bf16.mxu0 0
    %1887 = vmatpush2.bf16.msra.mxu0 0
    %1888 = vmatprep.subr.bf16.mxu0 0
    %1889 = vmatpush2.bf16.msra.mxu0 0
    %1890 = vmatprep.subr.bf16.mxu0 0
    %1891 = vmatpush2.bf16.msra.mxu0 0
    %1892 = vmatprep.subr.bf16.mxu0 0
    %1893 = vmatpush2.bf16.msra.mxu0 0
    %1894 = vmatprep.subr.bf16.mxu0 0
    %1895 = vmatpush2.bf16.msra.mxu0 0
    %1896 = vmatprep.subr.bf16.mxu0 0
    %1897 = vmatpush2.bf16.msra.mxu0 0
    %1898 = vmatprep.mubr.bf16.mxu0 0
    %1899 = vmatmul.mubr.bf16.gmra.mxu0 %v1858
    %v1900 = vpop.f32.mrf.mxu0
    %v1901 = vadd.f32 0.0, %v1900
    %v1902 = vpop.f32.mrf.mxu0
    %v1903 = vpop.f32.mrf.mxu0
    %v1904 = vadd.f32 0.0, %v1903
    %v1905 = vpop.f32.mrf.mxu0
    %1906 = vmatprep.mubr.bf16.mxu0 0
    %1907 = vmatmul.mubr.bf16.gmra.mxu0 %v1861
    %v1908 = vpop.f32.mrf.mxu0
    %v1909 = vadd.f32 0.0, %v1908
    %v1910 = vpop.f32.mrf.mxu0
    %v1911 = vpop.f32.mrf.mxu0
    %v1912 = vpop.f32.mrf.mxu0
    %1913 = vdwg.mxu0
    %v1914 = vpack.c.bf16 %v1904, %v1901
    %v1915 = vpack.c.bf16 %v1909, %v1909
    %1916 = vrot.lane.b32.xlu0 %v1746, 120
    %v1917 = vpop.permute.xlu0 %1916
    %1918 = vrot.lane.b32.xlu0 %v1747, 120
    %v1919 = vpop.permute.xlu0 %1918
    %1920 = vrot.lane.b32.xlu0 %v1746, 88
    %v1921 = vpop.permute.xlu0 %1920
    %1922 = vrot.lane.b32.xlu0 %v1747, 88
    %v1923 = vpop.permute.xlu0 %1922
    %v1925 = vsel %vm820, %v1917, 0
    %v1928 = vsel %vm820, %v1919, 0
    %v1931 = vsel %vm820, %v1921, 0
    %v1934 = vsel %vm820, %v1923, 0
    %1936 = vmatprep.subr.bf16.mxu0 0
    %1937 = vmatpush1.bf16.xpose.msra.mxu0 0
    %1938 = vmatprep.subr.bf16.mxu0 0
    %1939 = vmatpush1.bf16.xpose.msra.mxu0 0
    %1940 = vmatprep.subr.bf16.mxu0 0
    %1941 = vmatpush1.bf16.xpose.msra.mxu0 0
    %1942 = vmatprep.subr.bf16.mxu0 0
    %1943 = vmatpush1.bf16.xpose.msra.mxu0 0
    %1944 = vmatprep.subr.bf16.mxu0 0
    %1945 = vmatpush1.bf16.xpose.msra.mxu0 0
    %1946 = vmatprep.subr.bf16.mxu0 0
    %1947 = vmatpush1.bf16.xpose.msra.mxu0 0
    %1948 = vmatprep.subr.bf16.mxu0 0
    %1949 = vmatpush1.bf16.xpose.msra.mxu0 %v1934
    %1950 = vmatprep.subr.bf16.mxu0 0
    %1951 = vmatpush1.bf16.xpose.msra.mxu0 %v1931
    %1952 = vmatprep.subr.bf16.mxu0 0
    %1953 = vmatpush2.bf16.xpose.msra.mxu0 0
    %1954 = vmatprep.subr.bf16.mxu0 0
    %1955 = vmatpush2.bf16.xpose.msra.mxu0 0
    %1956 = vmatprep.subr.bf16.mxu0 0
    %1957 = vmatpush2.bf16.xpose.msra.mxu0 0
    %1958 = vmatprep.subr.bf16.mxu0 0
    %1959 = vmatpush2.bf16.xpose.msra.mxu0 0
    %1960 = vmatprep.subr.bf16.mxu0 0
    %1961 = vmatpush2.bf16.xpose.msra.mxu0 0
    %1962 = vmatprep.subr.bf16.mxu0 0
    %1963 = vmatpush2.bf16.xpose.msra.mxu0 0
    %1964 = vmatprep.subr.bf16.mxu0 0
    %1965 = vmatpush2.bf16.xpose.msra.mxu0 0
    %1966 = vmatprep.subr.bf16.mxu0 0
    %1967 = vmatpush2.bf16.xpose.msra.mxu0 0
    %1968 = vmatprep.mubr.bf16.mxu0 0
    %1969 = vmatmul.mubr.bf16.gmra.mxu0 %v1925
    %v1970 = vpop.f32.mrf.mxu0
    %v1971 = vadd.f32 0.0, %v1970
    %v1972 = vpop.f32.mrf.mxu0
    %v1973 = vpop.f32.mrf.mxu0
    %v1974 = vadd.f32 0.0, %v1973
    %v1975 = vpop.f32.mrf.mxu0
    %1976 = vmatprep.mubr.bf16.mxu0 0
    %1977 = vmatmul.mubr.bf16.gmra.mxu0 %v1928
    %v1978 = vpop.f32.mrf.mxu0
    %v1979 = vadd.f32 0.0, %v1978
    %v1980 = vpop.f32.mrf.mxu0
    %v1981 = vpop.f32.mrf.mxu0
    %v1982 = vpop.f32.mrf.mxu0
    %1983 = vdwg.mxu0
    %v1984 = vmul.f32 %v1971, 0.35355338
    %v1985 = vmul.f32 %v1974, 0.35355338
    %v1986 = vmul.f32 %v1979, 0.35355338
    %v1987 = vsel %vm884, %v1984, -inf
    %1988 = vmax.xlane.f32.xlu0 %v1987
    %v1989 = vpop.xlane.xlu0 %1988
    %v1990 = vsel %vm884, %v1985, -inf
    %1991 = vmax.xlane.f32.xlu0 %v1990
    %v1992 = vpop.xlane.xlu0 %1991
    %v1993 = vsel %vm884, %v1986, -inf
    %1994 = vmax.xlane.f32.xlu0 %v1993
    %v1995 = vpop.xlane.xlu0 %1994
    %v1996 = vsub.f32 %v1984, %v1989
    %v1997 = vsub.f32 %v1985, %v1992
    %v1998 = vsub.f32 %v1986, %v1995
    %v1999 = vmul.f32 %v1996, 1.442695
    %v2000 = vpow.pop %v1999
    %v2001 = vmul.f32 %v1997, 1.442695
    %v2002 = vpow.pop %v2001
    %v2003 = vmul.f32 %v1998, 1.442695
    %v2004 = vpow.pop %v2003
    %v2005 = vsel %vm884, %v2000, 0.0
    %2006 = vadd.xlane.f32.xlu0 %v2005
    %v2007 = vpop.xlane.xlu0 %2006
    %v2008 = vsel %vm884, %v2002, 0.0
    %2009 = vadd.xlane.f32.xlu0 %v2008
    %v2010 = vpop.xlane.xlu0 %2009
    %v2011 = vsel %vm884, %v2004, 0.0
    %2012 = vadd.xlane.f32.xlu0 %v2011
    %v2013 = vpop.xlane.xlu0 %2012
    %v2014 = vrcp.pop %v2007
    %v2015 = vrcp.pop %v2010
    %v2016 = vrcp.pop %v2013
    %v2017 = vmul.f32 %v2000, %v2014
    %v2018 = vmul.f32 %v2002, %v2015
    %v2019 = vmul.f32 %v2004, %v2016
    %v2020 = vpack.c.bf16 %v2018, %v2017
    %v2021 = vpack.c.bf16 %v2019, %v2019
    %2022 = vrot.lane.b32.xlu0 %v1746, 56
    %v2023 = vpop.permute.xlu0 %2022
    %2024 = vrot.lane.b32.xlu0 %v1747, 56
    %v2025 = vpop.permute.xlu0 %2024
    %v2028 = vsel %vm884, %v2020, 0
    %v2031 = vsel %vm884, %v2021, 0
    %v2034 = vsel %vm931, %v2025, 0
    %2036 = vmatprep.subr.bf16.mxu0 0
    %2037 = vmatpush1.bf16.msra.mxu0 0
    %2038 = vmatprep.subr.bf16.mxu0 0
    %2039 = vmatpush1.bf16.msra.mxu0 0
    %2040 = vmatprep.subr.bf16.mxu0 0
    %2041 = vmatpush1.bf16.msra.mxu0 0
    %2042 = vmatprep.subr.bf16.mxu0 0
    %2043 = vmatpush1.bf16.msra.mxu0 0
    %2044 = vmatprep.subr.bf16.mxu0 0
    %2045 = vmatpush1.bf16.msra.mxu0 0
    %2046 = vmatprep.subr.bf16.mxu0 0
    %2047 = vmatpush1.bf16.msra.mxu0 0
    %2048 = vmatprep.subr.bf16.mxu0 0
    %2049 = vmatpush1.bf16.msra.mxu0 %v2034
    %2050 = vmatprep.subr.bf16.mxu0 0
    %2051 = vmatpush1.bf16.msra.mxu0 %v2023
    %2052 = vmatprep.subr.bf16.mxu0 0
    %2053 = vmatpush2.bf16.msra.mxu0 0
    %2054 = vmatprep.subr.bf16.mxu0 0
    %2055 = vmatpush2.bf16.msra.mxu0 0
    %2056 = vmatprep.subr.bf16.mxu0 0
    %2057 = vmatpush2.bf16.msra.mxu0 0
    %2058 = vmatprep.subr.bf16.mxu0 0
    %2059 = vmatpush2.bf16.msra.mxu0 0
    %2060 = vmatprep.subr.bf16.mxu0 0
    %2061 = vmatpush2.bf16.msra.mxu0 0
    %2062 = vmatprep.subr.bf16.mxu0 0
    %2063 = vmatpush2.bf16.msra.mxu0 0
    %2064 = vmatprep.subr.bf16.mxu0 0
    %2065 = vmatpush2.bf16.msra.mxu0 0
    %2066 = vmatprep.subr.bf16.mxu0 0
    %2067 = vmatpush2.bf16.msra.mxu0 0
    %2068 = vmatprep.mubr.bf16.mxu0 0
    %2069 = vmatmul.mubr.bf16.gmra.mxu0 %v2028
    %v2070 = vpop.f32.mrf.mxu0
    %v2071 = vadd.f32 0.0, %v2070
    %v2072 = vpop.f32.mrf.mxu0
    %v2073 = vpop.f32.mrf.mxu0
    %v2074 = vadd.f32 0.0, %v2073
    %v2075 = vpop.f32.mrf.mxu0
    %2076 = vmatprep.mubr.bf16.mxu0 0
    %2077 = vmatmul.mubr.bf16.gmra.mxu0 %v2031
    %v2078 = vpop.f32.mrf.mxu0
    %v2079 = vadd.f32 0.0, %v2078
    %v2080 = vpop.f32.mrf.mxu0
    %v2081 = vpop.f32.mrf.mxu0
    %v2082 = vpop.f32.mrf.mxu0
    %2083 = vdwg.mxu0
    %v2084 = vpack.c.bf16 %v2074, %v2071
    %v2085 = vpack.c.bf16 %v2079, %v2079
    %v2087 = vsel %vm820, %v2084, 0
    %v2090 = vsel %vm820, %v2085, 0
    %2092 = vmatprep.subr.bf16.mxu0 0
    %2093 = vmatpush1.bf16.msra.mxu0 0
    %2094 = vmatprep.subr.bf16.mxu0 0
    %2095 = vmatpush1.bf16.msra.mxu0 0
    %2096 = vmatprep.subr.bf16.mxu0 0
    %2097 = vmatpush1.bf16.msra.mxu0 0
    %2098 = vmatprep.subr.bf16.mxu0 0
    %2099 = vmatpush1.bf16.msra.mxu0 0
    %2100 = vmatprep.subr.bf16.mxu0 0
    %2101 = vmatpush1.bf16.msra.mxu0 0
    %2102 = vmatprep.subr.bf16.mxu0 0
    %2103 = vmatpush1.bf16.msra.mxu0 0
    %2104 = vmatprep.subr.bf16.mxu0 0
    %2105 = vmatpush1.bf16.msra.mxu0 0
    %2106 = vmatprep.subr.bf16.mxu0 0
    %2107 = vmatpush1.bf16.msra.mxu0 %v1165
    %2108 = vmatprep.subr.bf16.mxu0 0
    %2109 = vmatpush2.bf16.msra.mxu0 0
    %2110 = vmatprep.subr.bf16.mxu0 0
    %2111 = vmatpush2.bf16.msra.mxu0 0
    %2112 = vmatprep.subr.bf16.mxu0 0
    %2113 = vmatpush2.bf16.msra.mxu0 0
    %2114 = vmatprep.subr.bf16.mxu0 0
    %2115 = vmatpush2.bf16.msra.mxu0 0
    %2116 = vmatprep.subr.bf16.mxu0 0
    %2117 = vmatpush2.bf16.msra.mxu0 0
    %2118 = vmatprep.subr.bf16.mxu0 0
    %2119 = vmatpush2.bf16.msra.mxu0 0
    %2120 = vmatprep.subr.bf16.mxu0 0
    %2121 = vmatpush2.bf16.msra.mxu0 0
    %2122 = vmatprep.subr.bf16.mxu0 0
    %2123 = vmatpush2.bf16.msra.mxu0 0
    %2124 = vmatprep.mubr.bf16.mxu0 0
    %2125 = vmatmul.mubr.bf16.gmra.mxu0 %v2087
    %v2126 = vpop.f32.mrf.mxu0
    %v2127 = vadd.f32 0.0, %v2126
    %v2128 = vpop.f32.mrf.mxu0
    %v2129 = vpop.f32.mrf.mxu0
    %v2130 = vadd.f32 0.0, %v2129
    %v2131 = vpop.f32.mrf.mxu0
    %2132 = vmatprep.mubr.bf16.mxu0 0
    %2133 = vmatmul.mubr.bf16.gmra.mxu0 %v2090
    %v2134 = vpop.f32.mrf.mxu0
    %v2135 = vadd.f32 0.0, %v2134
    %v2136 = vpop.f32.mrf.mxu0
    %v2137 = vpop.f32.mrf.mxu0
    %v2138 = vpop.f32.mrf.mxu0
    %2139 = vdwg.mxu0
    %v2141 = vsel %vm820, %v1914, 0
    %v2144 = vsel %vm820, %v1915, 0
    %2146 = vmatprep.subr.bf16.mxu0 0
    %2147 = vmatpush1.bf16.msra.mxu0 0
    %2148 = vmatprep.subr.bf16.mxu0 0
    %2149 = vmatpush1.bf16.msra.mxu0 0
    %2150 = vmatprep.subr.bf16.mxu0 0
    %2151 = vmatpush1.bf16.msra.mxu0 0
    %2152 = vmatprep.subr.bf16.mxu0 0
    %2153 = vmatpush1.bf16.msra.mxu0 0
    %2154 = vmatprep.subr.bf16.mxu0 0
    %2155 = vmatpush1.bf16.msra.mxu0 0
    %2156 = vmatprep.subr.bf16.mxu0 0
    %2157 = vmatpush1.bf16.msra.mxu0 0
    %2158 = vmatprep.subr.bf16.mxu0 0
    %2159 = vmatpush1.bf16.msra.mxu0 0
    %2160 = vmatprep.subr.bf16.mxu0 0
    %2161 = vmatpush1.bf16.msra.mxu0 %v1222
    %2162 = vmatprep.subr.bf16.mxu0 0
    %2163 = vmatpush2.bf16.msra.mxu0 0
    %2164 = vmatprep.subr.bf16.mxu0 0
    %2165 = vmatpush2.bf16.msra.mxu0 0
    %2166 = vmatprep.subr.bf16.mxu0 0
    %2167 = vmatpush2.bf16.msra.mxu0 0
    %2168 = vmatprep.subr.bf16.mxu0 0
    %2169 = vmatpush2.bf16.msra.mxu0 0
    %2170 = vmatprep.subr.bf16.mxu0 0
    %2171 = vmatpush2.bf16.msra.mxu0 0
    %2172 = vmatprep.subr.bf16.mxu0 0
    %2173 = vmatpush2.bf16.msra.mxu0 0
    %2174 = vmatprep.subr.bf16.mxu0 0
    %2175 = vmatpush2.bf16.msra.mxu0 0
    %2176 = vmatprep.subr.bf16.mxu0 0
    %2177 = vmatpush2.bf16.msra.mxu0 0
    %2178 = vmatprep.mubr.bf16.mxu0 0
    %2179 = vmatmul.mubr.bf16.gmra.mxu0 %v2141
    %v2180 = vpop.f32.mrf.mxu0
    %v2181 = vadd.f32 %v2127, %v2180
    %v2182 = vpop.f32.mrf.mxu0
    %v2183 = vpop.f32.mrf.mxu0
    %v2184 = vadd.f32 %v2130, %v2183
    %v2185 = vpop.f32.mrf.mxu0
    %2186 = vmatprep.mubr.bf16.mxu0 0
    %2187 = vmatmul.mubr.bf16.gmra.mxu0 %v2144
    %v2188 = vpop.f32.mrf.mxu0
    %v2189 = vadd.f32 %v2135, %v2188
    %v2190 = vpop.f32.mrf.mxu0
    %v2191 = vpop.f32.mrf.mxu0
    %v2192 = vpop.f32.mrf.mxu0
    %2193 = vdwg.mxu0
    %2194 = vrot.lane.b32.xlu0 %v1746, 112
    %v2195 = vpop.permute.xlu0 %2194
    %2196 = vrot.lane.b32.xlu0 %v1747, 112
    %v2197 = vpop.permute.xlu0 %2196
    %2198 = vrot.lane.b32.xlu0 %v1746, 80
    %v2199 = vpop.permute.xlu0 %2198
    %2200 = vrot.lane.b32.xlu0 %v1747, 80
    %v2201 = vpop.permute.xlu0 %2200
    %v2203 = vsel %vm820, %v2195, 0
    %v2206 = vsel %vm820, %v2197, 0
    %v2209 = vsel %vm820, %v2199, 0
    %v2212 = vsel %vm820, %v2201, 0
    %2214 = vmatprep.subr.bf16.mxu0 0
    %2215 = vmatpush1.bf16.xpose.msra.mxu0 0
    %2216 = vmatprep.subr.bf16.mxu0 0
    %2217 = vmatpush1.bf16.xpose.msra.mxu0 0
    %2218 = vmatprep.subr.bf16.mxu0 0
    %2219 = vmatpush1.bf16.xpose.msra.mxu0 0
    %2220 = vmatprep.subr.bf16.mxu0 0
    %2221 = vmatpush1.bf16.xpose.msra.mxu0 0
    %2222 = vmatprep.subr.bf16.mxu0 0
    %2223 = vmatpush1.bf16.xpose.msra.mxu0 0
    %2224 = vmatprep.subr.bf16.mxu0 0
    %2225 = vmatpush1.bf16.xpose.msra.mxu0 0
    %2226 = vmatprep.subr.bf16.mxu0 0
    %2227 = vmatpush1.bf16.xpose.msra.mxu0 %v2212
    %2228 = vmatprep.subr.bf16.mxu0 0
    %2229 = vmatpush1.bf16.xpose.msra.mxu0 %v2209
    %2230 = vmatprep.subr.bf16.mxu0 0
    %2231 = vmatpush2.bf16.xpose.msra.mxu0 0
    %2232 = vmatprep.subr.bf16.mxu0 0
    %2233 = vmatpush2.bf16.xpose.msra.mxu0 0
    %2234 = vmatprep.subr.bf16.mxu0 0
    %2235 = vmatpush2.bf16.xpose.msra.mxu0 0
    %2236 = vmatprep.subr.bf16.mxu0 0
    %2237 = vmatpush2.bf16.xpose.msra.mxu0 0
    %2238 = vmatprep.subr.bf16.mxu0 0
    %2239 = vmatpush2.bf16.xpose.msra.mxu0 0
    %2240 = vmatprep.subr.bf16.mxu0 0
    %2241 = vmatpush2.bf16.xpose.msra.mxu0 0
    %2242 = vmatprep.subr.bf16.mxu0 0
    %2243 = vmatpush2.bf16.xpose.msra.mxu0 0
    %2244 = vmatprep.subr.bf16.mxu0 0
    %2245 = vmatpush2.bf16.xpose.msra.mxu0 0
    %2246 = vmatprep.mubr.bf16.mxu0 0
    %2247 = vmatmul.mubr.bf16.gmra.mxu0 %v2203
    %v2248 = vpop.f32.mrf.mxu0
    %v2249 = vadd.f32 0.0, %v2248
    %v2250 = vpop.f32.mrf.mxu0
    %v2251 = vpop.f32.mrf.mxu0
    %v2252 = vadd.f32 0.0, %v2251
    %v2253 = vpop.f32.mrf.mxu0
    %2254 = vmatprep.mubr.bf16.mxu0 0
    %2255 = vmatmul.mubr.bf16.gmra.mxu0 %v2206
    %v2256 = vpop.f32.mrf.mxu0
    %v2257 = vadd.f32 0.0, %v2256
    %v2258 = vpop.f32.mrf.mxu0
    %v2259 = vpop.f32.mrf.mxu0
    %v2260 = vpop.f32.mrf.mxu0
    %2261 = vdwg.mxu0
    %v2262 = vmul.f32 %v2249, 0.35355338
    %v2263 = vmul.f32 %v2252, 0.35355338
    %v2264 = vmul.f32 %v2257, 0.35355338
    %v2265 = vsel %vm884, %v2262, -inf
    %2266 = vmax.xlane.f32.xlu0 %v2265
    %v2267 = vpop.xlane.xlu0 %2266
    %v2268 = vsel %vm884, %v2263, -inf
    %2269 = vmax.xlane.f32.xlu0 %v2268
    %v2270 = vpop.xlane.xlu0 %2269
    %v2271 = vsel %vm884, %v2264, -inf
    %2272 = vmax.xlane.f32.xlu0 %v2271
    %v2273 = vpop.xlane.xlu0 %2272
    %v2274 = vsub.f32 %v2262, %v2267
    %v2275 = vsub.f32 %v2263, %v2270
    %v2276 = vsub.f32 %v2264, %v2273
    %v2277 = vmul.f32 %v2274, 1.442695
    %v2278 = vpow.pop %v2277
    %v2279 = vmul.f32 %v2275, 1.442695
    %v2280 = vpow.pop %v2279
    %v2281 = vmul.f32 %v2276, 1.442695
    %v2282 = vpow.pop %v2281
    %v2283 = vsel %vm884, %v2278, 0.0
    %2284 = vadd.xlane.f32.xlu0 %v2283
    %v2285 = vpop.xlane.xlu0 %2284
    %v2286 = vsel %vm884, %v2280, 0.0
    %2287 = vadd.xlane.f32.xlu0 %v2286
    %v2288 = vpop.xlane.xlu0 %2287
    %v2289 = vsel %vm884, %v2282, 0.0
    %2290 = vadd.xlane.f32.xlu0 %v2289
    %v2291 = vpop.xlane.xlu0 %2290
    %v2292 = vrcp.pop %v2285
    %v2293 = vrcp.pop %v2288
    %v2294 = vrcp.pop %v2291
    %v2295 = vmul.f32 %v2278, %v2292
    %v2296 = vmul.f32 %v2280, %v2293
    %v2297 = vmul.f32 %v2282, %v2294
    %v2298 = vpack.c.bf16 %v2296, %v2295
    %v2299 = vpack.c.bf16 %v2297, %v2297
    %2300 = vrot.lane.b32.xlu0 %v1746, 48
    %v2301 = vpop.permute.xlu0 %2300
    %2302 = vrot.lane.b32.xlu0 %v1747, 48
    %v2303 = vpop.permute.xlu0 %2302
    %v2306 = vsel %vm884, %v2298, 0
    %v2309 = vsel %vm884, %v2299, 0
    %v2312 = vsel %vm931, %v2303, 0
    %2314 = vmatprep.subr.bf16.mxu0 0
    %2315 = vmatpush1.bf16.msra.mxu0 0
    %2316 = vmatprep.subr.bf16.mxu0 0
    %2317 = vmatpush1.bf16.msra.mxu0 0
    %2318 = vmatprep.subr.bf16.mxu0 0
    %2319 = vmatpush1.bf16.msra.mxu0 0
    %2320 = vmatprep.subr.bf16.mxu0 0
    %2321 = vmatpush1.bf16.msra.mxu0 0
    %2322 = vmatprep.subr.bf16.mxu0 0
    %2323 = vmatpush1.bf16.msra.mxu0 0
    %2324 = vmatprep.subr.bf16.mxu0 0
    %2325 = vmatpush1.bf16.msra.mxu0 0
    %2326 = vmatprep.subr.bf16.mxu0 0
    %2327 = vmatpush1.bf16.msra.mxu0 %v2312
    %2328 = vmatprep.subr.bf16.mxu0 0
    %2329 = vmatpush1.bf16.msra.mxu0 %v2301
    %2330 = vmatprep.subr.bf16.mxu0 0
    %2331 = vmatpush2.bf16.msra.mxu0 0
    %2332 = vmatprep.subr.bf16.mxu0 0
    %2333 = vmatpush2.bf16.msra.mxu0 0
    %2334 = vmatprep.subr.bf16.mxu0 0
    %2335 = vmatpush2.bf16.msra.mxu0 0
    %2336 = vmatprep.subr.bf16.mxu0 0
    %2337 = vmatpush2.bf16.msra.mxu0 0
    %2338 = vmatprep.subr.bf16.mxu0 0
    %2339 = vmatpush2.bf16.msra.mxu0 0
    %2340 = vmatprep.subr.bf16.mxu0 0
    %2341 = vmatpush2.bf16.msra.mxu0 0
    %2342 = vmatprep.subr.bf16.mxu0 0
    %2343 = vmatpush2.bf16.msra.mxu0 0
    %2344 = vmatprep.subr.bf16.mxu0 0
    %2345 = vmatpush2.bf16.msra.mxu0 0
    %2346 = vmatprep.mubr.bf16.mxu0 0
    %2347 = vmatmul.mubr.bf16.gmra.mxu0 %v2306
    %v2348 = vpop.f32.mrf.mxu0
    %v2349 = vadd.f32 0.0, %v2348
    %v2350 = vpop.f32.mrf.mxu0
    %v2351 = vpop.f32.mrf.mxu0
    %v2352 = vadd.f32 0.0, %v2351
    %v2353 = vpop.f32.mrf.mxu0
    %2354 = vmatprep.mubr.bf16.mxu0 0
    %2355 = vmatmul.mubr.bf16.gmra.mxu0 %v2309
    %v2356 = vpop.f32.mrf.mxu0
    %v2357 = vadd.f32 0.0, %v2356
    %v2358 = vpop.f32.mrf.mxu0
    %v2359 = vpop.f32.mrf.mxu0
    %v2360 = vpop.f32.mrf.mxu0
    %2361 = vdwg.mxu0
    %v2362 = vpack.c.bf16 %v2352, %v2349
    %v2363 = vpack.c.bf16 %v2357, %v2357
    %v2365 = vsel %vm820, %v2362, 0
    %v2368 = vsel %vm820, %v2363, 0
    %2370 = vmatprep.subr.bf16.mxu0 0
    %2371 = vmatpush1.bf16.msra.mxu0 0
    %2372 = vmatprep.subr.bf16.mxu0 0
    %2373 = vmatpush1.bf16.msra.mxu0 0
    %2374 = vmatprep.subr.bf16.mxu0 0
    %2375 = vmatpush1.bf16.msra.mxu0 0
    %2376 = vmatprep.subr.bf16.mxu0 0
    %2377 = vmatpush1.bf16.msra.mxu0 0
    %2378 = vmatprep.subr.bf16.mxu0 0
    %2379 = vmatpush1.bf16.msra.mxu0 0
    %2380 = vmatprep.subr.bf16.mxu0 0
    %2381 = vmatpush1.bf16.msra.mxu0 0
    %2382 = vmatprep.subr.bf16.mxu0 0
    %2383 = vmatpush1.bf16.msra.mxu0 0
    %2384 = vmatprep.subr.bf16.mxu0 0
    %2385 = vmatpush1.bf16.msra.mxu0 %v1451
    %2386 = vmatprep.subr.bf16.mxu0 0
    %2387 = vmatpush2.bf16.msra.mxu0 0
    %2388 = vmatprep.subr.bf16.mxu0 0
    %2389 = vmatpush2.bf16.msra.mxu0 0
    %2390 = vmatprep.subr.bf16.mxu0 0
    %2391 = vmatpush2.bf16.msra.mxu0 0
    %2392 = vmatprep.subr.bf16.mxu0 0
    %2393 = vmatpush2.bf16.msra.mxu0 0
    %2394 = vmatprep.subr.bf16.mxu0 0
    %2395 = vmatpush2.bf16.msra.mxu0 0
    %2396 = vmatprep.subr.bf16.mxu0 0
    %2397 = vmatpush2.bf16.msra.mxu0 0
    %2398 = vmatprep.subr.bf16.mxu0 0
    %2399 = vmatpush2.bf16.msra.mxu0 0
    %2400 = vmatprep.subr.bf16.mxu0 0
    %2401 = vmatpush2.bf16.msra.mxu0 0
    %2402 = vmatprep.mubr.bf16.mxu0 0
    %2403 = vmatmul.mubr.bf16.gmra.mxu0 %v2365
    %v2404 = vpop.f32.mrf.mxu0
    %v2405 = vadd.f32 0.0, %v2404
    %v2406 = vpop.f32.mrf.mxu0
    %v2407 = vpop.f32.mrf.mxu0
    %v2408 = vadd.f32 0.0, %v2407
    %v2409 = vpop.f32.mrf.mxu0
    %2410 = vmatprep.mubr.bf16.mxu0 0
    %2411 = vmatmul.mubr.bf16.gmra.mxu0 %v2368
    %v2412 = vpop.f32.mrf.mxu0
    %v2413 = vadd.f32 0.0, %v2412
    %v2414 = vpop.f32.mrf.mxu0
    %v2415 = vpop.f32.mrf.mxu0
    %v2416 = vpop.f32.mrf.mxu0
    %2417 = vdwg.mxu0
    %v2418 = vadd.f32 %v2181, %v2405
    %v2419 = vadd.f32 %v2184, %v2408
    %v2420 = vadd.f32 %v2189, %v2413
    %2421 = vrot.lane.b32.xlu0 %v1746, 104
    %v2422 = vpop.permute.xlu0 %2421
    %2423 = vrot.lane.b32.xlu0 %v1747, 104
    %v2424 = vpop.permute.xlu0 %2423
    %2425 = vrot.lane.b32.xlu0 %v1746, 72
    %v2426 = vpop.permute.xlu0 %2425
    %2427 = vrot.lane.b32.xlu0 %v1747, 72
    %v2428 = vpop.permute.xlu0 %2427
    %v2430 = vsel %vm820, %v2422, 0
    %v2433 = vsel %vm820, %v2424, 0
    %v2436 = vsel %vm820, %v2426, 0
    %v2439 = vsel %vm820, %v2428, 0
    %2441 = vmatprep.subr.bf16.mxu0 0
    %2442 = vmatpush1.bf16.xpose.msra.mxu0 0
    %2443 = vmatprep.subr.bf16.mxu0 0
    %2444 = vmatpush1.bf16.xpose.msra.mxu0 0
    %2445 = vmatprep.subr.bf16.mxu0 0
    %2446 = vmatpush1.bf16.xpose.msra.mxu0 0
    %2447 = vmatprep.subr.bf16.mxu0 0
    %2448 = vmatpush1.bf16.xpose.msra.mxu0 0
    %2449 = vmatprep.subr.bf16.mxu0 0
    %2450 = vmatpush1.bf16.xpose.msra.mxu0 0
    %2451 = vmatprep.subr.bf16.mxu0 0
    %2452 = vmatpush1.bf16.xpose.msra.mxu0 0
    %2453 = vmatprep.subr.bf16.mxu0 0
    %2454 = vmatpush1.bf16.xpose.msra.mxu0 %v2439
    %2455 = vmatprep.subr.bf16.mxu0 0
    %2456 = vmatpush1.bf16.xpose.msra.mxu0 %v2436
    %2457 = vmatprep.subr.bf16.mxu0 0
    %2458 = vmatpush2.bf16.xpose.msra.mxu0 0
    %2459 = vmatprep.subr.bf16.mxu0 0
    %2460 = vmatpush2.bf16.xpose.msra.mxu0 0
    %2461 = vmatprep.subr.bf16.mxu0 0
    %2462 = vmatpush2.bf16.xpose.msra.mxu0 0
    %2463 = vmatprep.subr.bf16.mxu0 0
    %2464 = vmatpush2.bf16.xpose.msra.mxu0 0
    %2465 = vmatprep.subr.bf16.mxu0 0
    %2466 = vmatpush2.bf16.xpose.msra.mxu0 0
    %2467 = vmatprep.subr.bf16.mxu0 0
    %2468 = vmatpush2.bf16.xpose.msra.mxu0 0
    %2469 = vmatprep.subr.bf16.mxu0 0
    %2470 = vmatpush2.bf16.xpose.msra.mxu0 0
    %2471 = vmatprep.subr.bf16.mxu0 0
    %2472 = vmatpush2.bf16.xpose.msra.mxu0 0
    %2473 = vmatprep.mubr.bf16.mxu0 0
    %2474 = vmatmul.mubr.bf16.gmra.mxu0 %v2430
    %v2475 = vpop.f32.mrf.mxu0
    %v2476 = vadd.f32 0.0, %v2475
    %v2477 = vpop.f32.mrf.mxu0
    %v2478 = vpop.f32.mrf.mxu0
    %v2479 = vadd.f32 0.0, %v2478
    %v2480 = vpop.f32.mrf.mxu0
    %2481 = vmatprep.mubr.bf16.mxu0 0
    %2482 = vmatmul.mubr.bf16.gmra.mxu0 %v2433
    %v2483 = vpop.f32.mrf.mxu0
    %v2484 = vadd.f32 0.0, %v2483
    %v2485 = vpop.f32.mrf.mxu0
    %v2486 = vpop.f32.mrf.mxu0
    %v2487 = vpop.f32.mrf.mxu0
    %2488 = vdwg.mxu0
    %v2489 = vmul.f32 %v2476, 0.35355338
    %v2490 = vmul.f32 %v2479, 0.35355338
    %v2491 = vmul.f32 %v2484, 0.35355338
    %v2492 = vsel %vm884, %v2489, -inf
    %2493 = vmax.xlane.f32.xlu0 %v2492
    %v2494 = vpop.xlane.xlu0 %2493
    %v2495 = vsel %vm884, %v2490, -inf
    %2496 = vmax.xlane.f32.xlu0 %v2495
    %v2497 = vpop.xlane.xlu0 %2496
    %v2498 = vsel %vm884, %v2491, -inf
    %2499 = vmax.xlane.f32.xlu0 %v2498
    %v2500 = vpop.xlane.xlu0 %2499
    %v2501 = vsub.f32 %v2489, %v2494
    %v2502 = vsub.f32 %v2490, %v2497
    %v2503 = vsub.f32 %v2491, %v2500
    %v2504 = vmul.f32 %v2501, 1.442695
    %v2505 = vpow.pop %v2504
    %v2506 = vmul.f32 %v2502, 1.442695
    %v2507 = vpow.pop %v2506
    %v2508 = vmul.f32 %v2503, 1.442695
    %v2509 = vpow.pop %v2508
    %v2510 = vsel %vm884, %v2505, 0.0
    %2511 = vadd.xlane.f32.xlu0 %v2510
    %v2512 = vpop.xlane.xlu0 %2511
    %v2513 = vsel %vm884, %v2507, 0.0
    %2514 = vadd.xlane.f32.xlu0 %v2513
    %v2515 = vpop.xlane.xlu0 %2514
    %v2516 = vsel %vm884, %v2509, 0.0
    %2517 = vadd.xlane.f32.xlu0 %v2516
    %v2518 = vpop.xlane.xlu0 %2517
    %v2519 = vrcp.pop %v2512
    %v2520 = vrcp.pop %v2515
    %v2521 = vrcp.pop %v2518
    %v2522 = vmul.f32 %v2505, %v2519
    %v2523 = vmul.f32 %v2507, %v2520
    %v2524 = vmul.f32 %v2509, %v2521
    %v2525 = vpack.c.bf16 %v2523, %v2522
    %v2526 = vpack.c.bf16 %v2524, %v2524
    %2527 = vrot.lane.b32.xlu0 %v1746, 40
    %v2528 = vpop.permute.xlu0 %2527
    %2529 = vrot.lane.b32.xlu0 %v1747, 40
    %v2530 = vpop.permute.xlu0 %2529
    %v2533 = vsel %vm884, %v2525, 0
    %v2536 = vsel %vm884, %v2526, 0
    %v2539 = vsel %vm931, %v2530, 0
    %2541 = vmatprep.subr.bf16.mxu0 0
    %2542 = vmatpush1.bf16.msra.mxu0 0
    %2543 = vmatprep.subr.bf16.mxu0 0
    %2544 = vmatpush1.bf16.msra.mxu0 0
    %2545 = vmatprep.subr.bf16.mxu0 0
    %2546 = vmatpush1.bf16.msra.mxu0 0
    %2547 = vmatprep.subr.bf16.mxu0 0
    %2548 = vmatpush1.bf16.msra.mxu0 0
    %2549 = vmatprep.subr.bf16.mxu0 0
    %2550 = vmatpush1.bf16.msra.mxu0 0
    %2551 = vmatprep.subr.bf16.mxu0 0
    %2552 = vmatpush1.bf16.msra.mxu0 0
    %2553 = vmatprep.subr.bf16.mxu0 0
    %2554 = vmatpush1.bf16.msra.mxu0 %v2539
    %2555 = vmatprep.subr.bf16.mxu0 0
    %2556 = vmatpush1.bf16.msra.mxu0 %v2528
    %2557 = vmatprep.subr.bf16.mxu0 0
    %2558 = vmatpush2.bf16.msra.mxu0 0
    %2559 = vmatprep.subr.bf16.mxu0 0
    %2560 = vmatpush2.bf16.msra.mxu0 0
    %2561 = vmatprep.subr.bf16.mxu0 0
    %2562 = vmatpush2.bf16.msra.mxu0 0
    %2563 = vmatprep.subr.bf16.mxu0 0
    %2564 = vmatpush2.bf16.msra.mxu0 0
    %2565 = vmatprep.subr.bf16.mxu0 0
    %2566 = vmatpush2.bf16.msra.mxu0 0
    %2567 = vmatprep.subr.bf16.mxu0 0
    %2568 = vmatpush2.bf16.msra.mxu0 0
    %2569 = vmatprep.subr.bf16.mxu0 0
    %2570 = vmatpush2.bf16.msra.mxu0 0
    %2571 = vmatprep.subr.bf16.mxu0 0
    %2572 = vmatpush2.bf16.msra.mxu0 0
    %2573 = vmatprep.mubr.bf16.mxu0 0
    %2574 = vmatmul.mubr.bf16.gmra.mxu0 %v2533
    %v2575 = vpop.f32.mrf.mxu0
    %v2576 = vadd.f32 0.0, %v2575
    %v2577 = vpop.f32.mrf.mxu0
    %v2578 = vpop.f32.mrf.mxu0
    %v2579 = vadd.f32 0.0, %v2578
    %v2580 = vpop.f32.mrf.mxu0
    %2581 = vmatprep.mubr.bf16.mxu0 0
    %2582 = vmatmul.mubr.bf16.gmra.mxu0 %v2536
    %v2583 = vpop.f32.mrf.mxu0
    %v2584 = vadd.f32 0.0, %v2583
    %v2585 = vpop.f32.mrf.mxu0
    %v2586 = vpop.f32.mrf.mxu0
    %v2587 = vpop.f32.mrf.mxu0
    %2588 = vdwg.mxu0
    %v2589 = vpack.c.bf16 %v2579, %v2576
    %v2590 = vpack.c.bf16 %v2584, %v2584
    %v2592 = vsel %vm820, %v2589, 0
    %v2595 = vsel %vm820, %v2590, 0
    %2597 = vmatprep.subr.bf16.mxu0 0
    %2598 = vmatpush1.bf16.msra.mxu0 0
    %2599 = vmatprep.subr.bf16.mxu0 0
    %2600 = vmatpush1.bf16.msra.mxu0 0
    %2601 = vmatprep.subr.bf16.mxu0 0
    %2602 = vmatpush1.bf16.msra.mxu0 0
    %2603 = vmatprep.subr.bf16.mxu0 0
    %2604 = vmatpush1.bf16.msra.mxu0 0
    %2605 = vmatprep.subr.bf16.mxu0 0
    %2606 = vmatpush1.bf16.msra.mxu0 0
    %2607 = vmatprep.subr.bf16.mxu0 0
    %2608 = vmatpush1.bf16.msra.mxu0 0
    %2609 = vmatprep.subr.bf16.mxu0 0
    %2610 = vmatpush1.bf16.msra.mxu0 0
    %2611 = vmatprep.subr.bf16.mxu0 0
    %2612 = vmatpush1.bf16.msra.mxu0 %v1683
    %2613 = vmatprep.subr.bf16.mxu0 0
    %2614 = vmatpush2.bf16.msra.mxu0 0
    %2615 = vmatprep.subr.bf16.mxu0 0
    %2616 = vmatpush2.bf16.msra.mxu0 0
    %2617 = vmatprep.subr.bf16.mxu0 0
    %2618 = vmatpush2.bf16.msra.mxu0 0
    %2619 = vmatprep.subr.bf16.mxu0 0
    %2620 = vmatpush2.bf16.msra.mxu0 0
    %2621 = vmatprep.subr.bf16.mxu0 0
    %2622 = vmatpush2.bf16.msra.mxu0 0
    %2623 = vmatprep.subr.bf16.mxu0 0
    %2624 = vmatpush2.bf16.msra.mxu0 0
    %2625 = vmatprep.subr.bf16.mxu0 0
    %2626 = vmatpush2.bf16.msra.mxu0 0
    %2627 = vmatprep.subr.bf16.mxu0 0
    %2628 = vmatpush2.bf16.msra.mxu0 0
    %2629 = vmatprep.mubr.bf16.mxu0 0
    %2630 = vmatmul.mubr.bf16.gmra.mxu0 %v2592
    %v2631 = vpop.f32.mrf.mxu0
    %v2632 = vadd.f32 0.0, %v2631
    %v2633 = vpop.f32.mrf.mxu0
    %v2634 = vpop.f32.mrf.mxu0
    %v2635 = vadd.f32 0.0, %v2634
    %v2636 = vpop.f32.mrf.mxu0
    %2637 = vmatprep.mubr.bf16.mxu0 0
    %2638 = vmatmul.mubr.bf16.gmra.mxu0 %v2595
    %v2639 = vpop.f32.mrf.mxu0
    %v2640 = vadd.f32 0.0, %v2639
    %v2641 = vpop.f32.mrf.mxu0
    %v2642 = vpop.f32.mrf.mxu0
    %v2643 = vpop.f32.mrf.mxu0
    %2644 = vdwg.mxu0
    %v2645 = vadd.f32 %v2418, %v2632
    %v2646 = vadd.f32 %v2419, %v2635
    %v2647 = vadd.f32 %v2420, %v2640
    %v2648 = vadd.f32 %v2645, %v1741
    %v2649 = vadd.f32 %v2646, %v1741
    %v2650 = vadd.f32 %v2647, %v1741
    %2651 = vst.msk [vmem:[#allocation2] sm:$0xff] %vm86, %v1743
    %2652 = vst.msk [vmem:[#allocation2 + $0x8] sm:$0xff] %vm86, %v1744
    %2653 = vst.msk [vmem:[#allocation2 + $0x10] sm:$0xff] %vm86, %v1745
    %2654 = vst.msk [vmem:[#allocation2 + $0x18] sm:$0xff] %vm86, %v2648
    %2655 = vst.msk [vmem:[#allocation2 + $0x20] sm:$0xff] %vm86, %v2649
    %2656 = vst.msk [vmem:[#allocation2 + $0x28] sm:$0xff] %vm86, %v2650
    // Predicated region
    $region66: #{transgnn_block_forward.1} parent=1 // pred_check
      _
    $region67: #{transgnn_block_forward.1} parent=1 // pred_check_branch
      %2658 = sbr.rel (0) target = $region69
    $region68: #{transgnn_block_forward.1} parent=1 // pred_region
      %s2660 = ssub.s32 768, 768
      %2661 = vsyncadd [#allocation3], %s2660
      %s2662 = sshll.u32 [#allocation2], 4
      %s2663 = int_to_ptr.vmem [resolvable:$true] %s2662
      %2668 = dma.vmem_to_hbm [thread:$0]  %s2663, 768, %s16, [#allocation3], 128, 128, 8
    $region69: #{transgnn_block_forward.1} parent=1 // pred_fallthru
      _
    // Predicated region
    $region70: #{transgnn_block_forward.1} parent=1 // pred_check
      _
    $region71: #{transgnn_block_forward.1} parent=1 // pred_check_branch
      %2670 = sbr.rel (0) target = $region73
    $region72: #{transgnn_block_forward.1} parent=1 // pred_region
      %2671 = dma.done [#allocation3], 768
    $region73: #{transgnn_block_forward.1} parent=1 // pred_fallthru
      _
    %2672 = vsyncpa [#allocation3], 1

</llo_original>
